<compile_context>
chip_gen: v7x
topology: tpu7x:2x2x1
jax: 0.10.0
libtpu: 0.0.40
codegen_flags: <defaults>
</compile_context>

<pallas_src>
import functools
import math

import jax
import jax.numpy as jnp
from jax.experimental import pallas as pl
from jax.experimental.pallas import tpu as pltpu

MXU_DTYPE = jnp.bfloat16   # matmul-operand dtype; accumulation stays f32
LN_EPS = 1e-5


# ------------------------------- Pallas kernel ------------------------------ #

def _layer_norm(x, gamma, beta, eps):
    mu = jnp.mean(x, axis=-1, keepdims=True)
    var = jnp.mean((x - mu) * (x - mu), axis=-1, keepdims=True)
    return (x - mu) * jax.lax.rsqrt(var + eps) * gamma + beta


def _decoder_kernel(tgt_ref, qpos_ref, mem_ref, mpos_ref,
                    attn_w_ref, attn_b_ref,
                    w1_ref, b1_ref, w2_ref, b2_ref,
                    ln_g_ref, ln_b_ref, fng_ref, fnb_ref,
                    o_ref, x_sc, *, nhead, eps):
    """One decoder layer for one batch element (grid = (batch, layer)).

    The per-batch activation is carried across the layer grid axis in a VMEM
    scratch; the output block is written only on the last layer (with the
    final LayerNorm fused in).
    """
    f32 = jnp.float32
    l = pl.program_id(1)
    n_layers = pl.num_programs(1)

    @pl.when(l == 0)
    def _():                                     # start a new batch element
        x_sc[...] = tgt_ref[0].astype(f32)

    x = x_sc[...]                                # (Lq, D) carried activation, f32
    qpos = qpos_ref[0].astype(f32)               # (Lq, D)
    mem = mem_ref[0].astype(f32)                 # (Lk, D)
    mpos = mpos_ref[0].astype(f32)               # (Lk, D)

    ab = attn_b_ref[0].astype(f32)               # (8, D)  q/k/v/o biases (self, cross)
    lg = ln_g_ref[0].astype(f32)                 # (3, D)  norm1/2/3 gamma
    lb = ln_b_ref[0].astype(f32)                 # (3, D)  norm1/2/3 beta

    D = x.shape[-1]
    dh = D // nhead
    scale = 1.0 / math.sqrt(dh)

    def mha(q_in, k_in, v_in, w0):
        # q/k/v projections: bf16 operands (weights already bf16), f32 accumulation.
        q = jnp.dot(q_in.astype(MXU_DTYPE), attn_w_ref[0, w0 + 0],
                    preferred_element_type=f32) + ab[w0 + 0:w0 + 1]
        k = jnp.dot(k_in.astype(MXU_DTYPE), attn_w_ref[0, w0 + 1],
                    preferred_element_type=f32) + ab[w0 + 1:w0 + 2]
        v = jnp.dot(v_in.astype(MXU_DTYPE), attn_w_ref[0, w0 + 2],
                    preferred_element_type=f32) + ab[w0 + 2:w0 + 3]

        heads = []
        for h in range(nhead):                   # unrolled; nhead is small & static
            sl = slice(h * dh, (h + 1) * dh)
            qh = (q[:, sl] * scale).astype(MXU_DTYPE)   # scale folded into dh-wide q
            kh = k[:, sl].astype(MXU_DTYPE)
            s = jax.lax.dot_general(qh, kh, (((1,), (1,)), ((), ())),
                                    preferred_element_type=f32)      # (Lq, Lk)
            s_max = jnp.max(s, axis=-1, keepdims=True)
            p = jnp.exp(s - s_max)                                    # <= 1, bf16-safe
            denom = jnp.sum(p, axis=-1, keepdims=True)
            oh = jnp.dot(p.astype(MXU_DTYPE), v[:, sl].astype(MXU_DTYPE),
                         preferred_element_type=f32)                  # (Lq, dh)
            # normalize AFTER the PV matmul: Lq*dh muls instead of Lq*Lk
            oh = oh * pl.reciprocal(denom, approx=True)               # EUP slot
            heads.append(oh.astype(MXU_DTYPE))

        # Head-merge + single full-D-contraction output projection (MXU friendly).
        ctx = jnp.concatenate(heads, axis=-1)                         # (Lq, D) bf16
        return jnp.dot(ctx, attn_w_ref[0, w0 + 3],
                       preferred_element_type=f32) + ab[w0 + 3:w0 + 4]

    # --- self-attention block: q = k = x + qpos, v = x, residual = x
    q_in = x + qpos
    x = _layer_norm(x + mha(q_in, q_in, x, 0), lg[0:1], lb[0:1], eps)

    # --- cross-attention block: q = x + qpos, k = mem + mpos, v = mem
    x = _layer_norm(x + mha(x + qpos, mem + mpos, mem, 4), lg[1:2], lb[1:2], eps)

    # --- FFN block (dim_ff intermediate never leaves VMEM)
    hid = jnp.dot(x.astype(MXU_DTYPE), w1_ref[0],
                  preferred_element_type=f32) + b1_ref[0].astype(f32)
    hid = jnp.maximum(hid, 0.0)
    y = jnp.dot(hid.astype(MXU_DTYPE), w2_ref[0],
                preferred_element_type=f32) + b2_ref[0].astype(f32)
    x = _layer_norm(x + y, lg[2:3], lb[2:3], eps)

    x_sc[...] = x                                # carry to the next layer

    @pl.when(l == n_layers - 1)                  # final decoder LayerNorm fused here
    def _():
        o_ref[0] = _layer_norm(x, fng_ref[...].astype(f32),
                               fnb_ref[...].astype(f32), eps).astype(o_ref.dtype)


# ------------------------------ kernel wrapper ------------------------------ #

def pack_params(params, w_dtype=MXU_DTYPE):
    """Stack per-layer weights along a leading layer axis and pre-cast matmul
    weights to bf16 once (biases / LayerNorm params stay f32)."""
    layers = params["layers"]
    D = params["norm_g"].shape[0]

    def stack(fn):
        return jnp.stack([fn(p) for p in layers], axis=0)

    attn_w = stack(lambda p: jnp.stack(
        [p["self_attn"]["wq"], p["self_attn"]["wk"],
         p["self_attn"]["wv"], p["self_attn"]["wo"],
         p["cross_attn"]["wq"], p["cross_attn"]["wk"],
         p["cross_attn"]["wv"], p["cross_attn"]["wo"]], axis=0)).astype(w_dtype)
    attn_b = stack(lambda p: jnp.stack(
        [p["self_attn"]["bq"], p["self_attn"]["bk"],
         p["self_attn"]["bv"], p["self_attn"]["bo"],
         p["cross_attn"]["bq"], p["cross_attn"]["bk"],
         p["cross_attn"]["bv"], p["cross_attn"]["bo"]], axis=0)).astype(jnp.float32)
    w1 = stack(lambda p: p["w1"]).astype(w_dtype)
    b1 = stack(lambda p: p["b1"].reshape(1, -1)).astype(jnp.float32)
    w2 = stack(lambda p: p["w2"]).astype(w_dtype)
    b2 = stack(lambda p: p["b2"].reshape(1, -1)).astype(jnp.float32)
    ln_g = stack(lambda p: jnp.stack(
        [p["norm1_g"], p["norm2_g"], p["norm3_g"]], axis=0)).astype(jnp.float32)
    ln_b = stack(lambda p: jnp.stack(
        [p["norm1_b"], p["norm2_b"], p["norm3_b"]], axis=0)).astype(jnp.float32)
    fng = params["norm_g"].reshape(1, D).astype(jnp.float32)
    fnb = params["norm_b"].reshape(1, D).astype(jnp.float32)
    return dict(attn_w=attn_w, attn_b=attn_b, w1=w1, b1=b1, w2=w2, b2=b2,
                ln_g=ln_g, ln_b=ln_b, fng=fng, fnb=fnb)


def transformer_decoder_forward(tgt, memory, packed, pos, query_pos, nhead,
                                eps=LN_EPS):
    # PyTorch interface is (L, B, D); run batch-major internally (no per-layer
    # transposes).  NOTE: d_model=32 here is a toy size (last dim < 128 lanes);
    # the kernel layout targets real DETR configs with D >= 128.
    tgt_b = jnp.transpose(tgt, (1, 0, 2))
    mem_b = jnp.transpose(memory, (1, 0, 2))
    pos_b = jnp.transpose(pos, (1, 0, 2))
    qpos_b = jnp.transpose(query_pos, (1, 0, 2))

    B, Lq, D = tgt_b.shape
    Lk = mem_b.shape[1]
    num_layers = packed["attn_w"].shape[0]
    F = packed["w1"].shape[-1]

    act_q = pl.BlockSpec((1, Lq, D), lambda b, l: (b, 0, 0))
    act_k = pl.BlockSpec((1, Lk, D), lambda b, l: (b, 0, 0))

    in_specs = [
        act_q,                                                     # tgt
        act_q,                                                     # query_pos
        act_k,                                                     # memory
        act_k,                                                     # pos
        pl.BlockSpec((1, 8, D, D), lambda b, l: (l, 0, 0, 0)),     # attn_w (bf16)
        pl.BlockSpec((1, 8, D),    lambda b, l: (l, 0, 0)),        # attn_b
        pl.BlockSpec((1, D, F),    lambda b, l: (l, 0, 0)),        # w1 (bf16)
        pl.BlockSpec((1, 1, F),    lambda b, l: (l, 0, 0)),        # b1
        pl.BlockSpec((1, F, D),    lambda b, l: (l, 0, 0)),        # w2 (bf16)
        pl.BlockSpec((1, 1, D),    lambda b, l: (l, 0, 0)),        # b2
        pl.BlockSpec((1, 3, D),    lambda b, l: (l, 0, 0)),        # norm1/2/3 gamma
        pl.BlockSpec((1, 3, D),    lambda b, l: (l, 0, 0)),        # norm1/2/3 beta
        pl.BlockSpec((1, D),       lambda b, l: (0, 0)),           # final norm gamma
        pl.BlockSpec((1, D),       lambda b, l: (0, 0)),           # final norm beta
    ]
    out_spec = pl.BlockSpec((1, Lq, D), lambda b, l: (b, 0, 0))

    # advisory cost estimate (per batch, per layer) for XLA scheduling
    flops = int(B * num_layers * (12 * Lq * D * D + 4 * Lk * D * D
                                  + 4 * Lq * Lq * D + 4 * Lq * Lk * D
                                  + 4 * Lq * D * F))
    transcendentals = int(B * num_layers * nhead * Lq * (Lq + Lk + 2))
    weight_bytes = sum(packed[k].size * packed[k].dtype.itemsize
                       for k in ("attn_w", "attn_b", "w1", "b1", "w2", "b2",
                                 "ln_g", "ln_b", "fng", "fnb"))
    act_bytes = sum(a.size * a.dtype.itemsize
                    for a in (tgt_b, qpos_b, mem_b, pos_b))
    bytes_accessed = int(B * weight_bytes + act_bytes + B * Lq * D * 4)

    out = pl.pallas_call(
        functools.partial(_decoder_kernel, nhead=nhead, eps=eps),
        out_shape=jax.ShapeDtypeStruct((B, Lq, D), tgt.dtype),
        grid=(B, num_layers),
        in_specs=in_specs,
        out_specs=out_spec,
        scratch_shapes=[pltpu.VMEM((Lq, D), jnp.float32)],
        compiler_params=pltpu.CompilerParams(
            dimension_semantics=("parallel", "arbitrary")),
        cost_estimate=pl.CostEstimate(flops=flops,
                                      transcendentals=transcendentals,
                                      bytes_accessed=bytes_accessed),
    )(tgt_b, qpos_b, mem_b, pos_b,
      packed["attn_w"], packed["attn_b"],
      packed["w1"], packed["b1"], packed["w2"], packed["b2"],
      packed["ln_g"], packed["ln_b"], packed["fng"], packed["fnb"])

    # back to (L, B, D); return_intermediate=False -> output.unsqueeze(0)
    return jnp.transpose(out, (1, 0, 2))[None]


# ------------------------------ parameter init ------------------------------ #

def init_params(key, num_layers, d_model, nhead, dim_ff, dtype=jnp.float32):
    def dense(key, fan_in, fan_out):
        return (jax.random.normal(key, (fan_in, fan_out), dtype) * 0.02,
                jnp.zeros((fan_out,), dtype))

    layers = []
    for li in range(num_layers):
        k = jax.random.fold_in(key, li)
        ks = jax.random.split(k, 10)
        wq, bq = dense(ks[0], d_model, d_model)
        wk, bk = dense(ks[1], d_model, d_model)
        wv, bv = dense(ks[2], d_model, d_model)
        wo, bo = dense(ks[3], d_model, d_model)
        cwq, cbq = dense(ks[4], d_model, d_model)
        cwk, cbk = dense(ks[5], d_model, d_model)
        cwv, cbv = dense(ks[6], d_model, d_model)
        cwo, cbo = dense(ks[7], d_model, d_model)
        w1, b1 = dense(ks[8], d_model, dim_ff)
        w2, b2 = dense(ks[9], dim_ff, d_model)
        layers.append({
            "self_attn": {"wq": wq, "bq": bq, "wk": wk, "bk": bk,
                          "wv": wv, "bv": bv, "wo": wo, "bo": bo},
            "cross_attn": {"wq": cwq, "bq": cbq, "wk": cwk, "bk": cbk,
                           "wv": cwv, "bv": cbv, "wo": cwo, "bo": cbo},
            "w1": w1, "b1": b1, "w2": w2, "b2": b2,
            "norm1_g": jnp.ones((d_model,), dtype), "norm1_b": jnp.zeros((d_model,), dtype),
            "norm2_g": jnp.ones((d_model,), dtype), "norm2_b": jnp.zeros((d_model,), dtype),
            "norm3_g": jnp.ones((d_model,), dtype), "norm3_b": jnp.zeros((d_model,), dtype),
        })
    return {
        "layers": layers,
        "norm_g": jnp.ones((d_model,), dtype),
        "norm_b": jnp.zeros((d_model,), dtype),
    }


# ----------------------------------- main ----------------------------------- #

if __name__ == "__main__":
    num_layers = 2
    d_model = 32
    nhead = 4
    dim_ff = 64
    L_tgt = 8      # number of object queries
    L_mem = 16     # encoder memory length (flattened H*W)
    B = 2          # batch

    key = jax.random.PRNGKey(0)
    k_tgt, k_mem, k_pos, k_qpos, k_par = jax.random.split(key, 5)

    tgt = jax.random.normal(k_tgt, (L_tgt, B, d_model), jnp.float32)
    memory = jax.random.normal(k_mem, (L_mem, B, d_model), jnp.float32)
    pos = jax.random.normal(k_pos, (L_mem, B, d_model), jnp.float32)
    query_pos = jax.random.normal(k_qpos, (L_tgt, B, d_model), jnp.float32)

    params = init_params(k_par, num_layers, d_model, nhead, dim_ff)
    packed = pack_params(params)   # stack per-layer weights, pre-cast to bf16 once

    fwd = jax.jit(functools.partial(transformer_decoder_forward, nhead=nhead))
    out = fwd(tgt, memory, packed, pos, query_pos)
    jax.block_until_ready(out)

    assert out.shape == (1, L_tgt, B, d_model), out.shape
    assert bool(jnp.all(jnp.isfinite(out)))
    print("KERNEL_OK")
</pallas_src>

<mosaic_0001>
module attributes {stable_mosaic.version = 11 : i64} {
  func.func @_decoder_kernel(%arg0: i32, %arg1: i32, %arg2: memref<1x8x32xf32, #tpu.memory_space<vmem>>, %arg3: memref<1x8x32xf32, #tpu.memory_space<vmem>>, %arg4: memref<1x16x32xf32, #tpu.memory_space<vmem>>, %arg5: memref<1x16x32xf32, #tpu.memory_space<vmem>>, %arg6: memref<1x8x32x32xbf16, #tpu.memory_space<vmem>>, %arg7: memref<1x8x32xf32, #tpu.memory_space<vmem>>, %arg8: memref<1x32x64xbf16, #tpu.memory_space<vmem>>, %arg9: memref<1x1x64xf32, #tpu.memory_space<vmem>>, %arg10: memref<1x64x32xbf16, #tpu.memory_space<vmem>>, %arg11: memref<1x1x32xf32, #tpu.memory_space<vmem>>, %arg12: memref<1x3x32xf32, #tpu.memory_space<vmem>>, %arg13: memref<1x3x32xf32, #tpu.memory_space<vmem>>, %arg14: memref<1x32xf32, #tpu.memory_space<vmem>>, %arg15: memref<1x32xf32, #tpu.memory_space<vmem>>, %arg16: memref<1x8x32xf32, #tpu.memory_space<vmem>>, %arg17: memref<8x32xf32, #tpu.memory_space<vmem>>) attributes {dimension_semantics = [#tpu.dimension_semantics<parallel>, #tpu.dimension_semantics<arbitrary>], iteration_bounds = array<i64: 2, 2>, scalar_prefetch = 0 : i64, scratch_operands = 1 : i64, tpu.core_type = #tpu.core_type<tc>, window_params = [{transform_indices = @transform_0, window_bounds = array<i64: 1, 8, 32>}, {transform_indices = @transform_1, window_bounds = array<i64: 1, 8, 32>}, {transform_indices = @transform_2, window_bounds = array<i64: 1, 16, 32>}, {transform_indices = @transform_3, window_bounds = array<i64: 1, 16, 32>}, {transform_indices = @transform_4, window_bounds = array<i64: 1, 8, 32, 32>}, {transform_indices = @transform_5, window_bounds = array<i64: 1, 8, 32>}, {transform_indices = @transform_6, window_bounds = array<i64: 1, 32, 64>}, {transform_indices = @transform_7, window_bounds = array<i64: 1, 1, 64>}, {transform_indices = @transform_8, window_bounds = array<i64: 1, 64, 32>}, {transform_indices = @transform_9, window_bounds = array<i64: 1, 1, 32>}, {transform_indices = @transform_10, window_bounds = array<i64: 1, 3, 32>}, {transform_indices = @transform_11, window_bounds = array<i64: 1, 3, 32>}, {pipeline_mode = #tpu.pipeline_mode<synchronous>, transform_indices = @transform_12, window_bounds = array<i64: 1, 32>}, {pipeline_mode = #tpu.pipeline_mode<synchronous>, transform_indices = @transform_13, window_bounds = array<i64: 1, 32>}, {transform_indices = @transform_14, window_bounds = array<i64: 1, 8, 32>}]} {
    %c0_i32 = arith.constant 0 : i32
    %0 = arith.cmpi eq, %arg1, %c0_i32 : i32
    %1 = arith.extui %0 : i1 to i32
    %c0_i32_0 = arith.constant 0 : i32
    %2 = arith.cmpi ne, %1, %c0_i32_0 : i32
    scf.if %2 {
      %c0_125 = arith.constant 0 : index
      %c0_126 = arith.constant 0 : index
      %c0_127 = arith.constant 0 : index
      %354 = vector.load %arg2[%c0_125, %c0_126, %c0_127] : memref<1x8x32xf32, #tpu.memory_space<vmem>>, vector<1x8x32xf32>
      %355 = vector.shape_cast %354 : vector<1x8x32xf32> to vector<8x32xf32>
      %c0_128 = arith.constant 0 : index
      %c0_129 = arith.constant 0 : index
      %356 = vector.load %arg17[%c0_128, %c0_129] : memref<8x32xf32, #tpu.memory_space<vmem>>, vector<8x32xf32>
      tpu.vector_store %arg17[%c0_128, %c0_129], %355 {strides = array<i32>} : memref<8x32xf32, #tpu.memory_space<vmem>>, vector<8x32xf32>,
    } else {
    }
    %c0 = arith.constant 0 : index
    %c0_1 = arith.constant 0 : index
    %3 = vector.load %arg17[%c0, %c0_1] : memref<8x32xf32, #tpu.memory_space<vmem>>, vector<8x32xf32>
    %c0_2 = arith.constant 0 : index
    %c0_3 = arith.constant 0 : index
    %c0_4 = arith.constant 0 : index
    %4 = vector.load %arg3[%c0_2, %c0_3, %c0_4] : memref<1x8x32xf32, #tpu.memory_space<vmem>>, vector<1x8x32xf32>
    %5 = vector.shape_cast %4 : vector<1x8x32xf32> to vector<8x32xf32>
    %c0_5 = arith.constant 0 : index
    %c0_6 = arith.constant 0 : index
    %c0_7 = arith.constant 0 : index
    %6 = vector.load %arg4[%c0_5, %c0_6, %c0_7] : memref<1x16x32xf32, #tpu.memory_space<vmem>>, vector<1x16x32xf32>
    %7 = vector.shape_cast %6 : vector<1x16x32xf32> to vector<16x32xf32>
    %c0_8 = arith.constant 0 : index
    %c0_9 = arith.constant 0 : index
    %c0_10 = arith.constant 0 : index
    %8 = vector.load %arg5[%c0_8, %c0_9, %c0_10] : memref<1x16x32xf32, #tpu.memory_space<vmem>>, vector<1x16x32xf32>
    %9 = vector.shape_cast %8 : vector<1x16x32xf32> to vector<16x32xf32>
    %c0_11 = arith.constant 0 : index
    %c0_12 = arith.constant 0 : index
    %c0_13 = arith.constant 0 : index
    %10 = vector.load %arg7[%c0_11, %c0_12, %c0_13] : memref<1x8x32xf32, #tpu.memory_space<vmem>>, vector<1x8x32xf32>
    %11 = vector.shape_cast %10 : vector<1x8x32xf32> to vector<8x32xf32>
    %c0_14 = arith.constant 0 : index
    %c0_15 = arith.constant 0 : index
    %c0_16 = arith.constant 0 : index
    %12 = vector.load %arg12[%c0_14, %c0_15, %c0_16] : memref<1x3x32xf32, #tpu.memory_space<vmem>>, vector<1x3x32xf32>
    %13 = vector.shape_cast %12 : vector<1x3x32xf32> to vector<3x32xf32>
    %c0_17 = arith.constant 0 : index
    %c0_18 = arith.constant 0 : index
    %c0_19 = arith.constant 0 : index
    %14 = vector.load %arg13[%c0_17, %c0_18, %c0_19] : memref<1x3x32xf32, #tpu.memory_space<vmem>>, vector<1x3x32xf32>
    %15 = vector.shape_cast %14 : vector<1x3x32xf32> to vector<3x32xf32>
    %16 = arith.addf %3, %5 : vector<8x32xf32>
    %17 = arith.truncf %16 : vector<8x32xf32> to vector<8x32xbf16>
    %c0_20 = arith.constant 0 : index
    %c0_21 = arith.constant 0 : index
    %c0_22 = arith.constant 0 : index
    %c0_23 = arith.constant 0 : index
    %18 = vector.load %arg6[%c0_20, %c0_21, %c0_22, %c0_23] : memref<1x8x32x32xbf16, #tpu.memory_space<vmem>>, vector<1x1x32x32xbf16>
    %19 = vector.shape_cast %18 : vector<1x1x32x32xbf16> to vector<32x32xbf16>
    %cst = arith.constant dense<0.000000e+00> : vector<8x32xf32>
    %20 = tpu.matmul %17, %19, %cst {dimension_numbers = #tpu.dot_dimension_numbers<[1], [0], [0], [1], [0, 0, 1, 1], [], []>} : vector<8x32xbf16>, vector<32x32xbf16>, vector<8x32xf32> -> vector<8x32xf32>
    %21 = vector.extract_strided_slice %11 {offsets = [0, 0], sizes = [1, 32], strides = [1, 1]} : vector<8x32xf32> to vector<1x32xf32>
    %22 = vector.broadcast %21 : vector<1x32xf32> to vector<8x32xf32>
    %23 = arith.addf %20, %22 : vector<8x32xf32>
    %24 = arith.truncf %16 : vector<8x32xf32> to vector<8x32xbf16>
    %c0_24 = arith.constant 0 : index
    %c1 = arith.constant 1 : index
    %c0_25 = arith.constant 0 : index
    %c0_26 = arith.constant 0 : index
    %25 = vector.load %arg6[%c0_24, %c1, %c0_25, %c0_26] : memref<1x8x32x32xbf16, #tpu.memory_space<vmem>>, vector<1x1x32x32xbf16>
    %26 = vector.shape_cast %25 : vector<1x1x32x32xbf16> to vector<32x32xbf16>
    %cst_27 = arith.constant dense<0.000000e+00> : vector<8x32xf32>
    %27 = tpu.matmul %24, %26, %cst_27 {dimension_numbers = #tpu.dot_dimension_numbers<[1], [0], [0], [1], [0, 0, 1, 1], [], []>} : vector<8x32xbf16>, vector<32x32xbf16>, vector<8x32xf32> -> vector<8x32xf32>
    %28 = vector.extract_strided_slice %11 {offsets = [1, 0], sizes = [1, 32], strides = [1, 1]} : vector<8x32xf32> to vector<1x32xf32>
    %29 = vector.broadcast %28 : vector<1x32xf32> to vector<8x32xf32>
    %30 = arith.addf %27, %29 : vector<8x32xf32>
    %31 = arith.truncf %3 : vector<8x32xf32> to vector<8x32xbf16>
    %c0_28 = arith.constant 0 : index
    %c2 = arith.constant 2 : index
    %c0_29 = arith.constant 0 : index
    %c0_30 = arith.constant 0 : index
    %32 = vector.load %arg6[%c0_28, %c2, %c0_29, %c0_30] : memref<1x8x32x32xbf16, #tpu.memory_space<vmem>>, vector<1x1x32x32xbf16>
    %33 = vector.shape_cast %32 : vector<1x1x32x32xbf16> to vector<32x32xbf16>
    %cst_31 = arith.constant dense<0.000000e+00> : vector<8x32xf32>
    %34 = tpu.matmul %31, %33, %cst_31 {dimension_numbers = #tpu.dot_dimension_numbers<[1], [0], [0], [1], [0, 0, 1, 1], [], []>} : vector<8x32xbf16>, vector<32x32xbf16>, vector<8x32xf32> -> vector<8x32xf32>
    %35 = vector.extract_strided_slice %11 {offsets = [2, 0], sizes = [1, 32], strides = [1, 1]} : vector<8x32xf32> to vector<1x32xf32>
    %36 = vector.broadcast %35 : vector<1x32xf32> to vector<8x32xf32>
    %37 = arith.addf %34, %36 : vector<8x32xf32>
    %38 = vector.extract_strided_slice %23 {offsets = [0, 0], sizes = [8, 8], strides = [1, 1]} : vector<8x32xf32> to vector<8x8xf32>
    %cst_32 = arith.constant 0.353553385 : f32
    %39 = vector.broadcast %cst_32 : f32 to vector<8x8xf32>
    %40 = arith.mulf %38, %39 : vector<8x8xf32>
    %41 = arith.truncf %40 : vector<8x8xf32> to vector<8x8xbf16>
    %42 = vector.extract_strided_slice %30 {offsets = [0, 0], sizes = [8, 8], strides = [1, 1]} : vector<8x32xf32> to vector<8x8xf32>
    %43 = arith.truncf %42 : vector<8x8xf32> to vector<8x8xbf16>
    %cst_33 = arith.constant dense<0.000000e+00> : vector<8x8xf32>
    %44 = tpu.matmul %41, %43, %cst_33 {dimension_numbers = #tpu.dot_dimension_numbers<[1], [1], [0], [0], [0, 0, 1, 0], [], []>} : vector<8x8xbf16>, vector<8x8xbf16>, vector<8x8xf32> -> vector<8x8xf32>
    %cst_34 = arith.constant dense<0xFF800000> : vector<8xf32>
    %45 = vector.multi_reduction <maximumf>, %44, %cst_34 [1] : vector<8x8xf32> to vector<8xf32>
    %46 = vector.shape_cast %45 : vector<8xf32> to vector<8x1xf32>
    %47 = vector.broadcast %46 : vector<8x1xf32> to vector<8x8xf32>
    %48 = arith.subf %44, %47 : vector<8x8xf32>
    %49 = math.exp %48 : vector<8x8xf32>
    %cst_35 = arith.constant dense<0.000000e+00> : vector<8xf32>
    %50 = vector.multi_reduction <add>, %49, %cst_35 [1] : vector<8x8xf32> to vector<8xf32>
    %51 = vector.shape_cast %50 : vector<8xf32> to vector<8x1xf32>
    %52 = arith.truncf %49 : vector<8x8xf32> to vector<8x8xbf16>
    %53 = vector.extract_strided_slice %37 {offsets = [0, 0], sizes = [8, 8], strides = [1, 1]} : vector<8x32xf32> to vector<8x8xf32>
    %54 = arith.truncf %53 : vector<8x8xf32> to vector<8x8xbf16>
    %cst_36 = arith.constant dense<0.000000e+00> : vector<8x8xf32>
    %55 = tpu.matmul %52, %54, %cst_36 {dimension_numbers = #tpu.dot_dimension_numbers<[1], [0], [0], [1], [0, 0, 1, 1], [], []>} : vector<8x8xbf16>, vector<8x8xbf16>, vector<8x8xf32> -> vector<8x8xf32>
    %56 = tpu.reciprocal %51 {approx = true} : vector<8x1xf32> -> vector<8x1xf32>
    %57 = vector.broadcast %56 : vector<8x1xf32> to vector<8x8xf32>
    %58 = arith.mulf %55, %57 : vector<8x8xf32>
    %59 = arith.truncf %58 : vector<8x8xf32> to vector<8x8xbf16>
    %60 = vector.extract_strided_slice %23 {offsets = [0, 8], sizes = [8, 8], strides = [1, 1]} : vector<8x32xf32> to vector<8x8xf32>
    %cst_37 = arith.constant 0.353553385 : f32
    %61 = vector.broadcast %cst_37 : f32 to vector<8x8xf32>
    %62 = arith.mulf %60, %61 : vector<8x8xf32>
    %63 = arith.truncf %62 : vector<8x8xf32> to vector<8x8xbf16>
    %64 = vector.extract_strided_slice %30 {offsets = [0, 8], sizes = [8, 8], strides = [1, 1]} : vector<8x32xf32> to vector<8x8xf32>
    %65 = arith.truncf %64 : vector<8x8xf32> to vector<8x8xbf16>
    %cst_38 = arith.constant dense<0.000000e+00> : vector<8x8xf32>
    %66 = tpu.matmul %63, %65, %cst_38 {dimension_numbers = #tpu.dot_dimension_numbers<[1], [1], [0], [0], [0, 0, 1, 0], [], []>} : vector<8x8xbf16>, vector<8x8xbf16>, vector<8x8xf32> -> vector<8x8xf32>
    %cst_39 = arith.constant dense<0xFF800000> : vector<8xf32>
    %67 = vector.multi_reduction <maximumf>, %66, %cst_39 [1] : vector<8x8xf32> to vector<8xf32>
    %68 = vector.shape_cast %67 : vector<8xf32> to vector<8x1xf32>
    %69 = vector.broadcast %68 : vector<8x1xf32> to vector<8x8xf32>
    %70 = arith.subf %66, %69 : vector<8x8xf32>
    %71 = math.exp %70 : vector<8x8xf32>
    %cst_40 = arith.constant dense<0.000000e+00> : vector<8xf32>
    %72 = vector.multi_reduction <add>, %71, %cst_40 [1] : vector<8x8xf32> to vector<8xf32>
    %73 = vector.shape_cast %72 : vector<8xf32> to vector<8x1xf32>
    %74 = arith.truncf %71 : vector<8x8xf32> to vector<8x8xbf16>
    %75 = vector.extract_strided_slice %37 {offsets = [0, 8], sizes = [8, 8], strides = [1, 1]} : vector<8x32xf32> to vector<8x8xf32>
    %76 = arith.truncf %75 : vector<8x8xf32> to vector<8x8xbf16>
    %cst_41 = arith.constant dense<0.000000e+00> : vector<8x8xf32>
    %77 = tpu.matmul %74, %76, %cst_41 {dimension_numbers = #tpu.dot_dimension_numbers<[1], [0], [0], [1], [0, 0, 1, 1], [], []>} : vector<8x8xbf16>, vector<8x8xbf16>, vector<8x8xf32> -> vector<8x8xf32>
    %78 = tpu.reciprocal %73 {approx = true} : vector<8x1xf32> -> vector<8x1xf32>
    %79 = vector.broadcast %78 : vector<8x1xf32> to vector<8x8xf32>
    %80 = arith.mulf %77, %79 : vector<8x8xf32>
    %81 = arith.truncf %80 : vector<8x8xf32> to vector<8x8xbf16>
    %82 = vector.extract_strided_slice %23 {offsets = [0, 16], sizes = [8, 8], strides = [1, 1]} : vector<8x32xf32> to vector<8x8xf32>
    %cst_42 = arith.constant 0.353553385 : f32
    %83 = vector.broadcast %cst_42 : f32 to vector<8x8xf32>
    %84 = arith.mulf %82, %83 : vector<8x8xf32>
    %85 = arith.truncf %84 : vector<8x8xf32> to vector<8x8xbf16>
    %86 = vector.extract_strided_slice %30 {offsets = [0, 16], sizes = [8, 8], strides = [1, 1]} : vector<8x32xf32> to vector<8x8xf32>
    %87 = arith.truncf %86 : vector<8x8xf32> to vector<8x8xbf16>
    %cst_43 = arith.constant dense<0.000000e+00> : vector<8x8xf32>
    %88 = tpu.matmul %85, %87, %cst_43 {dimension_numbers = #tpu.dot_dimension_numbers<[1], [1], [0], [0], [0, 0, 1, 0], [], []>} : vector<8x8xbf16>, vector<8x8xbf16>, vector<8x8xf32> -> vector<8x8xf32>
    %cst_44 = arith.constant dense<0xFF800000> : vector<8xf32>
    %89 = vector.multi_reduction <maximumf>, %88, %cst_44 [1] : vector<8x8xf32> to vector<8xf32>
    %90 = vector.shape_cast %89 : vector<8xf32> to vector<8x1xf32>
    %91 = vector.broadcast %90 : vector<8x1xf32> to vector<8x8xf32>
    %92 = arith.subf %88, %91 : vector<8x8xf32>
    %93 = math.exp %92 : vector<8x8xf32>
    %cst_45 = arith.constant dense<0.000000e+00> : vector<8xf32>
    %94 = vector.multi_reduction <add>, %93, %cst_45 [1] : vector<8x8xf32> to vector<8xf32>
    %95 = vector.shape_cast %94 : vector<8xf32> to vector<8x1xf32>
    %96 = arith.truncf %93 : vector<8x8xf32> to vector<8x8xbf16>
    %97 = vector.extract_strided_slice %37 {offsets = [0, 16], sizes = [8, 8], strides = [1, 1]} : vector<8x32xf32> to vector<8x8xf32>
    %98 = arith.truncf %97 : vector<8x8xf32> to vector<8x8xbf16>
    %cst_46 = arith.constant dense<0.000000e+00> : vector<8x8xf32>
    %99 = tpu.matmul %96, %98, %cst_46 {dimension_numbers = #tpu.dot_dimension_numbers<[1], [0], [0], [1], [0, 0, 1, 1], [], []>} : vector<8x8xbf16>, vector<8x8xbf16>, vector<8x8xf32> -> vector<8x8xf32>
    %100 = tpu.reciprocal %95 {approx = true} : vector<8x1xf32> -> vector<8x1xf32>
    %101 = vector.broadcast %100 : vector<8x1xf32> to vector<8x8xf32>
    %102 = arith.mulf %99, %101 : vector<8x8xf32>
    %103 = arith.truncf %102 : vector<8x8xf32> to vector<8x8xbf16>
    %104 = vector.extract_strided_slice %23 {offsets = [0, 24], sizes = [8, 8], strides = [1, 1]} : vector<8x32xf32> to vector<8x8xf32>
    %cst_47 = arith.constant 0.353553385 : f32
    %105 = vector.broadcast %cst_47 : f32 to vector<8x8xf32>
    %106 = arith.mulf %104, %105 : vector<8x8xf32>
    %107 = arith.truncf %106 : vector<8x8xf32> to vector<8x8xbf16>
    %108 = vector.extract_strided_slice %30 {offsets = [0, 24], sizes = [8, 8], strides = [1, 1]} : vector<8x32xf32> to vector<8x8xf32>
    %109 = arith.truncf %108 : vector<8x8xf32> to vector<8x8xbf16>
    %cst_48 = arith.constant dense<0.000000e+00> : vector<8x8xf32>
    %110 = tpu.matmul %107, %109, %cst_48 {dimension_numbers = #tpu.dot_dimension_numbers<[1], [1], [0], [0], [0, 0, 1, 0], [], []>} : vector<8x8xbf16>, vector<8x8xbf16>, vector<8x8xf32> -> vector<8x8xf32>
    %cst_49 = arith.constant dense<0xFF800000> : vector<8xf32>
    %111 = vector.multi_reduction <maximumf>, %110, %cst_49 [1] : vector<8x8xf32> to vector<8xf32>
    %112 = vector.shape_cast %111 : vector<8xf32> to vector<8x1xf32>
    %113 = vector.broadcast %112 : vector<8x1xf32> to vector<8x8xf32>
    %114 = arith.subf %110, %113 : vector<8x8xf32>
    %115 = math.exp %114 : vector<8x8xf32>
    %cst_50 = arith.constant dense<0.000000e+00> : vector<8xf32>
    %116 = vector.multi_reduction <add>, %115, %cst_50 [1] : vector<8x8xf32> to vector<8xf32>
    %117 = vector.shape_cast %116 : vector<8xf32> to vector<8x1xf32>
    %118 = arith.truncf %115 : vector<8x8xf32> to vector<8x8xbf16>
    %119 = vector.extract_strided_slice %37 {offsets = [0, 24], sizes = [8, 8], strides = [1, 1]} : vector<8x32xf32> to vector<8x8xf32>
    %120 = arith.truncf %119 : vector<8x8xf32> to vector<8x8xbf16>
    %cst_51 = arith.constant dense<0.000000e+00> : vector<8x8xf32>
    %121 = tpu.matmul %118, %120, %cst_51 {dimension_numbers = #tpu.dot_dimension_numbers<[1], [0], [0], [1], [0, 0, 1, 1], [], []>} : vector<8x8xbf16>, vector<8x8xbf16>, vector<8x8xf32> -> vector<8x8xf32>
    %122 = tpu.reciprocal %117 {approx = true} : vector<8x1xf32> -> vector<8x1xf32>
    %123 = vector.broadcast %122 : vector<8x1xf32> to vector<8x8xf32>
    %124 = arith.mulf %121, %123 : vector<8x8xf32>
    %125 = arith.truncf %124 : vector<8x8xf32> to vector<8x8xbf16>
    %126 = tpu.concatenate %59, %81, %103, %125 in 1 : vector<8x8xbf16>, vector<8x8xbf16>, vector<8x8xbf16>, vector<8x8xbf16> -> vector<8x32xbf16>
    %c0_52 = arith.constant 0 : index
    %c3 = arith.constant 3 : index
    %c0_53 = arith.constant 0 : index
    %c0_54 = arith.constant 0 : index
    %127 = vector.load %arg6[%c0_52, %c3, %c0_53, %c0_54] : memref<1x8x32x32xbf16, #tpu.memory_space<vmem>>, vector<1x1x32x32xbf16>
    %128 = vector.shape_cast %127 : vector<1x1x32x32xbf16> to vector<32x32xbf16>
    %cst_55 = arith.constant dense<0.000000e+00> : vector<8x32xf32>
    %129 = tpu.matmul %126, %128, %cst_55 {dimension_numbers = #tpu.dot_dimension_numbers<[1], [0], [0], [1], [0, 0, 1, 1], [], []>} : vector<8x32xbf16>, vector<32x32xbf16>, vector<8x32xf32> -> vector<8x32xf32>
    %130 = vector.extract_strided_slice %11 {offsets = [3, 0], sizes = [1, 32], strides = [1, 1]} : vector<8x32xf32> to vector<1x32xf32>
    %131 = vector.broadcast %130 : vector<1x32xf32> to vector<8x32xf32>
    %132 = arith.addf %129, %131 : vector<8x32xf32>
    %133 = arith.addf %3, %132 : vector<8x32xf32>
    %134 = vector.extract_strided_slice %13 {offsets = [0, 0], sizes = [1, 32], strides = [1, 1]} : vector<3x32xf32> to vector<1x32xf32>
    %135 = vector.extract_strided_slice %15 {offsets = [0, 0], sizes = [1, 32], strides = [1, 1]} : vector<3x32xf32> to vector<1x32xf32>
    %cst_56 = arith.constant dense<0.000000e+00> : vector<8xf32>
    %136 = vector.multi_reduction <add>, %133, %cst_56 [1] : vector<8x32xf32> to vector<8xf32>
    %137 = vector.shape_cast %136 : vector<8xf32> to vector<8x1xf32>
    %cst_57 = arith.constant 3.200000e+01 : f32
    %138 = vector.broadcast %cst_57 : f32 to vector<8x1xf32>
    %139 = arith.divf %137, %138 : vector<8x1xf32>
    %140 = vector.broadcast %139 : vector<8x1xf32> to vector<8x32xf32>
    %141 = arith.subf %133, %140 : vector<8x32xf32>
    %142 = vector.broadcast %139 : vector<8x1xf32> to vector<8x32xf32>
    %143 = arith.subf %133, %142 : vector<8x32xf32>
    %144 = arith.mulf %141, %143 : vector<8x32xf32>
    %cst_58 = arith.constant dense<0.000000e+00> : vector<8xf32>
    %145 = vector.multi_reduction <add>, %144, %cst_58 [1] : vector<8x32xf32> to vector<8xf32>
    %146 = vector.shape_cast %145 : vector<8xf32> to vector<8x1xf32>
    %cst_59 = arith.constant 3.200000e+01 : f32
    %147 = vector.broadcast %cst_59 : f32 to vector<8x1xf32>
    %148 = arith.divf %146, %147 : vector<8x1xf32>
    %149 = vector.broadcast %139 : vector<8x1xf32> to vector<8x32xf32>
    %150 = arith.subf %133, %149 : vector<8x32xf32>
    %cst_60 = arith.constant 9.99999974E-6 : f32
    %151 = vector.broadcast %cst_60 : f32 to vector<8x1xf32>
    %152 = arith.addf %148, %151 : vector<8x1xf32>
    %153 = math.rsqrt %152 : vector<8x1xf32>
    %154 = vector.broadcast %153 : vector<8x1xf32> to vector<8x32xf32>
    %155 = arith.mulf %150, %154 : vector<8x32xf32>
    %156 = vector.broadcast %134 : vector<1x32xf32> to vector<8x32xf32>
    %157 = arith.mulf %155, %156 : vector<8x32xf32>
    %158 = vector.broadcast %135 : vector<1x32xf32> to vector<8x32xf32>
    %159 = arith.addf %157, %158 : vector<8x32xf32>
    %160 = arith.addf %159, %5 : vector<8x32xf32>
    %161 = arith.addf %7, %9 : vector<16x32xf32>
    %162 = arith.truncf %160 : vector<8x32xf32> to vector<8x32xbf16>
    %c0_61 = arith.constant 0 : index
    %c4 = arith.constant 4 : index
    %c0_62 = arith.constant 0 : index
    %c0_63 = arith.constant 0 : index
    %163 = vector.load %arg6[%c0_61, %c4, %c0_62, %c0_63] : memref<1x8x32x32xbf16, #tpu.memory_space<vmem>>, vector<1x1x32x32xbf16>
    %164 = vector.shape_cast %163 : vector<1x1x32x32xbf16> to vector<32x32xbf16>
    %cst_64 = arith.constant dense<0.000000e+00> : vector<8x32xf32>
    %165 = tpu.matmul %162, %164, %cst_64 {dimension_numbers = #tpu.dot_dimension_numbers<[1], [0], [0], [1], [0, 0, 1, 1], [], []>} : vector<8x32xbf16>, vector<32x32xbf16>, vector<8x32xf32> -> vector<8x32xf32>
    %166 = vector.extract_strided_slice %11 {offsets = [4, 0], sizes = [1, 32], strides = [1, 1]} : vector<8x32xf32> to vector<1x32xf32>
    %167 = vector.broadcast %166 : vector<1x32xf32> to vector<8x32xf32>
    %168 = arith.addf %165, %167 : vector<8x32xf32>
    %169 = arith.truncf %161 : vector<16x32xf32> to vector<16x32xbf16>
    %c0_65 = arith.constant 0 : index
    %c5 = arith.constant 5 : index
    %c0_66 = arith.constant 0 : index
    %c0_67 = arith.constant 0 : index
    %170 = vector.load %arg6[%c0_65, %c5, %c0_66, %c0_67] : memref<1x8x32x32xbf16, #tpu.memory_space<vmem>>, vector<1x1x32x32xbf16>
    %171 = vector.shape_cast %170 : vector<1x1x32x32xbf16> to vector<32x32xbf16>
    %cst_68 = arith.constant dense<0.000000e+00> : vector<16x32xf32>
    %172 = tpu.matmul %169, %171, %cst_68 {dimension_numbers = #tpu.dot_dimension_numbers<[1], [0], [0], [1], [0, 0, 1, 1], [], []>} : vector<16x32xbf16>, vector<32x32xbf16>, vector<16x32xf32> -> vector<16x32xf32>
    %173 = vector.extract_strided_slice %11 {offsets = [5, 0], sizes = [1, 32], strides = [1, 1]} : vector<8x32xf32> to vector<1x32xf32>
    %174 = vector.broadcast %173 : vector<1x32xf32> to vector<16x32xf32>
    %175 = arith.addf %172, %174 : vector<16x32xf32>
    %176 = arith.truncf %7 : vector<16x32xf32> to vector<16x32xbf16>
    %c0_69 = arith.constant 0 : index
    %c6 = arith.constant 6 : index
    %c0_70 = arith.constant 0 : index
    %c0_71 = arith.constant 0 : index
    %177 = vector.load %arg6[%c0_69, %c6, %c0_70, %c0_71] : memref<1x8x32x32xbf16, #tpu.memory_space<vmem>>, vector<1x1x32x32xbf16>
    %178 = vector.shape_cast %177 : vector<1x1x32x32xbf16> to vector<32x32xbf16>
    %cst_72 = arith.constant dense<0.000000e+00> : vector<16x32xf32>
    %179 = tpu.matmul %176, %178, %cst_72 {dimension_numbers = #tpu.dot_dimension_numbers<[1], [0], [0], [1], [0, 0, 1, 1], [], []>} : vector<16x32xbf16>, vector<32x32xbf16>, vector<16x32xf32> -> vector<16x32xf32>
    %180 = vector.extract_strided_slice %11 {offsets = [6, 0], sizes = [1, 32], strides = [1, 1]} : vector<8x32xf32> to vector<1x32xf32>
    %181 = vector.broadcast %180 : vector<1x32xf32> to vector<16x32xf32>
    %182 = arith.addf %179, %181 : vector<16x32xf32>
    %183 = vector.extract_strided_slice %168 {offsets = [0, 0], sizes = [8, 8], strides = [1, 1]} : vector<8x32xf32> to vector<8x8xf32>
    %cst_73 = arith.constant 0.353553385 : f32
    %184 = vector.broadcast %cst_73 : f32 to vector<8x8xf32>
    %185 = arith.mulf %183, %184 : vector<8x8xf32>
    %186 = arith.truncf %185 : vector<8x8xf32> to vector<8x8xbf16>
    %187 = vector.extract_strided_slice %175 {offsets = [0, 0], sizes = [16, 8], strides = [1, 1]} : vector<16x32xf32> to vector<16x8xf32>
    %188 = arith.truncf %187 : vector<16x8xf32> to vector<16x8xbf16>
    %cst_74 = arith.constant dense<0.000000e+00> : vector<8x16xf32>
    %189 = tpu.matmul %186, %188, %cst_74 {dimension_numbers = #tpu.dot_dimension_numbers<[1], [1], [0], [0], [0, 0, 1, 0], [], []>} : vector<8x8xbf16>, vector<16x8xbf16>, vector<8x16xf32> -> vector<8x16xf32>
    %cst_75 = arith.constant dense<0xFF800000> : vector<8xf32>
    %190 = vector.multi_reduction <maximumf>, %189, %cst_75 [1] : vector<8x16xf32> to vector<8xf32>
    %191 = vector.shape_cast %190 : vector<8xf32> to vector<8x1xf32>
    %192 = vector.broadcast %191 : vector<8x1xf32> to vector<8x16xf32>
    %193 = arith.subf %189, %192 : vector<8x16xf32>
    %194 = math.exp %193 : vector<8x16xf32>
    %cst_76 = arith.constant dense<0.000000e+00> : vector<8xf32>
    %195 = vector.multi_reduction <add>, %194, %cst_76 [1] : vector<8x16xf32> to vector<8xf32>
    %196 = vector.shape_cast %195 : vector<8xf32> to vector<8x1xf32>
    %197 = arith.truncf %194 : vector<8x16xf32> to vector<8x16xbf16>
    %198 = vector.extract_strided_slice %182 {offsets = [0, 0], sizes = [16, 8], strides = [1, 1]} : vector<16x32xf32> to vector<16x8xf32>
    %199 = arith.truncf %198 : vector<16x8xf32> to vector<16x8xbf16>
    %cst_77 = arith.constant dense<0.000000e+00> : vector<8x8xf32>
    %200 = tpu.matmul %197, %199, %cst_77 {dimension_numbers = #tpu.dot_dimension_numbers<[1], [0], [0], [1], [0, 0, 1, 1], [], []>} : vector<8x16xbf16>, vector<16x8xbf16>, vector<8x8xf32> -> vector<8x8xf32>
    %201 = tpu.reciprocal %196 {approx = true} : vector<8x1xf32> -> vector<8x1xf32>
    %202 = vector.broadcast %201 : vector<8x1xf32> to vector<8x8xf32>
    %203 = arith.mulf %200, %202 : vector<8x8xf32>
    %204 = arith.truncf %203 : vector<8x8xf32> to vector<8x8xbf16>
    %205 = vector.extract_strided_slice %168 {offsets = [0, 8], sizes = [8, 8], strides = [1, 1]} : vector<8x32xf32> to vector<8x8xf32>
    %cst_78 = arith.constant 0.353553385 : f32
    %206 = vector.broadcast %cst_78 : f32 to vector<8x8xf32>
    %207 = arith.mulf %205, %206 : vector<8x8xf32>
    %208 = arith.truncf %207 : vector<8x8xf32> to vector<8x8xbf16>
    %209 = vector.extract_strided_slice %175 {offsets = [0, 8], sizes = [16, 8], strides = [1, 1]} : vector<16x32xf32> to vector<16x8xf32>
    %210 = arith.truncf %209 : vector<16x8xf32> to vector<16x8xbf16>
    %cst_79 = arith.constant dense<0.000000e+00> : vector<8x16xf32>
    %211 = tpu.matmul %208, %210, %cst_79 {dimension_numbers = #tpu.dot_dimension_numbers<[1], [1], [0], [0], [0, 0, 1, 0], [], []>} : vector<8x8xbf16>, vector<16x8xbf16>, vector<8x16xf32> -> vector<8x16xf32>
    %cst_80 = arith.constant dense<0xFF800000> : vector<8xf32>
    %212 = vector.multi_reduction <maximumf>, %211, %cst_80 [1] : vector<8x16xf32> to vector<8xf32>
    %213 = vector.shape_cast %212 : vector<8xf32> to vector<8x1xf32>
    %214 = vector.broadcast %213 : vector<8x1xf32> to vector<8x16xf32>
    %215 = arith.subf %211, %214 : vector<8x16xf32>
    %216 = math.exp %215 : vector<8x16xf32>
    %cst_81 = arith.constant dense<0.000000e+00> : vector<8xf32>
    %217 = vector.multi_reduction <add>, %216, %cst_81 [1] : vector<8x16xf32> to vector<8xf32>
    %218 = vector.shape_cast %217 : vector<8xf32> to vector<8x1xf32>
    %219 = arith.truncf %216 : vector<8x16xf32> to vector<8x16xbf16>
    %220 = vector.extract_strided_slice %182 {offsets = [0, 8], sizes = [16, 8], strides = [1, 1]} : vector<16x32xf32> to vector<16x8xf32>
    %221 = arith.truncf %220 : vector<16x8xf32> to vector<16x8xbf16>
    %cst_82 = arith.constant dense<0.000000e+00> : vector<8x8xf32>
    %222 = tpu.matmul %219, %221, %cst_82 {dimension_numbers = #tpu.dot_dimension_numbers<[1], [0], [0], [1], [0, 0, 1, 1], [], []>} : vector<8x16xbf16>, vector<16x8xbf16>, vector<8x8xf32> -> vector<8x8xf32>
    %223 = tpu.reciprocal %218 {approx = true} : vector<8x1xf32> -> vector<8x1xf32>
    %224 = vector.broadcast %223 : vector<8x1xf32> to vector<8x8xf32>
    %225 = arith.mulf %222, %224 : vector<8x8xf32>
    %226 = arith.truncf %225 : vector<8x8xf32> to vector<8x8xbf16>
    %227 = vector.extract_strided_slice %168 {offsets = [0, 16], sizes = [8, 8], strides = [1, 1]} : vector<8x32xf32> to vector<8x8xf32>
    %cst_83 = arith.constant 0.353553385 : f32
    %228 = vector.broadcast %cst_83 : f32 to vector<8x8xf32>
    %229 = arith.mulf %227, %228 : vector<8x8xf32>
    %230 = arith.truncf %229 : vector<8x8xf32> to vector<8x8xbf16>
    %231 = vector.extract_strided_slice %175 {offsets = [0, 16], sizes = [16, 8], strides = [1, 1]} : vector<16x32xf32> to vector<16x8xf32>
    %232 = arith.truncf %231 : vector<16x8xf32> to vector<16x8xbf16>
    %cst_84 = arith.constant dense<0.000000e+00> : vector<8x16xf32>
    %233 = tpu.matmul %230, %232, %cst_84 {dimension_numbers = #tpu.dot_dimension_numbers<[1], [1], [0], [0], [0, 0, 1, 0], [], []>} : vector<8x8xbf16>, vector<16x8xbf16>, vector<8x16xf32> -> vector<8x16xf32>
    %cst_85 = arith.constant dense<0xFF800000> : vector<8xf32>
    %234 = vector.multi_reduction <maximumf>, %233, %cst_85 [1] : vector<8x16xf32> to vector<8xf32>
    %235 = vector.shape_cast %234 : vector<8xf32> to vector<8x1xf32>
    %236 = vector.broadcast %235 : vector<8x1xf32> to vector<8x16xf32>
    %237 = arith.subf %233, %236 : vector<8x16xf32>
    %238 = math.exp %237 : vector<8x16xf32>
    %cst_86 = arith.constant dense<0.000000e+00> : vector<8xf32>
    %239 = vector.multi_reduction <add>, %238, %cst_86 [1] : vector<8x16xf32> to vector<8xf32>
    %240 = vector.shape_cast %239 : vector<8xf32> to vector<8x1xf32>
    %241 = arith.truncf %238 : vector<8x16xf32> to vector<8x16xbf16>
    %242 = vector.extract_strided_slice %182 {offsets = [0, 16], sizes = [16, 8], strides = [1, 1]} : vector<16x32xf32> to vector<16x8xf32>
    %243 = arith.truncf %242 : vector<16x8xf32> to vector<16x8xbf16>
    %cst_87 = arith.constant dense<0.000000e+00> : vector<8x8xf32>
    %244 = tpu.matmul %241, %243, %cst_87 {dimension_numbers = #tpu.dot_dimension_numbers<[1], [0], [0], [1], [0, 0, 1, 1], [], []>} : vector<8x16xbf16>, vector<16x8xbf16>, vector<8x8xf32> -> vector<8x8xf32>
    %245 = tpu.reciprocal %240 {approx = true} : vector<8x1xf32> -> vector<8x1xf32>
    %246 = vector.broadcast %245 : vector<8x1xf32> to vector<8x8xf32>
    %247 = arith.mulf %244, %246 : vector<8x8xf32>
    %248 = arith.truncf %247 : vector<8x8xf32> to vector<8x8xbf16>
    %249 = vector.extract_strided_slice %168 {offsets = [0, 24], sizes = [8, 8], strides = [1, 1]} : vector<8x32xf32> to vector<8x8xf32>
    %cst_88 = arith.constant 0.353553385 : f32
    %250 = vector.broadcast %cst_88 : f32 to vector<8x8xf32>
    %251 = arith.mulf %249, %250 : vector<8x8xf32>
    %252 = arith.truncf %251 : vector<8x8xf32> to vector<8x8xbf16>
    %253 = vector.extract_strided_slice %175 {offsets = [0, 24], sizes = [16, 8], strides = [1, 1]} : vector<16x32xf32> to vector<16x8xf32>
    %254 = arith.truncf %253 : vector<16x8xf32> to vector<16x8xbf16>
    %cst_89 = arith.constant dense<0.000000e+00> : vector<8x16xf32>
    %255 = tpu.matmul %252, %254, %cst_89 {dimension_numbers = #tpu.dot_dimension_numbers<[1], [1], [0], [0], [0, 0, 1, 0], [], []>} : vector<8x8xbf16>, vector<16x8xbf16>, vector<8x16xf32> -> vector<8x16xf32>
    %cst_90 = arith.constant dense<0xFF800000> : vector<8xf32>
    %256 = vector.multi_reduction <maximumf>, %255, %cst_90 [1] : vector<8x16xf32> to vector<8xf32>
    %257 = vector.shape_cast %256 : vector<8xf32> to vector<8x1xf32>
    %258 = vector.broadcast %257 : vector<8x1xf32> to vector<8x16xf32>
    %259 = arith.subf %255, %258 : vector<8x16xf32>
    %260 = math.exp %259 : vector<8x16xf32>
    %cst_91 = arith.constant dense<0.000000e+00> : vector<8xf32>
    %261 = vector.multi_reduction <add>, %260, %cst_91 [1] : vector<8x16xf32> to vector<8xf32>
    %262 = vector.shape_cast %261 : vector<8xf32> to vector<8x1xf32>
    %263 = arith.truncf %260 : vector<8x16xf32> to vector<8x16xbf16>
    %264 = vector.extract_strided_slice %182 {offsets = [0, 24], sizes = [16, 8], strides = [1, 1]} : vector<16x32xf32> to vector<16x8xf32>
    %265 = arith.truncf %264 : vector<16x8xf32> to vector<16x8xbf16>
    %cst_92 = arith.constant dense<0.000000e+00> : vector<8x8xf32>
    %266 = tpu.matmul %263, %265, %cst_92 {dimension_numbers = #tpu.dot_dimension_numbers<[1], [0], [0], [1], [0, 0, 1, 1], [], []>} : vector<8x16xbf16>, vector<16x8xbf16>, vector<8x8xf32> -> vector<8x8xf32>
    %267 = tpu.reciprocal %262 {approx = true} : vector<8x1xf32> -> vector<8x1xf32>
    %268 = vector.broadcast %267 : vector<8x1xf32> to vector<8x8xf32>
    %269 = arith.mulf %266, %268 : vector<8x8xf32>
    %270 = arith.truncf %269 : vector<8x8xf32> to vector<8x8xbf16>
    %271 = tpu.concatenate %204, %226, %248, %270 in 1 : vector<8x8xbf16>, vector<8x8xbf16>, vector<8x8xbf16>, vector<8x8xbf16> -> vector<8x32xbf16>
    %c0_93 = arith.constant 0 : index
    %c7 = arith.constant 7 : index
    %c0_94 = arith.constant 0 : index
    %c0_95 = arith.constant 0 : index
    %272 = vector.load %arg6[%c0_93, %c7, %c0_94, %c0_95] : memref<1x8x32x32xbf16, #tpu.memory_space<vmem>>, vector<1x1x32x32xbf16>
    %273 = vector.shape_cast %272 : vector<1x1x32x32xbf16> to vector<32x32xbf16>
    %cst_96 = arith.constant dense<0.000000e+00> : vector<8x32xf32>
    %274 = tpu.matmul %271, %273, %cst_96 {dimension_numbers = #tpu.dot_dimension_numbers<[1], [0], [0], [1], [0, 0, 1, 1], [], []>} : vector<8x32xbf16>, vector<32x32xbf16>, vector<8x32xf32> -> vector<8x32xf32>
    %275 = vector.extract_strided_slice %11 {offsets = [7, 0], sizes = [1, 32], strides = [1, 1]} : vector<8x32xf32> to vector<1x32xf32>
    %276 = vector.broadcast %275 : vector<1x32xf32> to vector<8x32xf32>
    %277 = arith.addf %274, %276 : vector<8x32xf32>
    %278 = arith.addf %159, %277 : vector<8x32xf32>
    %279 = vector.extract_strided_slice %13 {offsets = [1, 0], sizes = [1, 32], strides = [1, 1]} : vector<3x32xf32> to vector<1x32xf32>
    %280 = vector.extract_strided_slice %15 {offsets = [1, 0], sizes = [1, 32], strides = [1, 1]} : vector<3x32xf32> to vector<1x32xf32>
    %cst_97 = arith.constant dense<0.000000e+00> : vector<8xf32>
    %281 = vector.multi_reduction <add>, %278, %cst_97 [1] : vector<8x32xf32> to vector<8xf32>
    %282 = vector.shape_cast %281 : vector<8xf32> to vector<8x1xf32>
    %cst_98 = arith.constant 3.200000e+01 : f32
    %283 = vector.broadcast %cst_98 : f32 to vector<8x1xf32>
    %284 = arith.divf %282, %283 : vector<8x1xf32>
    %285 = vector.broadcast %284 : vector<8x1xf32> to vector<8x32xf32>
    %286 = arith.subf %278, %285 : vector<8x32xf32>
    %287 = vector.broadcast %284 : vector<8x1xf32> to vector<8x32xf32>
    %288 = arith.subf %278, %287 : vector<8x32xf32>
    %289 = arith.mulf %286, %288 : vector<8x32xf32>
    %cst_99 = arith.constant dense<0.000000e+00> : vector<8xf32>
    %290 = vector.multi_reduction <add>, %289, %cst_99 [1] : vector<8x32xf32> to vector<8xf32>
    %291 = vector.shape_cast %290 : vector<8xf32> to vector<8x1xf32>
    %cst_100 = arith.constant 3.200000e+01 : f32
    %292 = vector.broadcast %cst_100 : f32 to vector<8x1xf32>
    %293 = arith.divf %291, %292 : vector<8x1xf32>
    %294 = vector.broadcast %284 : vector<8x1xf32> to vector<8x32xf32>
    %295 = arith.subf %278, %294 : vector<8x32xf32>
    %cst_101 = arith.constant 9.99999974E-6 : f32
    %296 = vector.broadcast %cst_101 : f32 to vector<8x1xf32>
    %297 = arith.addf %293, %296 : vector<8x1xf32>
    %298 = math.rsqrt %297 : vector<8x1xf32>
    %299 = vector.broadcast %298 : vector<8x1xf32> to vector<8x32xf32>
    %300 = arith.mulf %295, %299 : vector<8x32xf32>
    %301 = vector.broadcast %279 : vector<1x32xf32> to vector<8x32xf32>
    %302 = arith.mulf %300, %301 : vector<8x32xf32>
    %303 = vector.broadcast %280 : vector<1x32xf32> to vector<8x32xf32>
    %304 = arith.addf %302, %303 : vector<8x32xf32>
    %305 = arith.truncf %304 : vector<8x32xf32> to vector<8x32xbf16>
    %c0_102 = arith.constant 0 : index
    %c0_103 = arith.constant 0 : index
    %c0_104 = arith.constant 0 : index
    %306 = vector.load %arg8[%c0_102, %c0_103, %c0_104] : memref<1x32x64xbf16, #tpu.memory_space<vmem>>, vector<1x32x64xbf16>
    %307 = vector.shape_cast %306 : vector<1x32x64xbf16> to vector<32x64xbf16>
    %cst_105 = arith.constant dense<0.000000e+00> : vector<8x64xf32>
    %308 = tpu.matmul %305, %307, %cst_105 {dimension_numbers = #tpu.dot_dimension_numbers<[1], [0], [0], [1], [0, 0, 1, 1], [], []>} : vector<8x32xbf16>, vector<32x64xbf16>, vector<8x64xf32> -> vector<8x64xf32>
    %c0_106 = arith.constant 0 : index
    %c0_107 = arith.constant 0 : index
    %c0_108 = arith.constant 0 : index
    %309 = vector.load %arg9[%c0_106, %c0_107, %c0_108] : memref<1x1x64xf32, #tpu.memory_space<vmem>>, vector<1x1x64xf32>
    %310 = vector.shape_cast %309 : vector<1x1x64xf32> to vector<1x64xf32>
    %311 = vector.broadcast %310 : vector<1x64xf32> to vector<8x64xf32>
    %312 = arith.addf %308, %311 : vector<8x64xf32>
    %cst_109 = arith.constant 0.000000e+00 : f32
    %313 = vector.broadcast %cst_109 : f32 to vector<8x64xf32>
    %314 = arith.maximumf %312, %313 : vector<8x64xf32>
    %315 = arith.truncf %314 : vector<8x64xf32> to vector<8x64xbf16>
    %c0_110 = arith.constant 0 : index
    %c0_111 = arith.constant 0 : index
    %c0_112 = arith.constant 0 : index
    %316 = vector.load %arg10[%c0_110, %c0_111, %c0_112] : memref<1x64x32xbf16, #tpu.memory_space<vmem>>, vector<1x64x32xbf16>
    %317 = vector.shape_cast %316 : vector<1x64x32xbf16> to vector<64x32xbf16>
    %cst_113 = arith.constant dense<0.000000e+00> : vector<8x32xf32>
    %318 = tpu.matmul %315, %317, %cst_113 {dimension_numbers = #tpu.dot_dimension_numbers<[1], [0], [0], [1], [0, 0, 1, 1], [], []>} : vector<8x64xbf16>, vector<64x32xbf16>, vector<8x32xf32> -> vector<8x32xf32>
    %c0_114 = arith.constant 0 : index
    %c0_115 = arith.constant 0 : index
    %c0_116 = arith.constant 0 : index
    %319 = vector.load %arg11[%c0_114, %c0_115, %c0_116] : memref<1x1x32xf32, #tpu.memory_space<vmem>>, vector<1x1x32xf32>
    %320 = vector.shape_cast %319 : vector<1x1x32xf32> to vector<1x32xf32>
    %321 = vector.broadcast %320 : vector<1x32xf32> to vector<8x32xf32>
    %322 = arith.addf %318, %321 : vector<8x32xf32>
    %323 = arith.addf %304, %322 : vector<8x32xf32>
    %324 = vector.extract_strided_slice %13 {offsets = [2, 0], sizes = [1, 32], strides = [1, 1]} : vector<3x32xf32> to vector<1x32xf32>
    %325 = vector.extract_strided_slice %15 {offsets = [2, 0], sizes = [1, 32], strides = [1, 1]} : vector<3x32xf32> to vector<1x32xf32>
    %cst_117 = arith.constant dense<0.000000e+00> : vector<8xf32>
    %326 = vector.multi_reduction <add>, %323, %cst_117 [1] : vector<8x32xf32> to vector<8xf32>
    %327 = vector.shape_cast %326 : vector<8xf32> to vector<8x1xf32>
    %cst_118 = arith.constant 3.200000e+01 : f32
    %328 = vector.broadcast %cst_118 : f32 to vector<8x1xf32>
    %329 = arith.divf %327, %328 : vector<8x1xf32>
    %330 = vector.broadcast %329 : vector<8x1xf32> to vector<8x32xf32>
    %331 = arith.subf %323, %330 : vector<8x32xf32>
    %332 = vector.broadcast %329 : vector<8x1xf32> to vector<8x32xf32>
    %333 = arith.subf %323, %332 : vector<8x32xf32>
    %334 = arith.mulf %331, %333 : vector<8x32xf32>
    %cst_119 = arith.constant dense<0.000000e+00> : vector<8xf32>
    %335 = vector.multi_reduction <add>, %334, %cst_119 [1] : vector<8x32xf32> to vector<8xf32>
    %336 = vector.shape_cast %335 : vector<8xf32> to vector<8x1xf32>
    %cst_120 = arith.constant 3.200000e+01 : f32
    %337 = vector.broadcast %cst_120 : f32 to vector<8x1xf32>
    %338 = arith.divf %336, %337 : vector<8x1xf32>
    %339 = vector.broadcast %329 : vector<8x1xf32> to vector<8x32xf32>
    %340 = arith.subf %323, %339 : vector<8x32xf32>
    %cst_121 = arith.constant 9.99999974E-6 : f32
    %341 = vector.broadcast %cst_121 : f32 to vector<8x1xf32>
    %342 = arith.addf %338, %341 : vector<8x1xf32>
    %343 = math.rsqrt %342 : vector<8x1xf32>
    %344 = vector.broadcast %343 : vector<8x1xf32> to vector<8x32xf32>
    %345 = arith.mulf %340, %344 : vector<8x32xf32>
    %346 = vector.broadcast %324 : vector<1x32xf32> to vector<8x32xf32>
    %347 = arith.mulf %345, %346 : vector<8x32xf32>
    %348 = vector.broadcast %325 : vector<1x32xf32> to vector<8x32xf32>
    %349 = arith.addf %347, %348 : vector<8x32xf32>
    %c0_122 = arith.constant 0 : index
    %c0_123 = arith.constant 0 : index
    %350 = vector.load %arg17[%c0_122, %c0_123] : memref<8x32xf32, #tpu.memory_space<vmem>>, vector<8x32xf32>
    tpu.vector_store %arg17[%c0_122, %c0_123], %349 {strides = array<i32>} : memref<8x32xf32, #tpu.memory_space<vmem>>, vector<8x32xf32>,
    %c1_i32 = arith.constant 1 : i32
    %351 = arith.cmpi eq, %arg1, %c1_i32 : i32
    %352 = arith.extui %351 : i1 to i32
    %c0_i32_124 = arith.constant 0 : i32
    %353 = arith.cmpi ne, %352, %c0_i32_124 : i32
    scf.if %353 {
      %c0_125 = arith.constant 0 : index
      %c0_126 = arith.constant 0 : index
      %354 = vector.load %arg14[%c0_125, %c0_126] : memref<1x32xf32, #tpu.memory_space<vmem>>, vector<1x32xf32>
      %c0_127 = arith.constant 0 : index
      %c0_128 = arith.constant 0 : index
      %355 = vector.load %arg15[%c0_127, %c0_128] : memref<1x32xf32, #tpu.memory_space<vmem>>, vector<1x32xf32>
      %cst_129 = arith.constant dense<0.000000e+00> : vector<8xf32>
      %356 = vector.multi_reduction <add>, %349, %cst_129 [1] : vector<8x32xf32> to vector<8xf32>
      %357 = vector.shape_cast %356 : vector<8xf32> to vector<8x1xf32>
      %cst_130 = arith.constant 3.200000e+01 : f32
      %358 = vector.broadcast %cst_130 : f32 to vector<8x1xf32>
      %359 = arith.divf %357, %358 : vector<8x1xf32>
      %360 = vector.broadcast %359 : vector<8x1xf32> to vector<8x32xf32>
      %361 = arith.subf %349, %360 : vector<8x32xf32>
      %362 = vector.broadcast %359 : vector<8x1xf32> to vector<8x32xf32>
      %363 = arith.subf %349, %362 : vector<8x32xf32>
      %364 = arith.mulf %361, %363 : vector<8x32xf32>
      %cst_131 = arith.constant dense<0.000000e+00> : vector<8xf32>
      %365 = vector.multi_reduction <add>, %364, %cst_131 [1] : vector<8x32xf32> to vector<8xf32>
      %366 = vector.shape_cast %365 : vector<8xf32> to vector<8x1xf32>
      %cst_132 = arith.constant 3.200000e+01 : f32
      %367 = vector.broadcast %cst_132 : f32 to vector<8x1xf32>
      %368 = arith.divf %366, %367 : vector<8x1xf32>
      %369 = vector.broadcast %359 : vector<8x1xf32> to vector<8x32xf32>
      %370 = arith.subf %349, %369 : vector<8x32xf32>
      %cst_133 = arith.constant 9.99999974E-6 : f32
      %371 = vector.broadcast %cst_133 : f32 to vector<8x1xf32>
      %372 = arith.addf %368, %371 : vector<8x1xf32>
      %373 = math.rsqrt %372 : vector<8x1xf32>
      %374 = vector.broadcast %373 : vector<8x1xf32> to vector<8x32xf32>
      %375 = arith.mulf %370, %374 : vector<8x32xf32>
      %376 = vector.broadcast %354 : vector<1x32xf32> to vector<8x32xf32>
      %377 = arith.mulf %375, %376 : vector<8x32xf32>
      %378 = vector.broadcast %355 : vector<1x32xf32> to vector<8x32xf32>
      %379 = arith.addf %377, %378 : vector<8x32xf32>
      %c0_134 = arith.constant 0 : index
      %c0_135 = arith.constant 0 : index
      %c0_136 = arith.constant 0 : index
      %380 = vector.load %arg16[%c0_134, %c0_135, %c0_136] : memref<1x8x32xf32, #tpu.memory_space<vmem>>, vector<1x8x32xf32>
      %381 = vector.shape_cast %380 : vector<1x8x32xf32> to vector<8x32xf32>
      %382 = vector.shape_cast %379 : vector<8x32xf32> to vector<1x8x32xf32>
      tpu.vector_store %arg16[%c0_134, %c0_135, %c0_136], %382 {strides = array<i32>} : memref<1x8x32xf32, #tpu.memory_space<vmem>>, vector<1x8x32xf32>,
    } else {
    }
    return
  }
  func.func @transform_0(%arg0: i32, %arg1: i32) -> (i32, i32, i32) {
    %c0_i32 = arith.constant 0 : i32
    %c0_i32_0 = arith.constant 0 : i32
    %c0_i32_1 = arith.constant 0 : i32
    return %arg0, %c0_i32, %c0_i32_0 : i32, i32, i32
  }
  func.func @transform_1(%arg0: i32, %arg1: i32) -> (i32, i32, i32) {
    %c0_i32 = arith.constant 0 : i32
    %c0_i32_0 = arith.constant 0 : i32
    %c0_i32_1 = arith.constant 0 : i32
    return %arg0, %c0_i32, %c0_i32_0 : i32, i32, i32
  }
  func.func @transform_2(%arg0: i32, %arg1: i32) -> (i32, i32, i32) {
    %c0_i32 = arith.constant 0 : i32
    %c0_i32_0 = arith.constant 0 : i32
    %c0_i32_1 = arith.constant 0 : i32
    return %arg0, %c0_i32, %c0_i32_0 : i32, i32, i32
  }
  func.func @transform_3(%arg0: i32, %arg1: i32) -> (i32, i32, i32) {
    %c0_i32 = arith.constant 0 : i32
    %c0_i32_0 = arith.constant 0 : i32
    %c0_i32_1 = arith.constant 0 : i32
    return %arg0, %c0_i32, %c0_i32_0 : i32, i32, i32
  }
  func.func @transform_4(%arg0: i32, %arg1: i32) -> (i32, i32, i32, i32) {
    %c0_i32 = arith.constant 0 : i32
    %c0_i32_0 = arith.constant 0 : i32
    %c0_i32_1 = arith.constant 0 : i32
    %c0_i32_2 = arith.constant 0 : i32
    return %arg1, %c0_i32, %c0_i32_0, %c0_i32_1 : i32, i32, i32, i32
  }
  func.func @transform_5(%arg0: i32, %arg1: i32) -> (i32, i32, i32) {
    %c0_i32 = arith.constant 0 : i32
    %c0_i32_0 = arith.constant 0 : i32
    %c0_i32_1 = arith.constant 0 : i32
    return %arg1, %c0_i32, %c0_i32_0 : i32, i32, i32
  }
  func.func @transform_6(%arg0: i32, %arg1: i32) -> (i32, i32, i32) {
    %c0_i32 = arith.constant 0 : i32
    %c0_i32_0 = arith.constant 0 : i32
    %c0_i32_1 = arith.constant 0 : i32
    return %arg1, %c0_i32, %c0_i32_0 : i32, i32, i32
  }
  func.func @transform_7(%arg0: i32, %arg1: i32) -> (i32, i32, i32) {
    %c0_i32 = arith.constant 0 : i32
    %c0_i32_0 = arith.constant 0 : i32
    %c0_i32_1 = arith.constant 0 : i32
    return %arg1, %c0_i32, %c0_i32_0 : i32, i32, i32
  }
  func.func @transform_8(%arg0: i32, %arg1: i32) -> (i32, i32, i32) {
    %c0_i32 = arith.constant 0 : i32
    %c0_i32_0 = arith.constant 0 : i32
    %c0_i32_1 = arith.constant 0 : i32
    return %arg1, %c0_i32, %c0_i32_0 : i32, i32, i32
  }
  func.func @transform_9(%arg0: i32, %arg1: i32) -> (i32, i32, i32) {
    %c0_i32 = arith.constant 0 : i32
    %c0_i32_0 = arith.constant 0 : i32
    %c0_i32_1 = arith.constant 0 : i32
    return %arg1, %c0_i32, %c0_i32_0 : i32, i32, i32
  }
  func.func @transform_10(%arg0: i32, %arg1: i32) -> (i32, i32, i32) {
    %c0_i32 = arith.constant 0 : i32
    %c0_i32_0 = arith.constant 0 : i32
    %c0_i32_1 = arith.constant 0 : i32
    return %arg1, %c0_i32, %c0_i32_0 : i32, i32, i32
  }
  func.func @transform_11(%arg0: i32, %arg1: i32) -> (i32, i32, i32) {
    %c0_i32 = arith.constant 0 : i32
    %c0_i32_0 = arith.constant 0 : i32
    %c0_i32_1 = arith.constant 0 : i32
    return %arg1, %c0_i32, %c0_i32_0 : i32, i32, i32
  }
  func.func @transform_12(%arg0: i32, %arg1: i32) -> (i32, i32) {
    %c0_i32 = arith.constant 0 : i32
    %c0_i32_0 = arith.constant 0 : i32
    %c0_i32_1 = arith.constant 0 : i32
    return %c0_i32, %c0_i32_0 : i32, i32
  }
  func.func @transform_13(%arg0: i32, %arg1: i32) -> (i32, i32) {
    %c0_i32 = arith.constant 0 : i32
    %c0_i32_0 = arith.constant 0 : i32
    %c0_i32_1 = arith.constant 0 : i32
    return %c0_i32, %c0_i32_0 : i32, i32
  }
  func.func @transform_14(%arg0: i32, %arg1: i32) -> (i32, i32, i32) {
    %c0_i32 = arith.constant 0 : i32
    %c0_i32_0 = arith.constant 0 : i32
    %c0_i32_1 = arith.constant 0 : i32
    return %arg0, %c0_i32, %c0_i32_0 : i32, i32, i32
  }
}

</mosaic_0001>

<llo_original>
// kernel: transformer_decoder_forward.1
$region0: #{transformer_decoder_forward.1}
  #allocation0 [shape = 'u32[]', space=smem, size = 0x4, offset = 0x4, fixed_abs, tag = 'smem constant byte address 0x4 - core index']
  #allocation1 [shape = 'u32[144,128]{1,0:T(1,128)}', space=vmem, size = 0x12000, scoped, tag = 'internal scratch']
  #allocation2 [shape = 'f32[8,32]{1,0:T(8,128)}', space=vmem, size = 0x1000, scoped, tag = 'scratch operand']
  %s0 = inlined_call_operand.vmem [shape: f32[2,8,32], index: 0, kind: input, shape index: {}]
  %s1 = inlined_call_operand.vmem [shape: f32[2,8,32], index: 1, kind: input, shape index: {}]
  %s2 = inlined_call_operand.vmem [shape: f32[2,16,32], index: 2, kind: input, shape index: {}]
  %s3 = inlined_call_operand.vmem [shape: f32[2,16,32], index: 3, kind: input, shape index: {}]
  %s4 = inlined_call_operand.vmem [shape: bf16[2,8,32,32], index: 4, kind: input, shape index: {}]
  %s5 = inlined_call_operand.hbm [shape: f32[2,8,32], index: 5, kind: input, shape index: {}]
  %s6 = inlined_call_operand.vmem [shape: bf16[2,32,64], index: 6, kind: input, shape index: {}]
  %s7 = inlined_call_operand.hbm [shape: f32[2,1,64], index: 7, kind: input, shape index: {}]
  %s8 = inlined_call_operand.vmem [shape: bf16[2,64,32], index: 8, kind: input, shape index: {}]
  %s9 = inlined_call_operand.hbm [shape: f32[2,1,32], index: 9, kind: input, shape index: {}]
  %s10 = inlined_call_operand.vmem [shape: f32[2,3,32], index: 10, kind: input, shape index: {}]
  %s11 = inlined_call_operand.vmem [shape: f32[2,3,32], index: 11, kind: input, shape index: {}]
  %s12 = inlined_call_operand.hbm [shape: f32[1,32], index: 12, kind: input, shape index: {}]
  %s13 = inlined_call_operand.hbm [shape: f32[1,32], index: 13, kind: input, shape index: {}]
  %s14 = inlined_call_operand.vmem [shape: f32[2,8,32], index: 14, kind: output, shape index: {}]
  %s15 = sld [smem:[#allocation0]]
  $region117: #{transformer_decoder_forward.1} parent=0
    _
  %s17 = ssub.s32 1, %s15
  %s18 = scalar_select 0, %s17, %s15
  $region1: #{transformer_decoder_forward.1} parent=0
    #allocation3 [shape = 'u8[8192]{0}', space=vmem, size = 0x2000, scoped, tag = 'input window, operand 5']
    #allocation4 [shape = 's32[2]{0}', space=sflag, size = 0x8, scoped, tag = 'scoped memory for transformer_decoder_forward.1']
    #allocation5 [shape = 'u8[1024]{0}', space=vmem, size = 0x400, scoped, tag = 'input window, operand 7']
    #allocation6 [shape = 's32[2]{0}', space=sflag, size = 0x8, scoped, tag = 'scoped memory for transformer_decoder_forward.1']
    #allocation7 [shape = 'u8[1024]{0}', space=vmem, size = 0x400, scoped, tag = 'input window, operand 9']
    #allocation8 [shape = 'u8[512]{0}', space=vmem, size = 0x400, scoped, tag = 'input window, operand 12, single buffered']
    #allocation9 [shape = 's32[1]{0}', space=sflag, size = 0x4, scoped, tag = 'scoped memory for transformer_decoder_forward.1']
    #allocation10 [shape = 'u8[512]{0}', space=vmem, size = 0x400, scoped, tag = 'input window, operand 13, single buffered']
    %19 = vsyncpa [#allocation4], 0
    %s20 = scalar_lea.sflag [#allocation4], 1
    %21 = vsyncpa %s20, 0
    %22 = vsyncpa [#allocation6], 0
    %s23 = scalar_lea.sflag [#allocation6], 1
    %24 = vsyncpa %s23, 0
    %25 = vsyncpa [#allocation9], 0
    loop: start=0, step=1, limit=6
    $region2: #{transformer_decoder_forward.1} parent=1 // loop_pre_header
      _
    $region3: #{transformer_decoder_forward.1} parent=1 // loop_header
      %s27 = sphi 0, %s31
      %p28 = scmp.ge.s32.totalorder %s27, 6
      %s34 = sphi 0, %s46
      %s35 = sphi 0, %s42
      %s36 = sphi 0, %s34
      %s37 = sphi 0, %s35
      %s38 = sphi 0, %s36
      %s39 = sphi 0, %s37
      %s49 = sphi 0, %s51
      %s52 = sphi 0, %s49
      %s53 = sphi 0, %s52
      %s69 = sphi 0, %s53
      %s75 = sphi 0, %s77
      %s78 = sphi 0, %s75
      %s79 = sphi 0, %s78
      %s95 = sphi 0, %s79
      %s101 = sphi 0, %s103
      %s104 = sphi 0, %s101
      %s105 = sphi 0, %s104
      %s121 = sphi 0, %s105
      %s127 = sphi 0, %s129
      %s130 = sphi 0, %s127
      %s131 = sphi 0, %s130
      %s147 = sphi 0, %s131
      %s153 = sphi 0, %s155
      %s156 = sphi 0, %s153
      %s157 = sphi 0, %s156
      %s173 = sphi 0, %s157
      %s179 = sphi 0, %s181
      %s182 = sphi 0, %s179
      %s183 = sphi 0, %s182
      %s199 = sphi 0, %s183
      %s205 = sphi 0, %s207
      %s208 = sphi 0, %s205
      %s209 = sphi 0, %s208
      %s225 = sphi 0, %s209
      %s231 = sphi 0, %s233
      %s234 = sphi 0, %s231
      %s235 = sphi 0, %s234
      %s251 = sphi 0, %s235
      %s257 = sphi 0, %s259
      %s260 = sphi 0, %s257
      %s261 = sphi 0, %s260
      %s277 = sphi 0, %s261
      %s283 = sphi 0, %s285
      %s286 = sphi 0, %s283
      %s287 = sphi 0, %s286
      %s303 = sphi 0, %s287
      %s309 = sphi 0, %s311
      %s312 = sphi 0, %s309
      %s313 = sphi 0, %s312
      %s329 = sphi 0, %s313
      %s335 = sphi 0, %s337
      %s338 = sphi 0, %s335
      %s339 = sphi 0, %s338
      %s355 = sphi 0, %s339
      %s359 = sphi 0, %s359
      %s361 = sphi 0, %s359
      %s362 = sphi 0, %s361
      %s376 = sphi 0, %s362
      %s380 = sphi 0, %s380
      %s382 = sphi 0, %s380
      %s383 = sphi 0, %s382
      %s397 = sphi 0, %s383
      %s403 = sphi 0, %s405
      %s406 = sphi 0, %s403
      %s407 = sphi 0, %s406
      %s423 = sphi 0, %s407
    $region4: #{transformer_decoder_forward.1} parent=1 // loop_header_branch
      %30 = sbr.rel (%p28) target = $region8
    $region5: #{transformer_decoder_forward.1} parent=1 // loop_body
      %s32 = ssub.s32 %s27, 1
      %s33 = ssub.s32 %s27, 2
      %s40 = sadd.s32 1, %s35
      %p41 = scmp.ge.s32.totalorder %s40, 2
      %s42 = scalar_select %p41, 0, %s40
      %s43 = sadd.s32 1, %s34
      %s44 = scalar_select %p41, %s43, %s34
      %p45 = scmp.ge.s32.totalorder %s44, 2
      %s46 = scalar_select %p45, 0, %s44
      %s47 = ssub.s32 %s34, %s46
      %p48 = scmp.eq.s32.totalorder %s47, 0
      %s50 = sadd.s32 %s49, 1
      %s51 = scalar_select %p48, %s49, %s50
      %p54 = pneg %p48
      %p55 = scmp.eq.s32.totalorder %s27, 3
      %p56 = por %p54, %p55
      %p57 = scmp.ne.s32.totalorder %s49, %s52
      %p58 = scmp.eq.s32.totalorder %s27, 0
      %p59 = por %p57, %p58
      %p60 = scmp.ne.s32.totalorder %s49, %s52
      %p61 = scmp.eq.s32.totalorder %s32, 3
      %p62 = por %p60, %p61
      %p63 = scmp.ne.s32.totalorder %s52, %s53
      %p64 = scmp.eq.s32.totalorder %s32, 0
      %p65 = por %p63, %p64
      %p66 = scmp.ne.s32.totalorder %s52, %s53
      %p67 = scmp.eq.s32.totalorder %s33, 3
      %p68 = por %p66, %p67
      %p70 = scmp.ne.s32.totalorder %s53, %s69
      %p71 = scmp.eq.s32.totalorder %s33, 0
      %p72 = por %p70, %p71
      %s73 = ssub.s32 %s34, %s46
      %p74 = scmp.eq.s32.totalorder %s73, 0
      %s76 = sadd.s32 %s75, 1
      %s77 = scalar_select %p74, %s75, %s76
      %p80 = pneg %p74
      %p81 = scmp.eq.s32.totalorder %s27, 3
      %p82 = por %p80, %p81
      %p83 = scmp.ne.s32.totalorder %s75, %s78
      %p84 = scmp.eq.s32.totalorder %s27, 0
      %p85 = por %p83, %p84
      %p86 = scmp.ne.s32.totalorder %s75, %s78
      %p87 = scmp.eq.s32.totalorder %s32, 3
      %p88 = por %p86, %p87
      %p89 = scmp.ne.s32.totalorder %s78, %s79
      %p90 = scmp.eq.s32.totalorder %s32, 0
      %p91 = por %p89, %p90
      %p92 = scmp.ne.s32.totalorder %s78, %s79
      %p93 = scmp.eq.s32.totalorder %s33, 3
      %p94 = por %p92, %p93
      %p96 = scmp.ne.s32.totalorder %s79, %s95
      %p97 = scmp.eq.s32.totalorder %s33, 0
      %p98 = por %p96, %p97
      %s99 = ssub.s32 %s34, %s46
      %p100 = scmp.eq.s32.totalorder %s99, 0
      %s102 = sadd.s32 %s101, 1
      %s103 = scalar_select %p100, %s101, %s102
      %p106 = pneg %p100
      %p107 = scmp.eq.s32.totalorder %s27, 3
      %p108 = por %p106, %p107
      %p109 = scmp.ne.s32.totalorder %s101, %s104
      %p110 = scmp.eq.s32.totalorder %s27, 0
      %p111 = por %p109, %p110
      %p112 = scmp.ne.s32.totalorder %s101, %s104
      %p113 = scmp.eq.s32.totalorder %s32, 3
      %p114 = por %p112, %p113
      %p115 = scmp.ne.s32.totalorder %s104, %s105
      %p116 = scmp.eq.s32.totalorder %s32, 0
      %p117 = por %p115, %p116
      %p118 = scmp.ne.s32.totalorder %s104, %s105
      %p119 = scmp.eq.s32.totalorder %s33, 3
      %p120 = por %p118, %p119
      %p122 = scmp.ne.s32.totalorder %s105, %s121
      %p123 = scmp.eq.s32.totalorder %s33, 0
      %p124 = por %p122, %p123
      %s125 = ssub.s32 %s34, %s46
      %p126 = scmp.eq.s32.totalorder %s125, 0
      %s128 = sadd.s32 %s127, 1
      %s129 = scalar_select %p126, %s127, %s128
      %p132 = pneg %p126
      %p133 = scmp.eq.s32.totalorder %s27, 3
      %p134 = por %p132, %p133
      %p135 = scmp.ne.s32.totalorder %s127, %s130
      %p136 = scmp.eq.s32.totalorder %s27, 0
      %p137 = por %p135, %p136
      %p138 = scmp.ne.s32.totalorder %s127, %s130
      %p139 = scmp.eq.s32.totalorder %s32, 3
      %p140 = por %p138, %p139
      %p141 = scmp.ne.s32.totalorder %s130, %s131
      %p142 = scmp.eq.s32.totalorder %s32, 0
      %p143 = por %p141, %p142
      %p144 = scmp.ne.s32.totalorder %s130, %s131
      %p145 = scmp.eq.s32.totalorder %s33, 3
      %p146 = por %p144, %p145
      %p148 = scmp.ne.s32.totalorder %s131, %s147
      %p149 = scmp.eq.s32.totalorder %s33, 0
      %p150 = por %p148, %p149
      %s151 = ssub.s32 %s35, %s42
      %p152 = scmp.eq.s32.totalorder %s151, 0
      %s154 = sadd.s32 %s153, 1
      %s155 = scalar_select %p152, %s153, %s154
      %p158 = pneg %p152
      %p159 = scmp.eq.s32.totalorder %s27, 3
      %p160 = por %p158, %p159
      %p161 = scmp.ne.s32.totalorder %s153, %s156
      %p162 = scmp.eq.s32.totalorder %s27, 0
      %p163 = por %p161, %p162
      %p164 = scmp.ne.s32.totalorder %s153, %s156
      %p165 = scmp.eq.s32.totalorder %s32, 3
      %p166 = por %p164, %p165
      %p167 = scmp.ne.s32.totalorder %s156, %s157
      %p168 = scmp.eq.s32.totalorder %s32, 0
      %p169 = por %p167, %p168
      %p170 = scmp.ne.s32.totalorder %s156, %s157
      %p171 = scmp.eq.s32.totalorder %s33, 3
      %p172 = por %p170, %p171
      %p174 = scmp.ne.s32.totalorder %s157, %s173
      %p175 = scmp.eq.s32.totalorder %s33, 0
      %p176 = por %p174, %p175
      %s177 = ssub.s32 %s35, %s42
      %p178 = scmp.eq.s32.totalorder %s177, 0
      %s180 = sadd.s32 %s179, 1
      %s181 = scalar_select %p178, %s179, %s180
      %p184 = pneg %p178
      %p185 = scmp.eq.s32.totalorder %s27, 3
      %p186 = por %p184, %p185
      %p187 = scmp.ne.s32.totalorder %s179, %s182
      %p188 = scmp.eq.s32.totalorder %s27, 0
      %p189 = por %p187, %p188
      %p190 = scmp.ne.s32.totalorder %s179, %s182
      %p191 = scmp.eq.s32.totalorder %s32, 3
      %p192 = por %p190, %p191
      %p193 = scmp.ne.s32.totalorder %s182, %s183
      %p194 = scmp.eq.s32.totalorder %s32, 0
      %p195 = por %p193, %p194
      %p196 = scmp.ne.s32.totalorder %s182, %s183
      %p197 = scmp.eq.s32.totalorder %s33, 3
      %p198 = por %p196, %p197
      %p200 = scmp.ne.s32.totalorder %s183, %s199
      %p201 = scmp.eq.s32.totalorder %s33, 0
      %p202 = por %p200, %p201
      %s203 = ssub.s32 %s35, %s42
      %p204 = scmp.eq.s32.totalorder %s203, 0
      %s206 = sadd.s32 %s205, 1
      %s207 = scalar_select %p204, %s205, %s206
      %p210 = pneg %p204
      %p211 = scmp.eq.s32.totalorder %s27, 3
      %p212 = por %p210, %p211
      %p213 = scmp.ne.s32.totalorder %s205, %s208
      %p214 = scmp.eq.s32.totalorder %s27, 0
      %p215 = por %p213, %p214
      %p216 = scmp.ne.s32.totalorder %s205, %s208
      %p217 = scmp.eq.s32.totalorder %s32, 3
      %p218 = por %p216, %p217
      %p219 = scmp.ne.s32.totalorder %s208, %s209
      %p220 = scmp.eq.s32.totalorder %s32, 0
      %p221 = por %p219, %p220
      %p222 = scmp.ne.s32.totalorder %s208, %s209
      %p223 = scmp.eq.s32.totalorder %s33, 3
      %p224 = por %p222, %p223
      %p226 = scmp.ne.s32.totalorder %s209, %s225
      %p227 = scmp.eq.s32.totalorder %s33, 0
      %p228 = por %p226, %p227
      %s229 = ssub.s32 %s35, %s42
      %p230 = scmp.eq.s32.totalorder %s229, 0
      %s232 = sadd.s32 %s231, 1
      %s233 = scalar_select %p230, %s231, %s232
      %p236 = pneg %p230
      %p237 = scmp.eq.s32.totalorder %s27, 3
      %p238 = por %p236, %p237
      %p239 = scmp.ne.s32.totalorder %s231, %s234
      %p240 = scmp.eq.s32.totalorder %s27, 0
      %p241 = por %p239, %p240
      %p242 = scmp.ne.s32.totalorder %s231, %s234
      %p243 = scmp.eq.s32.totalorder %s32, 3
      %p244 = por %p242, %p243
      %p245 = scmp.ne.s32.totalorder %s234, %s235
      %p246 = scmp.eq.s32.totalorder %s32, 0
      %p247 = por %p245, %p246
      %p248 = scmp.ne.s32.totalorder %s234, %s235
      %p249 = scmp.eq.s32.totalorder %s33, 3
      %p250 = por %p248, %p249
      %p252 = scmp.ne.s32.totalorder %s235, %s251
      %p253 = scmp.eq.s32.totalorder %s33, 0
      %p254 = por %p252, %p253
      %s255 = ssub.s32 %s35, %s42
      %p256 = scmp.eq.s32.totalorder %s255, 0
      %s258 = sadd.s32 %s257, 1
      %s259 = scalar_select %p256, %s257, %s258
      %p262 = pneg %p256
      %p263 = scmp.eq.s32.totalorder %s27, 3
      %p264 = por %p262, %p263
      %p265 = scmp.ne.s32.totalorder %s257, %s260
      %p266 = scmp.eq.s32.totalorder %s27, 0
      %p267 = por %p265, %p266
      %p268 = scmp.ne.s32.totalorder %s257, %s260
      %p269 = scmp.eq.s32.totalorder %s32, 3
      %p270 = por %p268, %p269
      %p271 = scmp.ne.s32.totalorder %s260, %s261
      %p272 = scmp.eq.s32.totalorder %s32, 0
      %p273 = por %p271, %p272
      %p274 = scmp.ne.s32.totalorder %s260, %s261
      %p275 = scmp.eq.s32.totalorder %s33, 3
      %p276 = por %p274, %p275
      %p278 = scmp.ne.s32.totalorder %s261, %s277
      %p279 = scmp.eq.s32.totalorder %s33, 0
      %p280 = por %p278, %p279
      %s281 = ssub.s32 %s35, %s42
      %p282 = scmp.eq.s32.totalorder %s281, 0
      %s284 = sadd.s32 %s283, 1
      %s285 = scalar_select %p282, %s283, %s284
      %p288 = pneg %p282
      %p289 = scmp.eq.s32.totalorder %s27, 3
      %p290 = por %p288, %p289
      %p291 = scmp.ne.s32.totalorder %s283, %s286
      %p292 = scmp.eq.s32.totalorder %s27, 0
      %p293 = por %p291, %p292
      %p294 = scmp.ne.s32.totalorder %s283, %s286
      %p295 = scmp.eq.s32.totalorder %s32, 3
      %p296 = por %p294, %p295
      %p297 = scmp.ne.s32.totalorder %s286, %s287
      %p298 = scmp.eq.s32.totalorder %s32, 0
      %p299 = por %p297, %p298
      %p300 = scmp.ne.s32.totalorder %s286, %s287
      %p301 = scmp.eq.s32.totalorder %s33, 3
      %p302 = por %p300, %p301
      %p304 = scmp.ne.s32.totalorder %s287, %s303
      %p305 = scmp.eq.s32.totalorder %s33, 0
      %p306 = por %p304, %p305
      %s307 = ssub.s32 %s35, %s42
      %p308 = scmp.eq.s32.totalorder %s307, 0
      %s310 = sadd.s32 %s309, 1
      %s311 = scalar_select %p308, %s309, %s310
      %p314 = pneg %p308
      %p315 = scmp.eq.s32.totalorder %s27, 3
      %p316 = por %p314, %p315
      %p317 = scmp.ne.s32.totalorder %s309, %s312
      %p318 = scmp.eq.s32.totalorder %s27, 0
      %p319 = por %p317, %p318
      %p320 = scmp.ne.s32.totalorder %s309, %s312
      %p321 = scmp.eq.s32.totalorder %s32, 3
      %p322 = por %p320, %p321
      %p323 = scmp.ne.s32.totalorder %s312, %s313
      %p324 = scmp.eq.s32.totalorder %s32, 0
      %p325 = por %p323, %p324
      %p326 = scmp.ne.s32.totalorder %s312, %s313
      %p327 = scmp.eq.s32.totalorder %s33, 3
      %p328 = por %p326, %p327
      %p330 = scmp.ne.s32.totalorder %s313, %s329
      %p331 = scmp.eq.s32.totalorder %s33, 0
      %p332 = por %p330, %p331
      %s333 = ssub.s32 %s35, %s42
      %p334 = scmp.eq.s32.totalorder %s333, 0
      %s336 = sadd.s32 %s335, 1
      %s337 = scalar_select %p334, %s335, %s336
      %p340 = pneg %p334
      %p341 = scmp.eq.s32.totalorder %s27, 3
      %p342 = por %p340, %p341
      %p343 = scmp.ne.s32.totalorder %s335, %s338
      %p344 = scmp.eq.s32.totalorder %s27, 0
      %p345 = por %p343, %p344
      %p346 = scmp.ne.s32.totalorder %s335, %s338
      %p347 = scmp.eq.s32.totalorder %s32, 3
      %p348 = por %p346, %p347
      %p349 = scmp.ne.s32.totalorder %s338, %s339
      %p350 = scmp.eq.s32.totalorder %s32, 0
      %p351 = por %p349, %p350
      %p352 = scmp.ne.s32.totalorder %s338, %s339
      %p353 = scmp.eq.s32.totalorder %s33, 3
      %p354 = por %p352, %p353
      %p356 = scmp.ne.s32.totalorder %s339, %s355
      %p357 = scmp.eq.s32.totalorder %s33, 0
      %p358 = por %p356, %p357
      %s360 = sadd.s32 %s359, 1
      %p363 = scmp.eq.s32.totalorder %s27, 3
      %p364 = scmp.ne.s32.totalorder %s359, %s361
      %p365 = scmp.eq.s32.totalorder %s27, 0
      %p366 = por %p364, %p365
      %p367 = scmp.ne.s32.totalorder %s359, %s361
      %p368 = scmp.eq.s32.totalorder %s32, 3
      %p369 = por %p367, %p368
      %p370 = scmp.ne.s32.totalorder %s361, %s362
      %p371 = scmp.eq.s32.totalorder %s32, 0
      %p372 = por %p370, %p371
      %p373 = scmp.ne.s32.totalorder %s361, %s362
      %p374 = scmp.eq.s32.totalorder %s33, 3
      %p375 = por %p373, %p374
      %p377 = scmp.ne.s32.totalorder %s362, %s376
      %p378 = scmp.eq.s32.totalorder %s33, 0
      %p379 = por %p377, %p378
      %s381 = sadd.s32 %s380, 1
      %p384 = scmp.eq.s32.totalorder %s27, 3
      %p385 = scmp.ne.s32.totalorder %s380, %s382
      %p386 = scmp.eq.s32.totalorder %s27, 0
      %p387 = por %p385, %p386
      %p388 = scmp.ne.s32.totalorder %s380, %s382
      %p389 = scmp.eq.s32.totalorder %s32, 3
      %p390 = por %p388, %p389
      %p391 = scmp.ne.s32.totalorder %s382, %s383
      %p392 = scmp.eq.s32.totalorder %s32, 0
      %p393 = por %p391, %p392
      %p394 = scmp.ne.s32.totalorder %s382, %s383
      %p395 = scmp.eq.s32.totalorder %s33, 3
      %p396 = por %p394, %p395
      %p398 = scmp.ne.s32.totalorder %s383, %s397
      %p399 = scmp.eq.s32.totalorder %s33, 0
      %p400 = por %p398, %p399
      %s401 = ssub.s32 %s34, %s46
      %p402 = scmp.eq.s32.totalorder %s401, 0
      %s404 = sadd.s32 %s403, 1
      %s405 = scalar_select %p402, %s403, %s404
      %p408 = pneg %p402
      %p409 = scmp.eq.s32.totalorder %s27, 3
      %p410 = por %p408, %p409
      %p411 = scmp.ne.s32.totalorder %s403, %s406
      %p412 = scmp.eq.s32.totalorder %s27, 0
      %p413 = por %p411, %p412
      %p414 = scmp.ne.s32.totalorder %s403, %s406
      %p415 = scmp.eq.s32.totalorder %s32, 3
      %p416 = por %p414, %p415
      %p417 = scmp.ne.s32.totalorder %s406, %s407
      %p418 = scmp.eq.s32.totalorder %s32, 0
      %p419 = por %p417, %p418
      %p420 = scmp.ne.s32.totalorder %s406, %s407
      %p421 = scmp.eq.s32.totalorder %s33, 3
      %p422 = por %p420, %p421
      %p424 = scmp.ne.s32.totalorder %s407, %s423
      %p425 = scmp.eq.s32.totalorder %s33, 0
      %p426 = por %p424, %p425
      %p427 = scmp.le.s32.totalorder 1, %s27
      %p428 = scmp.lt.s32.totalorder %s27, 5
      %p429 = pnand %p427, %p428
      %p430 = pneg %p429
      // Predicated region
      $region9: #{transformer_decoder_forward.1} parent=5 // pred_check
        _
      $region10: #{transformer_decoder_forward.1} parent=5 // pred_check_branch
        %432 = sbr.rel (%p429) target = $region12
      $region11: #{transformer_decoder_forward.1} parent=5 // pred_region
        %s433 = ssub.s32 %s27, 1
        // Predicated region
        $region13: #{transformer_decoder_forward.1} parent=11 // pred_check
          %p434 = pneg %p372
        $region14: #{transformer_decoder_forward.1} parent=11 // pred_check_branch
          %436 = sbr.rel (%p434) target = $region16
        $region15: #{transformer_decoder_forward.1} parent=11 // pred_region
          %s438 = ssub.s32 16, 16
          %439 = vsyncadd [#allocation9], %s438
          %s441 = sshll.u32 [#allocation8], 4
          %s442 = int_to_ptr.vmem [resolvable:$true] %s441
          %444 = dma.hbm_to_vmem [thread:$0]  %s12, 16, %s442, [#allocation9]
        $region16: #{transformer_decoder_forward.1} parent=11 // pred_fallthru
          _
        // Predicated region
        $region17: #{transformer_decoder_forward.1} parent=11 // pred_check
          %p445 = pneg %p393
        $region18: #{transformer_decoder_forward.1} parent=11 // pred_check_branch
          %447 = sbr.rel (%p445) target = $region20
        $region19: #{transformer_decoder_forward.1} parent=11 // pred_region
          %s449 = ssub.s32 16, 16
          %450 = vsyncadd [#allocation9], %s449
          %s452 = sshll.u32 [#allocation10], 4
          %s453 = int_to_ptr.vmem [resolvable:$true] %s452
          %455 = dma.hbm_to_vmem [thread:$0]  %s13, 16, %s453, [#allocation9]
        $region20: #{transformer_decoder_forward.1} parent=11 // pred_fallthru
          _
      $region12: #{transformer_decoder_forward.1} parent=5 // pred_fallthru
        _
      %p456 = scmp.lt.s32.totalorder %s27, 4
      // Predicated region
      $region21: #{transformer_decoder_forward.1} parent=5 // pred_check
        %p457 = pneg %p456
      $region22: #{transformer_decoder_forward.1} parent=5 // pred_check_branch
        %459 = sbr.rel (%p457) target = $region24
      $region23: #{transformer_decoder_forward.1} parent=5 // pred_region
        // Predicated region
        $region25: #{transformer_decoder_forward.1} parent=23 // pred_check
          %p460 = pneg %p59
        $region26: #{transformer_decoder_forward.1} parent=23 // pred_check_branch
          %462 = sbr.rel (%p460) target = $region28
        $region27: #{transformer_decoder_forward.1} parent=23 // pred_region
          %p463 = scmp.lt.s32.totalorder %s34, 1
          %s464 = scalar_select %p463, %s34, 1
          %s465 = smul.addr %s464, 8
          %s466 = scalar_lea.vmem %s0, %s465
        $region28: #{transformer_decoder_forward.1} parent=23 // pred_fallthru
          _
        // Predicated region
        $region29: #{transformer_decoder_forward.1} parent=23 // pred_check
          %p467 = pneg %p85
        $region30: #{transformer_decoder_forward.1} parent=23 // pred_check_branch
          %469 = sbr.rel (%p467) target = $region32
        $region31: #{transformer_decoder_forward.1} parent=23 // pred_region
          %p470 = scmp.lt.s32.totalorder %s34, 1
          %s471 = scalar_select %p470, %s34, 1
          %s472 = smul.addr %s471, 8
          %s473 = scalar_lea.vmem %s1, %s472
        $region32: #{transformer_decoder_forward.1} parent=23 // pred_fallthru
          _
        // Predicated region
        $region33: #{transformer_decoder_forward.1} parent=23 // pred_check
          %p474 = pneg %p111
        $region34: #{transformer_decoder_forward.1} parent=23 // pred_check_branch
          %476 = sbr.rel (%p474) target = $region36
        $region35: #{transformer_decoder_forward.1} parent=23 // pred_region
          %p477 = scmp.lt.s32.totalorder %s34, 1
          %s478 = scalar_select %p477, %s34, 1
          %s479 = smul.addr %s478, 2
          %s480 = smul.addr %s479, 8
          %s481 = scalar_lea.vmem %s2, %s480
        $region36: #{transformer_decoder_forward.1} parent=23 // pred_fallthru
          _
        // Predicated region
        $region37: #{transformer_decoder_forward.1} parent=23 // pred_check
          %p482 = pneg %p137
        $region38: #{transformer_decoder_forward.1} parent=23 // pred_check_branch
          %484 = sbr.rel (%p482) target = $region40
        $region39: #{transformer_decoder_forward.1} parent=23 // pred_region
          %p485 = scmp.lt.s32.totalorder %s34, 1
          %s486 = scalar_select %p485, %s34, 1
          %s487 = smul.addr %s486, 2
          %s488 = smul.addr %s487, 8
          %s489 = scalar_lea.vmem %s3, %s488
        $region40: #{transformer_decoder_forward.1} parent=23 // pred_fallthru
          _
        // Predicated region
        $region41: #{transformer_decoder_forward.1} parent=23 // pred_check
          %p490 = pneg %p163
        $region42: #{transformer_decoder_forward.1} parent=23 // pred_check_branch
          %492 = sbr.rel (%p490) target = $region44
        $region43: #{transformer_decoder_forward.1} parent=23 // pred_region
          %p493 = scmp.lt.s32.totalorder %s35, 1
          %s494 = scalar_select %p493, %s35, 1
          %s495 = smul.addr %s494, 32
          %s496 = smul.addr %s495, 4
          %s497 = scalar_lea.vmem %s4, %s496
        $region44: #{transformer_decoder_forward.1} parent=23 // pred_fallthru
          _
        // Predicated region
        $region45: #{transformer_decoder_forward.1} parent=23 // pred_check
          %p498 = pneg %p189
        $region46: #{transformer_decoder_forward.1} parent=23 // pred_check_branch
          %500 = sbr.rel (%p498) target = $region48
        $region47: #{transformer_decoder_forward.1} parent=23 // pred_region
          %s501 = sand.u32 %s179, 1
          %s502 = scalar_lea.sflag [#allocation4], %s501
          %s503 = sand.u32 %s179, 1
          %s504 = smul.addr %s503, 8
          %s505 = scalar_lea.vmem [#allocation3], %s504
          %s507 = ssub.s32 128, 128
          %508 = vsyncadd %s502, %s507
          %s509 = smul.addr %s35, 128
          %s510 = scalar_lea.hbm %s5, %s509
          %s512 = sshll.u32 %s505, 4
          %s513 = int_to_ptr.vmem [resolvable:$true] %s512
          %515 = dma.hbm_to_vmem [thread:$0]  %s510, 128, %s513, %s502
        $region48: #{transformer_decoder_forward.1} parent=23 // pred_fallthru
          _
        // Predicated region
        $region49: #{transformer_decoder_forward.1} parent=23 // pred_check
          %p516 = pneg %p215
        $region50: #{transformer_decoder_forward.1} parent=23 // pred_check_branch
          %518 = sbr.rel (%p516) target = $region52
        $region51: #{transformer_decoder_forward.1} parent=23 // pred_region
          %p519 = scmp.lt.s32.totalorder %s35, 1
          %s520 = scalar_select %p519, %s35, 1
          %s521 = smul.addr %s520, 4
          %s522 = smul.addr %s521, 4
          %s523 = scalar_lea.vmem %s6, %s522
        $region52: #{transformer_decoder_forward.1} parent=23 // pred_fallthru
          _
        // Predicated region
        $region53: #{transformer_decoder_forward.1} parent=23 // pred_check
          %p524 = pneg %p241
        $region54: #{transformer_decoder_forward.1} parent=23 // pred_check_branch
          %526 = sbr.rel (%p524) target = $region56
        $region55: #{transformer_decoder_forward.1} parent=23 // pred_region
          %s527 = sand.u32 %s27, 1
          %s528 = scalar_lea.sflag [#allocation6], %s527
          %s529 = sand.u32 %s231, 1
          %s530 = scalar_lea.vmem [#allocation5], %s529
          %s532 = ssub.s32 16, 16
          %533 = vsyncadd %s528, %s532
          %s534 = smul.addr %s35, 16
          %s535 = scalar_lea.hbm %s7, %s534
          %s537 = sshll.u32 %s530, 4
          %s538 = int_to_ptr.vmem [resolvable:$true] %s537
          %540 = dma.hbm_to_vmem [thread:$0]  %s535, 16, %s538, %s528
        $region56: #{transformer_decoder_forward.1} parent=23 // pred_fallthru
          _
        // Predicated region
        $region57: #{transformer_decoder_forward.1} parent=23 // pred_check
          %p541 = pneg %p267
        $region58: #{transformer_decoder_forward.1} parent=23 // pred_check_branch
          %543 = sbr.rel (%p541) target = $region60
        $region59: #{transformer_decoder_forward.1} parent=23 // pred_region
          %p544 = scmp.lt.s32.totalorder %s35, 1
          %s545 = scalar_select %p544, %s35, 1
          %s546 = smul.addr %s545, 8
          %s547 = smul.addr %s546, 4
          %s548 = scalar_lea.vmem %s8, %s547
        $region60: #{transformer_decoder_forward.1} parent=23 // pred_fallthru
          _
        // Predicated region
        $region61: #{transformer_decoder_forward.1} parent=23 // pred_check
          %p549 = pneg %p293
        $region62: #{transformer_decoder_forward.1} parent=23 // pred_check_branch
          %551 = sbr.rel (%p549) target = $region64
        $region63: #{transformer_decoder_forward.1} parent=23 // pred_region
          %s552 = sand.u32 %s27, 1
          %s553 = scalar_lea.sflag [#allocation6], %s552
          %s554 = sand.u32 %s283, 1
          %s555 = scalar_lea.vmem [#allocation7], %s554
          %s557 = ssub.s32 16, 16
          %558 = vsyncadd %s553, %s557
          %s559 = smul.addr %s35, 16
          %s560 = scalar_lea.hbm %s9, %s559
          %s562 = sshll.u32 %s555, 4
          %s563 = int_to_ptr.vmem [resolvable:$true] %s562
          %565 = dma.hbm_to_vmem [thread:$0]  %s560, 16, %s563, %s553
        $region64: #{transformer_decoder_forward.1} parent=23 // pred_fallthru
          _
        // Predicated region
        $region65: #{transformer_decoder_forward.1} parent=23 // pred_check
          %p566 = pneg %p319
        $region66: #{transformer_decoder_forward.1} parent=23 // pred_check_branch
          %568 = sbr.rel (%p566) target = $region68
        $region67: #{transformer_decoder_forward.1} parent=23 // pred_region
          %p569 = scmp.lt.s32.totalorder %s35, 1
          %s570 = scalar_select %p569, %s35, 1
          %s571 = smul.addr %s570, 4
          %s572 = scalar_lea.vmem %s10, %s571
        $region68: #{transformer_decoder_forward.1} parent=23 // pred_fallthru
          _
        // Predicated region
        $region69: #{transformer_decoder_forward.1} parent=23 // pred_check
          %p573 = pneg %p345
        $region70: #{transformer_decoder_forward.1} parent=23 // pred_check_branch
          %575 = sbr.rel (%p573) target = $region72
        $region71: #{transformer_decoder_forward.1} parent=23 // pred_region
          %p576 = scmp.lt.s32.totalorder %s35, 1
          %s577 = scalar_select %p576, %s35, 1
          %s578 = smul.addr %s577, 4
          %s579 = scalar_lea.vmem %s11, %s578
        $region72: #{transformer_decoder_forward.1} parent=23 // pred_fallthru
          _
      $region24: #{transformer_decoder_forward.1} parent=5 // pred_fallthru
        _
      %p580 = scmp.le.s32.totalorder 1, %s27
      %p581 = scmp.lt.s32.totalorder %s27, 5
      %p582 = pnand %p580, %p581
      %p583 = pneg %p582
      // Predicated region
      $region73: #{transformer_decoder_forward.1} parent=5 // pred_check
        _
      $region74: #{transformer_decoder_forward.1} parent=5 // pred_check_branch
        %585 = sbr.rel (%p582) target = $region76
      $region75: #{transformer_decoder_forward.1} parent=5 // pred_region
        %s586 = ssub.s32 %s27, 1
        %s587 = sand.u32 %s182, 1
        %s588 = scalar_lea.sflag [#allocation4], %s587
        %s589 = sand.u32 %s182, 1
        %s590 = smul.addr %s589, 8
        %s591 = scalar_lea.vmem [#allocation3], %s590
        // Predicated region
        $region77: #{transformer_decoder_forward.1} parent=75 // pred_check
          %p592 = pneg %p195
        $region78: #{transformer_decoder_forward.1} parent=75 // pred_check_branch
          %594 = sbr.rel (%p592) target = $region80
        $region79: #{transformer_decoder_forward.1} parent=75 // pred_region
          %595 = dma.done %s588, 128
        $region80: #{transformer_decoder_forward.1} parent=75 // pred_fallthru
          _
        %s596 = sand.u32 %s32, 1
        %s597 = scalar_lea.sflag [#allocation6], %s596
        %s598 = sand.u32 %s234, 1
        %s599 = scalar_lea.vmem [#allocation5], %s598
        // Predicated region
        $region81: #{transformer_decoder_forward.1} parent=75 // pred_check
          %p600 = pneg %p247
        $region82: #{transformer_decoder_forward.1} parent=75 // pred_check_branch
          %602 = sbr.rel (%p600) target = $region84
        $region83: #{transformer_decoder_forward.1} parent=75 // pred_region
          %603 = dma.done %s597, 16
        $region84: #{transformer_decoder_forward.1} parent=75 // pred_fallthru
          _
        %s604 = sand.u32 %s32, 1
        %s605 = scalar_lea.sflag [#allocation6], %s604
        %s606 = sand.u32 %s286, 1
        %s607 = scalar_lea.vmem [#allocation7], %s606
        // Predicated region
        $region85: #{transformer_decoder_forward.1} parent=75 // pred_check
          %p608 = pneg %p299
        $region86: #{transformer_decoder_forward.1} parent=75 // pred_check_branch
          %610 = sbr.rel (%p608) target = $region88
        $region87: #{transformer_decoder_forward.1} parent=75 // pred_region
          %611 = dma.done %s605, 16
        $region88: #{transformer_decoder_forward.1} parent=75 // pred_fallthru
          _
        // Predicated region
        $region89: #{transformer_decoder_forward.1} parent=75 // pred_check
          %p612 = pneg %p372
        $region90: #{transformer_decoder_forward.1} parent=75 // pred_check_branch
          %614 = sbr.rel (%p612) target = $region92
        $region91: #{transformer_decoder_forward.1} parent=75 // pred_region
          %615 = dma.done [#allocation9], 16
        $region92: #{transformer_decoder_forward.1} parent=75 // pred_fallthru
          _
        // Predicated region
        $region93: #{transformer_decoder_forward.1} parent=75 // pred_check
          %p616 = pneg %p393
        $region94: #{transformer_decoder_forward.1} parent=75 // pred_check_branch
          %618 = sbr.rel (%p616) target = $region96
        $region95: #{transformer_decoder_forward.1} parent=75 // pred_region
          %619 = dma.done [#allocation9], 16
        $region96: #{transformer_decoder_forward.1} parent=75 // pred_fallthru
          _
        %p620 = scmp.lt.s32.totalorder %s36, 1
        %s621 = scalar_select %p620, %s36, 1
        %s622 = smul.addr %s621, 8
        %s623 = scalar_lea.vmem %s0, %s622
        %p624 = pneg %p65
        %p625 = pneg %p62
        %p626 = scmp.lt.s32.totalorder %s36, 1
        %s627 = scalar_select %p626, %s36, 1
        %s628 = smul.addr %s627, 8
        %s629 = scalar_lea.vmem %s1, %s628
        %p630 = pneg %p91
        %p631 = pneg %p88
        %p632 = scmp.lt.s32.totalorder %s36, 1
        %s633 = scalar_select %p632, %s36, 1
        %s634 = smul.addr %s633, 2
        %s635 = smul.addr %s634, 8
        %s636 = scalar_lea.vmem %s2, %s635
        %p637 = pneg %p117
        %p638 = pneg %p114
        %p639 = scmp.lt.s32.totalorder %s36, 1
        %s640 = scalar_select %p639, %s36, 1
        %s641 = smul.addr %s640, 2
        %s642 = smul.addr %s641, 8
        %s643 = scalar_lea.vmem %s3, %s642
        %p644 = pneg %p143
        %p645 = pneg %p140
        %p646 = scmp.lt.s32.totalorder %s37, 1
        %s647 = scalar_select %p646, %s37, 1
        %s648 = smul.addr %s647, 32
        %s649 = smul.addr %s648, 4
        %s650 = scalar_lea.vmem %s4, %s649
        %p651 = pneg %p169
        %p652 = pneg %p166
        %s653 = sand.u32 %s182, 1
        %s654 = scalar_lea.sflag [#allocation4], %s653
        %s655 = sand.u32 %s182, 1
        %s656 = smul.addr %s655, 8
        %s657 = scalar_lea.vmem [#allocation3], %s656
        %p658 = pneg %p195
        %p659 = pneg %p192
        %p660 = scmp.lt.s32.totalorder %s37, 1
        %s661 = scalar_select %p660, %s37, 1
        %s662 = smul.addr %s661, 4
        %s663 = smul.addr %s662, 4
        %s664 = scalar_lea.vmem %s6, %s663
        %p665 = pneg %p221
        %p666 = pneg %p218
        %s667 = sand.u32 %s32, 1
        %s668 = scalar_lea.sflag [#allocation6], %s667
        %s669 = sand.u32 %s234, 1
        %s670 = scalar_lea.vmem [#allocation5], %s669
        %p671 = pneg %p247
        %p672 = pneg %p244
        %p673 = scmp.lt.s32.totalorder %s37, 1
        %s674 = scalar_select %p673, %s37, 1
        %s675 = smul.addr %s674, 8
        %s676 = smul.addr %s675, 4
        %s677 = scalar_lea.vmem %s8, %s676
        %p678 = pneg %p273
        %p679 = pneg %p270
        %s680 = sand.u32 %s32, 1
        %s681 = scalar_lea.sflag [#allocation6], %s680
        %s682 = sand.u32 %s286, 1
        %s683 = scalar_lea.vmem [#allocation7], %s682
        %p684 = pneg %p299
        %p685 = pneg %p296
        %p686 = scmp.lt.s32.totalorder %s37, 1
        %s687 = scalar_select %p686, %s37, 1
        %s688 = smul.addr %s687, 4
        %s689 = scalar_lea.vmem %s10, %s688
        %p690 = pneg %p325
        %p691 = pneg %p322
        %p692 = scmp.lt.s32.totalorder %s37, 1
        %s693 = scalar_select %p692, %s37, 1
        %s694 = smul.addr %s693, 4
        %s695 = scalar_lea.vmem %s11, %s694
        %p696 = pneg %p351
        %p697 = pneg %p348
        %p698 = pneg %p372
        %p699 = pneg %p369
        %p700 = pneg %p393
        %p701 = pneg %p390
        %p702 = pneg %p419
        %p703 = pneg %p416
        %p704 = scmp.lt.s32.totalorder %s36, 1
        %s705 = scalar_select %p704, %s36, 1
        %s706 = smul.addr %s705, 8
        %s707 = scalar_lea.vmem %s14, %s706
        %p708 = scmp.lt.s32.totalorder %s36, 1
        %s709 = scalar_select %p708, %s36, 1
        %s710 = smul.addr %s709, 8
        %s711 = scalar_lea.vmem %s0, %s710
        %p712 = scmp.lt.s32.totalorder %s36, 1
        %s713 = scalar_select %p712, %s36, 1
        %s714 = smul.addr %s713, 8
        %s715 = scalar_lea.vmem %s1, %s714
        %p716 = scmp.lt.s32.totalorder %s36, 1
        %s717 = scalar_select %p716, %s36, 1
        %s718 = smul.addr %s717, 2
        %s719 = smul.addr %s718, 8
        %s720 = scalar_lea.vmem %s2, %s719
        %p721 = scmp.lt.s32.totalorder %s36, 1
        %s722 = scalar_select %p721, %s36, 1
        %s723 = smul.addr %s722, 2
        %s724 = smul.addr %s723, 8
        %s725 = scalar_lea.vmem %s3, %s724
        %p726 = scmp.lt.s32.totalorder %s37, 1
        %s727 = scalar_select %p726, %s37, 1
        %s728 = smul.addr %s727, 32
        %s729 = smul.addr %s728, 4
        %s730 = scalar_lea.vmem %s4, %s729
        %p731 = scmp.lt.s32.totalorder %s37, 1
        %s732 = scalar_select %p731, %s37, 1
        %s733 = smul.addr %s732, 4
        %s734 = smul.addr %s733, 4
        %s735 = scalar_lea.vmem %s6, %s734
        %p736 = scmp.lt.s32.totalorder %s37, 1
        %s737 = scalar_select %p736, %s37, 1
        %s738 = smul.addr %s737, 8
        %s739 = smul.addr %s738, 4
        %s740 = scalar_lea.vmem %s8, %s739
        %p741 = scmp.lt.s32.totalorder %s37, 1
        %s742 = scalar_select %p741, %s37, 1
        %s743 = smul.addr %s742, 4
        %s744 = scalar_lea.vmem %s10, %s743
        %p745 = scmp.lt.s32.totalorder %s37, 1
        %s746 = scalar_select %p745, %s37, 1
        %s747 = smul.addr %s746, 4
        %s748 = scalar_lea.vmem %s11, %s747
        %p749 = scmp.lt.s32.totalorder %s36, 1
        %s750 = scalar_select %p749, %s36, 1
        %s751 = smul.addr %s750, 8
        %s752 = scalar_lea.vmem %s14, %s751
        %p754 = scmp.eq.s32.totalorder %s37, 0
        // Predicated region
        $region97: #{transformer_decoder_forward.1} parent=75 // pred_check
          %p755 = pneg %p754
        $region98: #{transformer_decoder_forward.1} parent=75 // pred_check_branch
          %757 = sbr.rel (%p755) target = $region100
        $region99: #{transformer_decoder_forward.1} parent=75 // pred_region
          %v758 = vld [vmem:[%s711] sm:$0xff]
          %vm759 = vcmask 261120
          %760 = vst.msk [vmem:[#allocation2] sm:$0xff] %vm759, %v758
        $region100: #{transformer_decoder_forward.1} parent=75 // pred_fallthru
          _
        %v761 = vld [vmem:[#allocation2] sm:$0xff]
        %v762 = vld [vmem:[%s715] sm:$0xff]
        %v763 = vld [vmem:[%s720] sm:$0xff]
        %v764 = vld [vmem:[%s720 + $0x8] sm:$0xff]
        %v765 = vld [vmem:[%s725] sm:$0xff]
        %v766 = vld [vmem:[%s725 + $0x8] sm:$0xff]
        %v767 = vld [vmem:[%s591] sm:$0xff]
        %v768 = vld [vmem:[%s744] sm:$0x7]
        %v769 = vld [vmem:[%s748] sm:$0x7]
        %v770 = vadd.f32 %v761, %v762
        %v771 = vpack.c.bf16 %v770, %v770
        %v772 = vld [vmem:[%s730] sm:$0xf]
        %v773 = vld [vmem:[%s730 + $0x4] sm:$0xf]
        %v774 = vld [vmem:[%s730 + $0x8] sm:$0xf]
        %v775 = vld [vmem:[%s730 + $0xc] sm:$0xf]
        %v776 = vlaneseq
        %v777 = vshrl.u32 %v776, 7
        %v778 = vsub.s32 0, %v777
        %v779 = vrot.slane %v767, %v778
        %v784 = vunpack.c.l.b16 %v772
        %v785 = vunpack.c.l.b16 %v773
        %v786 = vunpack.c.l.b16 %v774
        %v787 = vunpack.c.l.b16 %v775
        %v788 = vpack.c.b16 %v785, %v784
        %v789 = vpack.c.b16 %v787, %v786
        %vm792 = vcmask 261120
        %v794 = vsel %vm792, %v771, 0
        %796 = vmatprep.subr.bf16.mxu0 0
        %797 = vmatpush1.bf16.msra.mxu0 %v788
        %798 = vmatprep.subr.bf16.mxu0 0
        %799 = vmatpush1.bf16.msra.mxu0 %v789
        %800 = vmatprep.subr.bf16.mxu0 0
        %801 = vmatpush1.bf16.msra.mxu0 0
        %802 = vmatprep.subr.bf16.mxu0 0
        %803 = vmatpush1.bf16.msra.mxu0 0
        %804 = vmatprep.subr.bf16.mxu0 0
        %805 = vmatpush1.bf16.msra.mxu0 0
        %806 = vmatprep.subr.bf16.mxu0 0
        %807 = vmatpush1.bf16.msra.mxu0 0
        %808 = vmatprep.subr.bf16.mxu0 0
        %809 = vmatpush1.bf16.msra.mxu0 0
        %810 = vmatprep.subr.bf16.mxu0 0
        %811 = vmatpush1.bf16.msra.mxu0 0
        %812 = vmatprep.subr.bf16.mxu0 0
        %813 = vmatpush1.bf16.msra.mxu0 0
        %814 = vmatprep.subr.bf16.mxu0 0
        %815 = vmatpush1.bf16.msra.mxu0 0
        %816 = vmatprep.subr.bf16.mxu0 0
        %817 = vmatpush1.bf16.msra.mxu0 0
        %818 = vmatprep.subr.bf16.mxu0 0
        %819 = vmatpush1.bf16.msra.mxu0 0
        %820 = vmatprep.subr.bf16.mxu0 0
        %821 = vmatpush1.bf16.msra.mxu0 0
        %822 = vmatprep.subr.bf16.mxu0 0
        %823 = vmatpush1.bf16.msra.mxu0 0
        %824 = vmatprep.subr.bf16.mxu0 0
        %825 = vmatpush1.bf16.msra.mxu0 0
        %826 = vmatprep.subr.bf16.mxu0 0
        %827 = vmatpush1.bf16.msra.mxu0 0
        %828 = vmatprep.mubr.bf16.mxu0 0
        %829 = vmatmul.mubr.bf16.gmra.mrb[0].mxu0 %v794
        %v830 = vpop.f32.mrb[0].mxu0
        %v831 = vadd.f32 %v779, %v830
        %v832 = vpop.f32.mrb[0].mxu0
        %v833 = vpop.f32.mrb[0].mxu0
        %v834 = vpop.f32.mrb[0].mxu0
        %835 = vdwg.mxu0
        %s836 = scalar_lea.vmem %s730, 16
        %v837 = vld [vmem:[%s836] sm:$0xf]
        %v838 = vld [vmem:[%s836 + $0x4] sm:$0xf]
        %v839 = vld [vmem:[%s836 + $0x8] sm:$0xf]
        %v840 = vld [vmem:[%s836 + $0xc] sm:$0xf]
        %v841 = vlaneseq
        %v842 = vshrl.u32 %v841, 7
        %v843 = vsub.s32 1, %v842
        %v844 = vrot.slane %v767, %v843
        %v849 = vunpack.c.l.b16 %v837
        %v850 = vunpack.c.l.b16 %v838
        %v851 = vunpack.c.l.b16 %v839
        %v852 = vunpack.c.l.b16 %v840
        %v853 = vpack.c.b16 %v850, %v849
        %v854 = vpack.c.b16 %v852, %v851
        %857 = vmatprep.subr.bf16.mxu0 0
        %858 = vmatpush1.bf16.msra.mxu0 %v853
        %859 = vmatprep.subr.bf16.mxu0 0
        %860 = vmatpush1.bf16.msra.mxu0 %v854
        %861 = vmatprep.subr.bf16.mxu0 0
        %862 = vmatpush1.bf16.msra.mxu0 0
        %863 = vmatprep.subr.bf16.mxu0 0
        %864 = vmatpush1.bf16.msra.mxu0 0
        %865 = vmatprep.subr.bf16.mxu0 0
        %866 = vmatpush1.bf16.msra.mxu0 0
        %867 = vmatprep.subr.bf16.mxu0 0
        %868 = vmatpush1.bf16.msra.mxu0 0
        %869 = vmatprep.subr.bf16.mxu0 0
        %870 = vmatpush1.bf16.msra.mxu0 0
        %871 = vmatprep.subr.bf16.mxu0 0
        %872 = vmatpush1.bf16.msra.mxu0 0
        %873 = vmatprep.subr.bf16.mxu0 0
        %874 = vmatpush1.bf16.msra.mxu0 0
        %875 = vmatprep.subr.bf16.mxu0 0
        %876 = vmatpush1.bf16.msra.mxu0 0
        %877 = vmatprep.subr.bf16.mxu0 0
        %878 = vmatpush1.bf16.msra.mxu0 0
        %879 = vmatprep.subr.bf16.mxu0 0
        %880 = vmatpush1.bf16.msra.mxu0 0
        %881 = vmatprep.subr.bf16.mxu0 0
        %882 = vmatpush1.bf16.msra.mxu0 0
        %883 = vmatprep.subr.bf16.mxu0 0
        %884 = vmatpush1.bf16.msra.mxu0 0
        %885 = vmatprep.subr.bf16.mxu0 0
        %886 = vmatpush1.bf16.msra.mxu0 0
        %887 = vmatprep.subr.bf16.mxu0 0
        %888 = vmatpush1.bf16.msra.mxu0 0
        %889 = vmatprep.mubr.bf16.mxu0 0
        %890 = vmatmul.mubr.bf16.gmra.mrb[0].mxu0 %v794
        %v891 = vpop.f32.mrb[0].mxu0
        %v892 = vadd.f32 %v844, %v891
        %v893 = vpop.f32.mrb[0].mxu0
        %v894 = vpop.f32.mrb[0].mxu0
        %v895 = vpop.f32.mrb[0].mxu0
        %896 = vdwg.mxu0
        %v897 = vpack.c.bf16 %v761, %v761
        %s898 = scalar_lea.vmem %s730, 32
        %v899 = vld [vmem:[%s898] sm:$0xf]
        %v900 = vld [vmem:[%s898 + $0x4] sm:$0xf]
        %v901 = vld [vmem:[%s898 + $0x8] sm:$0xf]
        %v902 = vld [vmem:[%s898 + $0xc] sm:$0xf]
        %v903 = vlaneseq
        %v904 = vshrl.u32 %v903, 7
        %v905 = vsub.s32 2, %v904
        %v906 = vrot.slane %v767, %v905
        %v911 = vunpack.c.l.b16 %v899
        %v912 = vunpack.c.l.b16 %v900
        %v913 = vunpack.c.l.b16 %v901
        %v914 = vunpack.c.l.b16 %v902
        %v915 = vpack.c.b16 %v912, %v911
        %v916 = vpack.c.b16 %v914, %v913
        %v920 = vsel %vm792, %v897, 0
        %922 = vmatprep.subr.bf16.mxu0 0
        %923 = vmatpush1.bf16.msra.mxu0 %v915
        %924 = vmatprep.subr.bf16.mxu0 0
        %925 = vmatpush1.bf16.msra.mxu0 %v916
        %926 = vmatprep.subr.bf16.mxu0 0
        %927 = vmatpush1.bf16.msra.mxu0 0
        %928 = vmatprep.subr.bf16.mxu0 0
        %929 = vmatpush1.bf16.msra.mxu0 0
        %930 = vmatprep.subr.bf16.mxu0 0
        %931 = vmatpush1.bf16.msra.mxu0 0
        %932 = vmatprep.subr.bf16.mxu0 0
        %933 = vmatpush1.bf16.msra.mxu0 0
        %934 = vmatprep.subr.bf16.mxu0 0
        %935 = vmatpush1.bf16.msra.mxu0 0
        %936 = vmatprep.subr.bf16.mxu0 0
        %937 = vmatpush1.bf16.msra.mxu0 0
        %938 = vmatprep.subr.bf16.mxu0 0
        %939 = vmatpush1.bf16.msra.mxu0 0
        %940 = vmatprep.subr.bf16.mxu0 0
        %941 = vmatpush1.bf16.msra.mxu0 0
        %942 = vmatprep.subr.bf16.mxu0 0
        %943 = vmatpush1.bf16.msra.mxu0 0
        %944 = vmatprep.subr.bf16.mxu0 0
        %945 = vmatpush1.bf16.msra.mxu0 0
        %946 = vmatprep.subr.bf16.mxu0 0
        %947 = vmatpush1.bf16.msra.mxu0 0
        %948 = vmatprep.subr.bf16.mxu0 0
        %949 = vmatpush1.bf16.msra.mxu0 0
        %950 = vmatprep.subr.bf16.mxu0 0
        %951 = vmatpush1.bf16.msra.mxu0 0
        %952 = vmatprep.subr.bf16.mxu0 0
        %953 = vmatpush1.bf16.msra.mxu0 0
        %954 = vmatprep.mubr.bf16.mxu0 0
        %955 = vmatmul.mubr.bf16.gmra.mrb[0].mxu0 %v920
        %v956 = vpop.f32.mrb[0].mxu0
        %v957 = vadd.f32 %v906, %v956
        %v958 = vpop.f32.mrb[0].mxu0
        %v959 = vpop.f32.mrb[0].mxu0
        %v960 = vpop.f32.mrb[0].mxu0
        %961 = vdwg.mxu0
        %v962 = vmul.f32 %v831, 0.35355338
        %v963 = vpack.c.bf16 %v962, %v962
        %v964 = vpack.c.bf16 %v892, %v892
        %vm965 = vcmask 64512
        %v967 = vsel %vm965, %v963, 0
        %v970 = vsel %vm965, %v964, 0
        %972 = vmatprep.subr.bf16.mxu0 0
        %973 = vmatpush1.bf16.xpose.msra.mxu0 %v970
        %974 = vmatprep.subr.bf16.mxu0 0
        %975 = vmatpush1.bf16.xpose.msra.mxu0 0
        %976 = vmatprep.subr.bf16.mxu0 0
        %977 = vmatpush1.bf16.xpose.msra.mxu0 0
        %978 = vmatprep.subr.bf16.mxu0 0
        %979 = vmatpush1.bf16.xpose.msra.mxu0 0
        %980 = vmatprep.subr.bf16.mxu0 0
        %981 = vmatpush1.bf16.xpose.msra.mxu0 0
        %982 = vmatprep.subr.bf16.mxu0 0
        %983 = vmatpush1.bf16.xpose.msra.mxu0 0
        %984 = vmatprep.subr.bf16.mxu0 0
        %985 = vmatpush1.bf16.xpose.msra.mxu0 0
        %986 = vmatprep.subr.bf16.mxu0 0
        %987 = vmatpush1.bf16.xpose.msra.mxu0 0
        %988 = vmatprep.subr.bf16.mxu0 0
        %989 = vmatpush1.bf16.xpose.msra.mxu0 0
        %990 = vmatprep.subr.bf16.mxu0 0
        %991 = vmatpush1.bf16.xpose.msra.mxu0 0
        %992 = vmatprep.subr.bf16.mxu0 0
        %993 = vmatpush1.bf16.xpose.msra.mxu0 0
        %994 = vmatprep.subr.bf16.mxu0 0
        %995 = vmatpush1.bf16.xpose.msra.mxu0 0
        %996 = vmatprep.subr.bf16.mxu0 0
        %997 = vmatpush1.bf16.xpose.msra.mxu0 0
        %998 = vmatprep.subr.bf16.mxu0 0
        %999 = vmatpush1.bf16.xpose.msra.mxu0 0
        %1000 = vmatprep.subr.bf16.mxu0 0
        %1001 = vmatpush1.bf16.xpose.msra.mxu0 0
        %1002 = vmatprep.subr.bf16.mxu0 0
        %1003 = vmatpush1.bf16.xpose.msra.mxu0 0
        %1004 = vmatprep.mubr.bf16.mxu0 0
        %1005 = vmatmul.mubr.bf16.gmra.mrb[0].mxu0 %v967
        %v1006 = vpop.f32.mrb[0].mxu0
        %v1007 = vadd.f32 0.0, %v1006
        %v1008 = vpop.f32.mrb[0].mxu0
        %v1009 = vpop.f32.mrb[0].mxu0
        %v1010 = vpop.f32.mrb[0].mxu0
        %1011 = vdwg.mxu0
        %v1012 = vsel %vm965, %v1007, -inf
        %1013 = vmax.xlane.f32.xlu0 %v1012
        %v1014 = vpop.xlane.xlu0 %1013
        %v1015 = vsub.f32 %v1007, %v1014
        %v1016 = vmul.f32 %v1015, 1.442695
        %v1017 = vpow.pop %v1016
        %v1018 = vsel %vm965, %v1017, 0.0
        %1019 = vadd.xlane.f32.xlu0 %v1018
        %v1020 = vpop.xlane.xlu0 %1019
        %v1021 = vpack.c.bf16 %v1017, %v1017
        %v1022 = vpack.c.bf16 %v957, %v957
        %v1024 = vsel %vm965, %v1021, 0
        %vm1026 = vcmask 1043456
        %v1028 = vsel %vm1026, %v1022, 0
        %1030 = vmatprep.subr.bf16.mxu0 0
        %1031 = vmatpush1.bf16.msra.mxu0 %v1028
        %1032 = vmatprep.subr.bf16.mxu0 0
        %1033 = vmatpush1.bf16.msra.mxu0 0
        %1034 = vmatprep.subr.bf16.mxu0 0
        %1035 = vmatpush1.bf16.msra.mxu0 0
        %1036 = vmatprep.subr.bf16.mxu0 0
        %1037 = vmatpush1.bf16.msra.mxu0 0
        %1038 = vmatprep.subr.bf16.mxu0 0
        %1039 = vmatpush1.bf16.msra.mxu0 0
        %1040 = vmatprep.subr.bf16.mxu0 0
        %1041 = vmatpush1.bf16.msra.mxu0 0
        %1042 = vmatprep.subr.bf16.mxu0 0
        %1043 = vmatpush1.bf16.msra.mxu0 0
        %1044 = vmatprep.subr.bf16.mxu0 0
        %1045 = vmatpush1.bf16.msra.mxu0 0
        %1046 = vmatprep.subr.bf16.mxu0 0
        %1047 = vmatpush1.bf16.msra.mxu0 0
        %1048 = vmatprep.subr.bf16.mxu0 0
        %1049 = vmatpush1.bf16.msra.mxu0 0
        %1050 = vmatprep.subr.bf16.mxu0 0
        %1051 = vmatpush1.bf16.msra.mxu0 0
        %1052 = vmatprep.subr.bf16.mxu0 0
        %1053 = vmatpush1.bf16.msra.mxu0 0
        %1054 = vmatprep.subr.bf16.mxu0 0
        %1055 = vmatpush1.bf16.msra.mxu0 0
        %1056 = vmatprep.subr.bf16.mxu0 0
        %1057 = vmatpush1.bf16.msra.mxu0 0
        %1058 = vmatprep.subr.bf16.mxu0 0
        %1059 = vmatpush1.bf16.msra.mxu0 0
        %1060 = vmatprep.subr.bf16.mxu0 0
        %1061 = vmatpush1.bf16.msra.mxu0 0
        %1062 = vmatprep.mubr.bf16.mxu0 0
        %1063 = vmatmul.mubr.bf16.gmra.mrb[0].mxu0 %v1024
        %v1064 = vpop.f32.mrb[0].mxu0
        %v1065 = vadd.f32 0.0, %v1064
        %v1066 = vpop.f32.mrb[0].mxu0
        %v1067 = vpop.f32.mrb[0].mxu0
        %v1068 = vpop.f32.mrb[0].mxu0
        %1069 = vdwg.mxu0
        %v1070 = vrcp.pop %v1020
        %v1071 = vmul.f32 %v1065, %v1070
        %v1072 = vpack.c.bf16 %v1071, %v1071
        %1074 = vrot.lane.b32.xlu0 %v963, 120
        %v1075 = vpop.permute.xlu0 %1074
        %1077 = vrot.lane.b32.xlu0 %v964, 120
        %v1078 = vpop.permute.xlu0 %1077
        %v1080 = vsel %vm965, %v1075, 0
        %v1083 = vsel %vm965, %v1078, 0
        %1085 = vmatprep.subr.bf16.mxu0 0
        %1086 = vmatpush1.bf16.xpose.msra.mxu0 %v1083
        %1087 = vmatprep.subr.bf16.mxu0 0
        %1088 = vmatpush1.bf16.xpose.msra.mxu0 0
        %1089 = vmatprep.subr.bf16.mxu0 0
        %1090 = vmatpush1.bf16.xpose.msra.mxu0 0
        %1091 = vmatprep.subr.bf16.mxu0 0
        %1092 = vmatpush1.bf16.xpose.msra.mxu0 0
        %1093 = vmatprep.subr.bf16.mxu0 0
        %1094 = vmatpush1.bf16.xpose.msra.mxu0 0
        %1095 = vmatprep.subr.bf16.mxu0 0
        %1096 = vmatpush1.bf16.xpose.msra.mxu0 0
        %1097 = vmatprep.subr.bf16.mxu0 0
        %1098 = vmatpush1.bf16.xpose.msra.mxu0 0
        %1099 = vmatprep.subr.bf16.mxu0 0
        %1100 = vmatpush1.bf16.xpose.msra.mxu0 0
        %1101 = vmatprep.subr.bf16.mxu0 0
        %1102 = vmatpush1.bf16.xpose.msra.mxu0 0
        %1103 = vmatprep.subr.bf16.mxu0 0
        %1104 = vmatpush1.bf16.xpose.msra.mxu0 0
        %1105 = vmatprep.subr.bf16.mxu0 0
        %1106 = vmatpush1.bf16.xpose.msra.mxu0 0
        %1107 = vmatprep.subr.bf16.mxu0 0
        %1108 = vmatpush1.bf16.xpose.msra.mxu0 0
        %1109 = vmatprep.subr.bf16.mxu0 0
        %1110 = vmatpush1.bf16.xpose.msra.mxu0 0
        %1111 = vmatprep.subr.bf16.mxu0 0
        %1112 = vmatpush1.bf16.xpose.msra.mxu0 0
        %1113 = vmatprep.subr.bf16.mxu0 0
        %1114 = vmatpush1.bf16.xpose.msra.mxu0 0
        %1115 = vmatprep.subr.bf16.mxu0 0
        %1116 = vmatpush1.bf16.xpose.msra.mxu0 0
        %1117 = vmatprep.mubr.bf16.mxu0 0
        %1118 = vmatmul.mubr.bf16.gmra.mrb[0].mxu0 %v1080
        %v1119 = vpop.f32.mrb[0].mxu0
        %v1120 = vadd.f32 0.0, %v1119
        %v1121 = vpop.f32.mrb[0].mxu0
        %v1122 = vpop.f32.mrb[0].mxu0
        %v1123 = vpop.f32.mrb[0].mxu0
        %1124 = vdwg.mxu0
        %v1125 = vsel %vm965, %v1120, -inf
        %1126 = vmax.xlane.f32.xlu0 %v1125
        %v1127 = vpop.xlane.xlu0 %1126
        %v1128 = vsub.f32 %v1120, %v1127
        %v1129 = vmul.f32 %v1128, 1.442695
        %v1130 = vpow.pop %v1129
        %v1131 = vsel %vm965, %v1130, 0.0
        %1132 = vadd.xlane.f32.xlu0 %v1131
        %v1133 = vpop.xlane.xlu0 %1132
        %v1134 = vpack.c.bf16 %v1130, %v1130
        %1136 = vrot.lane.b32.xlu0 %v1022, 120
        %v1137 = vpop.permute.xlu0 %1136
        %v1139 = vsel %vm965, %v1134, 0
        %v1142 = vsel %vm1026, %v1137, 0
        %1144 = vmatprep.subr.bf16.mxu0 0
        %1145 = vmatpush1.bf16.msra.mxu0 %v1142
        %1146 = vmatprep.subr.bf16.mxu0 0
        %1147 = vmatpush1.bf16.msra.mxu0 0
        %1148 = vmatprep.subr.bf16.mxu0 0
        %1149 = vmatpush1.bf16.msra.mxu0 0
        %1150 = vmatprep.subr.bf16.mxu0 0
        %1151 = vmatpush1.bf16.msra.mxu0 0
        %1152 = vmatprep.subr.bf16.mxu0 0
        %1153 = vmatpush1.bf16.msra.mxu0 0
        %1154 = vmatprep.subr.bf16.mxu0 0
        %1155 = vmatpush1.bf16.msra.mxu0 0
        %1156 = vmatprep.subr.bf16.mxu0 0
        %1157 = vmatpush1.bf16.msra.mxu0 0
        %1158 = vmatprep.subr.bf16.mxu0 0
        %1159 = vmatpush1.bf16.msra.mxu0 0
        %1160 = vmatprep.subr.bf16.mxu0 0
        %1161 = vmatpush1.bf16.msra.mxu0 0
        %1162 = vmatprep.subr.bf16.mxu0 0
        %1163 = vmatpush1.bf16.msra.mxu0 0
        %1164 = vmatprep.subr.bf16.mxu0 0
        %1165 = vmatpush1.bf16.msra.mxu0 0
        %1166 = vmatprep.subr.bf16.mxu0 0
        %1167 = vmatpush1.bf16.msra.mxu0 0
        %1168 = vmatprep.subr.bf16.mxu0 0
        %1169 = vmatpush1.bf16.msra.mxu0 0
        %1170 = vmatprep.subr.bf16.mxu0 0
        %1171 = vmatpush1.bf16.msra.mxu0 0
        %1172 = vmatprep.subr.bf16.mxu0 0
        %1173 = vmatpush1.bf16.msra.mxu0 0
        %1174 = vmatprep.subr.bf16.mxu0 0
        %1175 = vmatpush1.bf16.msra.mxu0 0
        %1176 = vmatprep.mubr.bf16.mxu0 0
        %1177 = vmatmul.mubr.bf16.gmra.mrb[0].mxu0 %v1139
        %v1178 = vpop.f32.mrb[0].mxu0
        %v1179 = vadd.f32 0.0, %v1178
        %v1180 = vpop.f32.mrb[0].mxu0
        %v1181 = vpop.f32.mrb[0].mxu0
        %v1182 = vpop.f32.mrb[0].mxu0
        %1183 = vdwg.mxu0
        %v1184 = vrcp.pop %v1133
        %v1185 = vmul.f32 %v1179, %v1184
        %v1186 = vpack.c.bf16 %v1185, %v1185
        %1187 = vrot.lane.b32.xlu0 %v963, 112
        %v1188 = vpop.permute.xlu0 %1187
        %1189 = vrot.lane.b32.xlu0 %v964, 112
        %v1190 = vpop.permute.xlu0 %1189
        %v1192 = vsel %vm965, %v1188, 0
        %v1195 = vsel %vm965, %v1190, 0
        %1197 = vmatprep.subr.bf16.mxu0 0
        %1198 = vmatpush1.bf16.xpose.msra.mxu0 %v1195
        %1199 = vmatprep.subr.bf16.mxu0 0
        %1200 = vmatpush1.bf16.xpose.msra.mxu0 0
        %1201 = vmatprep.subr.bf16.mxu0 0
        %1202 = vmatpush1.bf16.xpose.msra.mxu0 0
        %1203 = vmatprep.subr.bf16.mxu0 0
        %1204 = vmatpush1.bf16.xpose.msra.mxu0 0
        %1205 = vmatprep.subr.bf16.mxu0 0
        %1206 = vmatpush1.bf16.xpose.msra.mxu0 0
        %1207 = vmatprep.subr.bf16.mxu0 0
        %1208 = vmatpush1.bf16.xpose.msra.mxu0 0
        %1209 = vmatprep.subr.bf16.mxu0 0
        %1210 = vmatpush1.bf16.xpose.msra.mxu0 0
        %1211 = vmatprep.subr.bf16.mxu0 0
        %1212 = vmatpush1.bf16.xpose.msra.mxu0 0
        %1213 = vmatprep.subr.bf16.mxu0 0
        %1214 = vmatpush1.bf16.xpose.msra.mxu0 0
        %1215 = vmatprep.subr.bf16.mxu0 0
        %1216 = vmatpush1.bf16.xpose.msra.mxu0 0
        %1217 = vmatprep.subr.bf16.mxu0 0
        %1218 = vmatpush1.bf16.xpose.msra.mxu0 0
        %1219 = vmatprep.subr.bf16.mxu0 0
        %1220 = vmatpush1.bf16.xpose.msra.mxu0 0
        %1221 = vmatprep.subr.bf16.mxu0 0
        %1222 = vmatpush1.bf16.xpose.msra.mxu0 0
        %1223 = vmatprep.subr.bf16.mxu0 0
        %1224 = vmatpush1.bf16.xpose.msra.mxu0 0
        %1225 = vmatprep.subr.bf16.mxu0 0
        %1226 = vmatpush1.bf16.xpose.msra.mxu0 0
        %1227 = vmatprep.subr.bf16.mxu0 0
        %1228 = vmatpush1.bf16.xpose.msra.mxu0 0
        %1229 = vmatprep.mubr.bf16.mxu0 0
        %1230 = vmatmul.mubr.bf16.gmra.mrb[0].mxu0 %v1192
        %v1231 = vpop.f32.mrb[0].mxu0
        %v1232 = vadd.f32 0.0, %v1231
        %v1233 = vpop.f32.mrb[0].mxu0
        %v1234 = vpop.f32.mrb[0].mxu0
        %v1235 = vpop.f32.mrb[0].mxu0
        %1236 = vdwg.mxu0
        %v1237 = vsel %vm965, %v1232, -inf
        %1238 = vmax.xlane.f32.xlu0 %v1237
        %v1239 = vpop.xlane.xlu0 %1238
        %v1240 = vsub.f32 %v1232, %v1239
        %v1241 = vmul.f32 %v1240, 1.442695
        %v1242 = vpow.pop %v1241
        %v1243 = vsel %vm965, %v1242, 0.0
        %1244 = vadd.xlane.f32.xlu0 %v1243
        %v1245 = vpop.xlane.xlu0 %1244
        %v1246 = vpack.c.bf16 %v1242, %v1242
        %1247 = vrot.lane.b32.xlu0 %v1022, 112
        %v1248 = vpop.permute.xlu0 %1247
        %v1250 = vsel %vm965, %v1246, 0
        %v1253 = vsel %vm1026, %v1248, 0
        %1255 = vmatprep.subr.bf16.mxu0 0
        %1256 = vmatpush1.bf16.msra.mxu0 %v1253
        %1257 = vmatprep.subr.bf16.mxu0 0
        %1258 = vmatpush1.bf16.msra.mxu0 0
        %1259 = vmatprep.subr.bf16.mxu0 0
        %1260 = vmatpush1.bf16.msra.mxu0 0
        %1261 = vmatprep.subr.bf16.mxu0 0
        %1262 = vmatpush1.bf16.msra.mxu0 0
        %1263 = vmatprep.subr.bf16.mxu0 0
        %1264 = vmatpush1.bf16.msra.mxu0 0
        %1265 = vmatprep.subr.bf16.mxu0 0
        %1266 = vmatpush1.bf16.msra.mxu0 0
        %1267 = vmatprep.subr.bf16.mxu0 0
        %1268 = vmatpush1.bf16.msra.mxu0 0
        %1269 = vmatprep.subr.bf16.mxu0 0
        %1270 = vmatpush1.bf16.msra.mxu0 0
        %1271 = vmatprep.subr.bf16.mxu0 0
        %1272 = vmatpush1.bf16.msra.mxu0 0
        %1273 = vmatprep.subr.bf16.mxu0 0
        %1274 = vmatpush1.bf16.msra.mxu0 0
        %1275 = vmatprep.subr.bf16.mxu0 0
        %1276 = vmatpush1.bf16.msra.mxu0 0
        %1277 = vmatprep.subr.bf16.mxu0 0
        %1278 = vmatpush1.bf16.msra.mxu0 0
        %1279 = vmatprep.subr.bf16.mxu0 0
        %1280 = vmatpush1.bf16.msra.mxu0 0
        %1281 = vmatprep.subr.bf16.mxu0 0
        %1282 = vmatpush1.bf16.msra.mxu0 0
        %1283 = vmatprep.subr.bf16.mxu0 0
        %1284 = vmatpush1.bf16.msra.mxu0 0
        %1285 = vmatprep.subr.bf16.mxu0 0
        %1286 = vmatpush1.bf16.msra.mxu0 0
        %1287 = vmatprep.mubr.bf16.mxu0 0
        %1288 = vmatmul.mubr.bf16.gmra.mrb[0].mxu0 %v1250
        %v1289 = vpop.f32.mrb[0].mxu0
        %v1290 = vadd.f32 0.0, %v1289
        %v1291 = vpop.f32.mrb[0].mxu0
        %v1292 = vpop.f32.mrb[0].mxu0
        %v1293 = vpop.f32.mrb[0].mxu0
        %1294 = vdwg.mxu0
        %v1295 = vrcp.pop %v1245
        %v1296 = vmul.f32 %v1290, %v1295
        %v1297 = vpack.c.bf16 %v1296, %v1296
        %1298 = vrot.lane.b32.xlu0 %v963, 104
        %v1299 = vpop.permute.xlu0 %1298
        %1300 = vrot.lane.b32.xlu0 %v964, 104
        %v1301 = vpop.permute.xlu0 %1300
        %v1303 = vsel %vm965, %v1299, 0
        %v1306 = vsel %vm965, %v1301, 0
        %1308 = vmatprep.subr.bf16.mxu0 0
        %1309 = vmatpush1.bf16.xpose.msra.mxu0 %v1306
        %1310 = vmatprep.subr.bf16.mxu0 0
        %1311 = vmatpush1.bf16.xpose.msra.mxu0 0
        %1312 = vmatprep.subr.bf16.mxu0 0
        %1313 = vmatpush1.bf16.xpose.msra.mxu0 0
        %1314 = vmatprep.subr.bf16.mxu0 0
        %1315 = vmatpush1.bf16.xpose.msra.mxu0 0
        %1316 = vmatprep.subr.bf16.mxu0 0
        %1317 = vmatpush1.bf16.xpose.msra.mxu0 0
        %1318 = vmatprep.subr.bf16.mxu0 0
        %1319 = vmatpush1.bf16.xpose.msra.mxu0 0
        %1320 = vmatprep.subr.bf16.mxu0 0
        %1321 = vmatpush1.bf16.xpose.msra.mxu0 0
        %1322 = vmatprep.subr.bf16.mxu0 0
        %1323 = vmatpush1.bf16.xpose.msra.mxu0 0
        %1324 = vmatprep.subr.bf16.mxu0 0
        %1325 = vmatpush1.bf16.xpose.msra.mxu0 0
        %1326 = vmatprep.subr.bf16.mxu0 0
        %1327 = vmatpush1.bf16.xpose.msra.mxu0 0
        %1328 = vmatprep.subr.bf16.mxu0 0
        %1329 = vmatpush1.bf16.xpose.msra.mxu0 0
        %1330 = vmatprep.subr.bf16.mxu0 0
        %1331 = vmatpush1.bf16.xpose.msra.mxu0 0
        %1332 = vmatprep.subr.bf16.mxu0 0
        %1333 = vmatpush1.bf16.xpose.msra.mxu0 0
        %1334 = vmatprep.subr.bf16.mxu0 0
        %1335 = vmatpush1.bf16.xpose.msra.mxu0 0
        %1336 = vmatprep.subr.bf16.mxu0 0
        %1337 = vmatpush1.bf16.xpose.msra.mxu0 0
        %1338 = vmatprep.subr.bf16.mxu0 0
        %1339 = vmatpush1.bf16.xpose.msra.mxu0 0
        %1340 = vmatprep.mubr.bf16.mxu0 0
        %1341 = vmatmul.mubr.bf16.gmra.mrb[0].mxu0 %v1303
        %v1342 = vpop.f32.mrb[0].mxu0
        %v1343 = vadd.f32 0.0, %v1342
        %v1344 = vpop.f32.mrb[0].mxu0
        %v1345 = vpop.f32.mrb[0].mxu0
        %v1346 = vpop.f32.mrb[0].mxu0
        %1347 = vdwg.mxu0
        %v1348 = vsel %vm965, %v1343, -inf
        %1349 = vmax.xlane.f32.xlu0 %v1348
        %v1350 = vpop.xlane.xlu0 %1349
        %v1351 = vsub.f32 %v1343, %v1350
        %v1352 = vmul.f32 %v1351, 1.442695
        %v1353 = vpow.pop %v1352
        %v1354 = vsel %vm965, %v1353, 0.0
        %1355 = vadd.xlane.f32.xlu0 %v1354
        %v1356 = vpop.xlane.xlu0 %1355
        %v1357 = vpack.c.bf16 %v1353, %v1353
        %1358 = vrot.lane.b32.xlu0 %v1022, 104
        %v1359 = vpop.permute.xlu0 %1358
        %v1361 = vsel %vm965, %v1357, 0
        %v1364 = vsel %vm1026, %v1359, 0
        %1366 = vmatprep.subr.bf16.mxu0 0
        %1367 = vmatpush1.bf16.msra.mxu0 %v1364
        %1368 = vmatprep.subr.bf16.mxu0 0
        %1369 = vmatpush1.bf16.msra.mxu0 0
        %1370 = vmatprep.subr.bf16.mxu0 0
        %1371 = vmatpush1.bf16.msra.mxu0 0
        %1372 = vmatprep.subr.bf16.mxu0 0
        %1373 = vmatpush1.bf16.msra.mxu0 0
        %1374 = vmatprep.subr.bf16.mxu0 0
        %1375 = vmatpush1.bf16.msra.mxu0 0
        %1376 = vmatprep.subr.bf16.mxu0 0
        %1377 = vmatpush1.bf16.msra.mxu0 0
        %1378 = vmatprep.subr.bf16.mxu0 0
        %1379 = vmatpush1.bf16.msra.mxu0 0
        %1380 = vmatprep.subr.bf16.mxu0 0
        %1381 = vmatpush1.bf16.msra.mxu0 0
        %1382 = vmatprep.subr.bf16.mxu0 0
        %1383 = vmatpush1.bf16.msra.mxu0 0
        %1384 = vmatprep.subr.bf16.mxu0 0
        %1385 = vmatpush1.bf16.msra.mxu0 0
        %1386 = vmatprep.subr.bf16.mxu0 0
        %1387 = vmatpush1.bf16.msra.mxu0 0
        %1388 = vmatprep.subr.bf16.mxu0 0
        %1389 = vmatpush1.bf16.msra.mxu0 0
        %1390 = vmatprep.subr.bf16.mxu0 0
        %1391 = vmatpush1.bf16.msra.mxu0 0
        %1392 = vmatprep.subr.bf16.mxu0 0
        %1393 = vmatpush1.bf16.msra.mxu0 0
        %1394 = vmatprep.subr.bf16.mxu0 0
        %1395 = vmatpush1.bf16.msra.mxu0 0
        %1396 = vmatprep.subr.bf16.mxu0 0
        %1397 = vmatpush1.bf16.msra.mxu0 0
        %1398 = vmatprep.mubr.bf16.mxu0 0
        %1399 = vmatmul.mubr.bf16.gmra.mrb[0].mxu0 %v1361
        %v1400 = vpop.f32.mrb[0].mxu0
        %v1401 = vadd.f32 0.0, %v1400
        %v1402 = vpop.f32.mrb[0].mxu0
        %v1403 = vpop.f32.mrb[0].mxu0
        %v1404 = vpop.f32.mrb[0].mxu0
        %1405 = vdwg.mxu0
        %v1406 = vrcp.pop %v1356
        %v1407 = vmul.f32 %v1401, %v1406
        %v1408 = vpack.c.bf16 %v1407, %v1407
        %1410 = vrot.lane.b32.xlu0 %v1186, 8
        %v1411 = vpop.permute.xlu0 %1410
        %1413 = vrot.lane.b32.xlu0 %v1297, 16
        %v1414 = vpop.permute.xlu0 %1413
        %1416 = vrot.lane.b32.xlu0 %v1408, 24
        %v1417 = vpop.permute.xlu0 %1416
        %v1420 = vsel %vm965, %v1072, %v1411
        %vm1421 = vcmask 130048
        %v1423 = vsel %vm1421, %v1420, %v1414
        %vm1424 = vcmask 195584
        %v1426 = vsel %vm1424, %v1423, %v1417
        %s1427 = scalar_lea.vmem %s730, 48
        %v1428 = vld [vmem:[%s1427] sm:$0xf]
        %v1429 = vld [vmem:[%s1427 + $0x4] sm:$0xf]
        %v1430 = vld [vmem:[%s1427 + $0x8] sm:$0xf]
        %v1431 = vld [vmem:[%s1427 + $0xc] sm:$0xf]
        %v1432 = vlaneseq
        %v1433 = vshrl.u32 %v1432, 7
        %v1434 = vsub.s32 3, %v1433
        %v1435 = vrot.slane %v767, %v1434
        %v1440 = vunpack.c.l.b16 %v1428
        %v1441 = vunpack.c.l.b16 %v1429
        %v1442 = vunpack.c.l.b16 %v1430
        %v1443 = vunpack.c.l.b16 %v1431
        %v1444 = vpack.c.b16 %v1441, %v1440
        %v1445 = vpack.c.b16 %v1443, %v1442
        %v1448 = vsel %vm792, %v1426, 0
        %1450 = vmatprep.subr.bf16.mxu0 0
        %1451 = vmatpush1.bf16.msra.mxu0 %v1444
        %1452 = vmatprep.subr.bf16.mxu0 0
        %1453 = vmatpush1.bf16.msra.mxu0 %v1445
        %1454 = vmatprep.subr.bf16.mxu0 0
        %1455 = vmatpush1.bf16.msra.mxu0 0
        %1456 = vmatprep.subr.bf16.mxu0 0
        %1457 = vmatpush1.bf16.msra.mxu0 0
        %1458 = vmatprep.subr.bf16.mxu0 0
        %1459 = vmatpush1.bf16.msra.mxu0 0
        %1460 = vmatprep.subr.bf16.mxu0 0
        %1461 = vmatpush1.bf16.msra.mxu0 0
        %1462 = vmatprep.subr.bf16.mxu0 0
        %1463 = vmatpush1.bf16.msra.mxu0 0
        %1464 = vmatprep.subr.bf16.mxu0 0
        %1465 = vmatpush1.bf16.msra.mxu0 0
        %1466 = vmatprep.subr.bf16.mxu0 0
        %1467 = vmatpush1.bf16.msra.mxu0 0
        %1468 = vmatprep.subr.bf16.mxu0 0
        %1469 = vmatpush1.bf16.msra.mxu0 0
        %1470 = vmatprep.subr.bf16.mxu0 0
        %1471 = vmatpush1.bf16.msra.mxu0 0
        %1472 = vmatprep.subr.bf16.mxu0 0
        %1473 = vmatpush1.bf16.msra.mxu0 0
        %1474 = vmatprep.subr.bf16.mxu0 0
        %1475 = vmatpush1.bf16.msra.mxu0 0
        %1476 = vmatprep.subr.bf16.mxu0 0
        %1477 = vmatpush1.bf16.msra.mxu0 0
        %1478 = vmatprep.subr.bf16.mxu0 0
        %1479 = vmatpush1.bf16.msra.mxu0 0
        %1480 = vmatprep.subr.bf16.mxu0 0
        %1481 = vmatpush1.bf16.msra.mxu0 0
        %1482 = vmatprep.mubr.bf16.mxu0 0
        %1483 = vmatmul.mubr.bf16.gmra.mrb[0].mxu0 %v1448
        %v1484 = vpop.f32.mrb[0].mxu0
        %v1485 = vadd.f32 %v1435, %v1484
        %v1486 = vpop.f32.mrb[0].mxu0
        %v1487 = vpop.f32.mrb[0].mxu0
        %v1488 = vpop.f32.mrb[0].mxu0
        %1489 = vdwg.mxu0
        %v1490 = vadd.f32 %v761, %v1485
        %v1491 = vsel %vm792, %v1490, 0.0
        %1492 = vadd.xlane.f32.xlu0 %v1491
        %v1493 = vpop.xlane.xlu0 %1492
        %v1494 = vrcp.pop 32.0
        %v1495 = vmul.f32 %v1493, %v1494
        %v1496 = vsub.f32 %v1490, %v1495
        %v1497 = vmul.f32 %v1496, %v1496
        %v1498 = vsel %vm792, %v1497, 0.0
        %1499 = vadd.xlane.f32.xlu0 %v1498
        %v1500 = vpop.xlane.xlu0 %1499
        %v1501 = vmul.f32 %v1500, %v1494
        %v1502 = vadd.f32 %v1501, 1e-05
        %v1503 = vrsqrt.pop %v1502
        %v1504 = vmul.f32 %v1496, %v1503
        %v1505 = vlaneseq
        %v1506 = vshrl.u32 %v1505, 7
        %v1507 = vsub.s32 0, %v1506
        %v1508 = vrot.slane %v768, %v1507
        %v1509 = vmul.f32 %v1504, %v1508
        %v1510 = vlaneseq
        %v1511 = vshrl.u32 %v1510, 7
        %v1512 = vsub.s32 0, %v1511
        %v1513 = vrot.slane %v769, %v1512
        %v1514 = vadd.f32 %v1509, %v1513
        %v1515 = vadd.f32 %v1514, %v762
        %v1516 = vadd.f32 %v763, %v765
        %v1517 = vadd.f32 %v764, %v766
        %v1518 = vpack.c.bf16 %v1515, %v1515
        %s1519 = scalar_lea.vmem %s730, 64
        %v1520 = vld [vmem:[%s1519] sm:$0xf]
        %v1521 = vld [vmem:[%s1519 + $0x4] sm:$0xf]
        %v1522 = vld [vmem:[%s1519 + $0x8] sm:$0xf]
        %v1523 = vld [vmem:[%s1519 + $0xc] sm:$0xf]
        %v1524 = vlaneseq
        %v1525 = vshrl.u32 %v1524, 7
        %v1526 = vsub.s32 4, %v1525
        %v1527 = vrot.slane %v767, %v1526
        %v1532 = vunpack.c.l.b16 %v1520
        %v1533 = vunpack.c.l.b16 %v1521
        %v1534 = vunpack.c.l.b16 %v1522
        %v1535 = vunpack.c.l.b16 %v1523
        %v1536 = vpack.c.b16 %v1533, %v1532
        %v1537 = vpack.c.b16 %v1535, %v1534
        %v1541 = vsel %vm792, %v1518, 0
        %1543 = vmatprep.subr.bf16.mxu0 0
        %1544 = vmatpush1.bf16.msra.mxu0 %v1536
        %1545 = vmatprep.subr.bf16.mxu0 0
        %1546 = vmatpush1.bf16.msra.mxu0 %v1537
        %1547 = vmatprep.subr.bf16.mxu0 0
        %1548 = vmatpush1.bf16.msra.mxu0 0
        %1549 = vmatprep.subr.bf16.mxu0 0
        %1550 = vmatpush1.bf16.msra.mxu0 0
        %1551 = vmatprep.subr.bf16.mxu0 0
        %1552 = vmatpush1.bf16.msra.mxu0 0
        %1553 = vmatprep.subr.bf16.mxu0 0
        %1554 = vmatpush1.bf16.msra.mxu0 0
        %1555 = vmatprep.subr.bf16.mxu0 0
        %1556 = vmatpush1.bf16.msra.mxu0 0
        %1557 = vmatprep.subr.bf16.mxu0 0
        %1558 = vmatpush1.bf16.msra.mxu0 0
        %1559 = vmatprep.subr.bf16.mxu0 0
        %1560 = vmatpush1.bf16.msra.mxu0 0
        %1561 = vmatprep.subr.bf16.mxu0 0
        %1562 = vmatpush1.bf16.msra.mxu0 0
        %1563 = vmatprep.subr.bf16.mxu0 0
        %1564 = vmatpush1.bf16.msra.mxu0 0
        %1565 = vmatprep.subr.bf16.mxu0 0
        %1566 = vmatpush1.bf16.msra.mxu0 0
        %1567 = vmatprep.subr.bf16.mxu0 0
        %1568 = vmatpush1.bf16.msra.mxu0 0
        %1569 = vmatprep.subr.bf16.mxu0 0
        %1570 = vmatpush1.bf16.msra.mxu0 0
        %1571 = vmatprep.subr.bf16.mxu0 0
        %1572 = vmatpush1.bf16.msra.mxu0 0
        %1573 = vmatprep.subr.bf16.mxu0 0
        %1574 = vmatpush1.bf16.msra.mxu0 0
        %1575 = vmatprep.mubr.bf16.mxu0 0
        %1576 = vmatmul.mubr.bf16.gmra.mrb[0].mxu0 %v1541
        %v1577 = vpop.f32.mrb[0].mxu0
        %v1578 = vadd.f32 %v1527, %v1577
        %v1579 = vpop.f32.mrb[0].mxu0
        %v1580 = vpop.f32.mrb[0].mxu0
        %v1581 = vpop.f32.mrb[0].mxu0
        %1582 = vdwg.mxu0
        %v1583 = vpack.c.bf16 %v1517, %v1516
        %s1584 = scalar_lea.vmem %s730, 80
        %v1585 = vld [vmem:[%s1584] sm:$0xf]
        %v1586 = vld [vmem:[%s1584 + $0x4] sm:$0xf]
        %v1587 = vld [vmem:[%s1584 + $0x8] sm:$0xf]
        %v1588 = vld [vmem:[%s1584 + $0xc] sm:$0xf]
        %v1589 = vlaneseq
        %v1590 = vshrl.u32 %v1589, 7
        %v1591 = vsub.s32 5, %v1590
        %v1592 = vrot.slane %v767, %v1591
        %v1597 = vunpack.c.l.b16 %v1585
        %v1598 = vunpack.c.l.b16 %v1586
        %v1599 = vunpack.c.l.b16 %v1587
        %v1600 = vunpack.c.l.b16 %v1588
        %v1601 = vpack.c.b16 %v1598, %v1597
        %v1602 = vpack.c.b16 %v1600, %v1599
        %v1606 = vsel %vm792, %v1583, 0
        %1608 = vmatprep.subr.bf16.mxu0 0
        %1609 = vmatpush1.bf16.msra.mxu0 %v1601
        %1610 = vmatprep.subr.bf16.mxu0 0
        %1611 = vmatpush1.bf16.msra.mxu0 %v1602
        %1612 = vmatprep.subr.bf16.mxu0 0
        %1613 = vmatpush1.bf16.msra.mxu0 0
        %1614 = vmatprep.subr.bf16.mxu0 0
        %1615 = vmatpush1.bf16.msra.mxu0 0
        %1616 = vmatprep.subr.bf16.mxu0 0
        %1617 = vmatpush1.bf16.msra.mxu0 0
        %1618 = vmatprep.subr.bf16.mxu0 0
        %1619 = vmatpush1.bf16.msra.mxu0 0
        %1620 = vmatprep.subr.bf16.mxu0 0
        %1621 = vmatpush1.bf16.msra.mxu0 0
        %1622 = vmatprep.subr.bf16.mxu0 0
        %1623 = vmatpush1.bf16.msra.mxu0 0
        %1624 = vmatprep.subr.bf16.mxu0 0
        %1625 = vmatpush1.bf16.msra.mxu0 0
        %1626 = vmatprep.subr.bf16.mxu0 0
        %1627 = vmatpush1.bf16.msra.mxu0 0
        %1628 = vmatprep.subr.bf16.mxu0 0
        %1629 = vmatpush1.bf16.msra.mxu0 0
        %1630 = vmatprep.subr.bf16.mxu0 0
        %1631 = vmatpush1.bf16.msra.mxu0 0
        %1632 = vmatprep.subr.bf16.mxu0 0
        %1633 = vmatpush1.bf16.msra.mxu0 0
        %1634 = vmatprep.subr.bf16.mxu0 0
        %1635 = vmatpush1.bf16.msra.mxu0 0
        %1636 = vmatprep.subr.bf16.mxu0 0
        %1637 = vmatpush1.bf16.msra.mxu0 0
        %1638 = vmatprep.subr.bf16.mxu0 0
        %1639 = vmatpush1.bf16.msra.mxu0 0
        %1640 = vmatprep.mubr.bf16.mxu0 0
        %1641 = vmatmul.mubr.bf16.gmra.mrb[0].mxu0 %v1606
        %v1642 = vpop.f32.mrb[0].mxu0
        %v1643 = vadd.f32 %v1592, %v1642
        %v1644 = vpop.f32.mrb[0].mxu0
        %v1645 = vpop.f32.mrb[0].mxu0
        %v1646 = vadd.f32 %v1592, %v1645
        %v1647 = vpop.f32.mrb[0].mxu0
        %1648 = vdwg.mxu0
        %v1649 = vpack.c.bf16 %v764, %v763
        %s1650 = scalar_lea.vmem %s730, 96
        %v1651 = vld [vmem:[%s1650] sm:$0xf]
        %v1652 = vld [vmem:[%s1650 + $0x4] sm:$0xf]
        %v1653 = vld [vmem:[%s1650 + $0x8] sm:$0xf]
        %v1654 = vld [vmem:[%s1650 + $0xc] sm:$0xf]
        %v1655 = vlaneseq
        %v1656 = vshrl.u32 %v1655, 7
        %v1657 = vsub.s32 6, %v1656
        %v1658 = vrot.slane %v767, %v1657
        %v1663 = vunpack.c.l.b16 %v1651
        %v1664 = vunpack.c.l.b16 %v1652
        %v1665 = vunpack.c.l.b16 %v1653
        %v1666 = vunpack.c.l.b16 %v1654
        %v1667 = vpack.c.b16 %v1664, %v1663
        %v1668 = vpack.c.b16 %v1666, %v1665
        %v1672 = vsel %vm792, %v1649, 0
        %1674 = vmatprep.subr.bf16.mxu0 0
        %1675 = vmatpush1.bf16.msra.mxu0 %v1667
        %1676 = vmatprep.subr.bf16.mxu0 0
        %1677 = vmatpush1.bf16.msra.mxu0 %v1668
        %1678 = vmatprep.subr.bf16.mxu0 0
        %1679 = vmatpush1.bf16.msra.mxu0 0
        %1680 = vmatprep.subr.bf16.mxu0 0
        %1681 = vmatpush1.bf16.msra.mxu0 0
        %1682 = vmatprep.subr.bf16.mxu0 0
        %1683 = vmatpush1.bf16.msra.mxu0 0
        %1684 = vmatprep.subr.bf16.mxu0 0
        %1685 = vmatpush1.bf16.msra.mxu0 0
        %1686 = vmatprep.subr.bf16.mxu0 0
        %1687 = vmatpush1.bf16.msra.mxu0 0
        %1688 = vmatprep.subr.bf16.mxu0 0
        %1689 = vmatpush1.bf16.msra.mxu0 0
        %1690 = vmatprep.subr.bf16.mxu0 0
        %1691 = vmatpush1.bf16.msra.mxu0 0
        %1692 = vmatprep.subr.bf16.mxu0 0
        %1693 = vmatpush1.bf16.msra.mxu0 0
        %1694 = vmatprep.subr.bf16.mxu0 0
        %1695 = vmatpush1.bf16.msra.mxu0 0
        %1696 = vmatprep.subr.bf16.mxu0 0
        %1697 = vmatpush1.bf16.msra.mxu0 0
        %1698 = vmatprep.subr.bf16.mxu0 0
        %1699 = vmatpush1.bf16.msra.mxu0 0
        %1700 = vmatprep.subr.bf16.mxu0 0
        %1701 = vmatpush1.bf16.msra.mxu0 0
        %1702 = vmatprep.subr.bf16.mxu0 0
        %1703 = vmatpush1.bf16.msra.mxu0 0
        %1704 = vmatprep.subr.bf16.mxu0 0
        %1705 = vmatpush1.bf16.msra.mxu0 0
        %1706 = vmatprep.mubr.bf16.mxu0 0
        %1707 = vmatmul.mubr.bf16.gmra.mrb[0].mxu0 %v1672
        %v1708 = vpop.f32.mrb[0].mxu0
        %v1709 = vadd.f32 %v1658, %v1708
        %v1710 = vpop.f32.mrb[0].mxu0
        %v1711 = vpop.f32.mrb[0].mxu0
        %v1712 = vadd.f32 %v1658, %v1711
        %v1713 = vpop.f32.mrb[0].mxu0
        %1714 = vdwg.mxu0
        %v1715 = vmul.f32 %v1578, 0.35355338
        %v1716 = vpack.c.bf16 %v1715, %v1715
        %v1717 = vpack.c.bf16 %v1646, %v1643
        %v1719 = vsel %vm965, %v1716, 0
        %v1722 = vsel %vm965, %v1717, 0
        %1724 = vmatprep.subr.bf16.mxu0 0
        %1725 = vmatpush1.bf16.xpose.msra.mxu0 %v1722
        %1726 = vmatprep.subr.bf16.mxu0 0
        %1727 = vmatpush1.bf16.xpose.msra.mxu0 0
        %1728 = vmatprep.subr.bf16.mxu0 0
        %1729 = vmatpush1.bf16.xpose.msra.mxu0 0
        %1730 = vmatprep.subr.bf16.mxu0 0
        %1731 = vmatpush1.bf16.xpose.msra.mxu0 0
        %1732 = vmatprep.subr.bf16.mxu0 0
        %1733 = vmatpush1.bf16.xpose.msra.mxu0 0
        %1734 = vmatprep.subr.bf16.mxu0 0
        %1735 = vmatpush1.bf16.xpose.msra.mxu0 0
        %1736 = vmatprep.subr.bf16.mxu0 0
        %1737 = vmatpush1.bf16.xpose.msra.mxu0 0
        %1738 = vmatprep.subr.bf16.mxu0 0
        %1739 = vmatpush1.bf16.xpose.msra.mxu0 0
        %1740 = vmatprep.subr.bf16.mxu0 0
        %1741 = vmatpush1.bf16.xpose.msra.mxu0 0
        %1742 = vmatprep.subr.bf16.mxu0 0
        %1743 = vmatpush1.bf16.xpose.msra.mxu0 0
        %1744 = vmatprep.subr.bf16.mxu0 0
        %1745 = vmatpush1.bf16.xpose.msra.mxu0 0
        %1746 = vmatprep.subr.bf16.mxu0 0
        %1747 = vmatpush1.bf16.xpose.msra.mxu0 0
        %1748 = vmatprep.subr.bf16.mxu0 0
        %1749 = vmatpush1.bf16.xpose.msra.mxu0 0
        %1750 = vmatprep.subr.bf16.mxu0 0
        %1751 = vmatpush1.bf16.xpose.msra.mxu0 0
        %1752 = vmatprep.subr.bf16.mxu0 0
        %1753 = vmatpush1.bf16.xpose.msra.mxu0 0
        %1754 = vmatprep.subr.bf16.mxu0 0
        %1755 = vmatpush1.bf16.xpose.msra.mxu0 0
        %1756 = vmatprep.mubr.bf16.mxu0 0
        %1757 = vmatmul.mubr.bf16.gmra.mrb[0].mxu0 %v1719
        %v1758 = vpop.f32.mrb[0].mxu0
        %v1759 = vadd.f32 0.0, %v1758
        %v1760 = vpop.f32.mrb[0].mxu0
        %v1761 = vpop.f32.mrb[0].mxu0
        %v1762 = vpop.f32.mrb[0].mxu0
        %1763 = vdwg.mxu0
        %v1764 = vsel %vm1421, %v1759, -inf
        %1765 = vmax.xlane.f32.xlu0 %v1764
        %v1766 = vpop.xlane.xlu0 %1765
        %v1767 = vsub.f32 %v1759, %v1766
        %v1768 = vmul.f32 %v1767, 1.442695
        %v1769 = vpow.pop %v1768
        %v1770 = vsel %vm1421, %v1769, 0.0
        %1771 = vadd.xlane.f32.xlu0 %v1770
        %v1772 = vpop.xlane.xlu0 %1771
        %v1773 = vpack.c.bf16 %v1769, %v1769
        %v1774 = vpack.c.bf16 %v1712, %v1709
        %v1776 = vsel %vm1421, %v1773, 0
        %1778 = vmatprep.subr.bf16.mxu0 0
        %1779 = vmatpush1.bf16.msra.mxu0 %v1774
        %1780 = vmatprep.subr.bf16.mxu0 0
        %1781 = vmatpush1.bf16.msra.mxu0 0
        %1782 = vmatprep.subr.bf16.mxu0 0
        %1783 = vmatpush1.bf16.msra.mxu0 0
        %1784 = vmatprep.subr.bf16.mxu0 0
        %1785 = vmatpush1.bf16.msra.mxu0 0
        %1786 = vmatprep.subr.bf16.mxu0 0
        %1787 = vmatpush1.bf16.msra.mxu0 0
        %1788 = vmatprep.subr.bf16.mxu0 0
        %1789 = vmatpush1.bf16.msra.mxu0 0
        %1790 = vmatprep.subr.bf16.mxu0 0
        %1791 = vmatpush1.bf16.msra.mxu0 0
        %1792 = vmatprep.subr.bf16.mxu0 0
        %1793 = vmatpush1.bf16.msra.mxu0 0
        %1794 = vmatprep.subr.bf16.mxu0 0
        %1795 = vmatpush1.bf16.msra.mxu0 0
        %1796 = vmatprep.subr.bf16.mxu0 0
        %1797 = vmatpush1.bf16.msra.mxu0 0
        %1798 = vmatprep.subr.bf16.mxu0 0
        %1799 = vmatpush1.bf16.msra.mxu0 0
        %1800 = vmatprep.subr.bf16.mxu0 0
        %1801 = vmatpush1.bf16.msra.mxu0 0
        %1802 = vmatprep.subr.bf16.mxu0 0
        %1803 = vmatpush1.bf16.msra.mxu0 0
        %1804 = vmatprep.subr.bf16.mxu0 0
        %1805 = vmatpush1.bf16.msra.mxu0 0
        %1806 = vmatprep.subr.bf16.mxu0 0
        %1807 = vmatpush1.bf16.msra.mxu0 0
        %1808 = vmatprep.subr.bf16.mxu0 0
        %1809 = vmatpush1.bf16.msra.mxu0 0
        %1810 = vmatprep.mubr.bf16.mxu0 0
        %1811 = vmatmul.mubr.bf16.gmra.mrb[0].mxu0 %v1776
        %v1812 = vpop.f32.mrb[0].mxu0
        %v1813 = vadd.f32 0.0, %v1812
        %v1814 = vpop.f32.mrb[0].mxu0
        %v1815 = vpop.f32.mrb[0].mxu0
        %v1816 = vpop.f32.mrb[0].mxu0
        %1817 = vdwg.mxu0
        %v1818 = vrcp.pop %v1772
        %v1819 = vmul.f32 %v1813, %v1818
        %v1820 = vpack.c.bf16 %v1819, %v1819
        %1822 = vrot.lane.b32.xlu0 %v1716, 120
        %v1823 = vpop.permute.xlu0 %1822
        %1825 = vrot.lane.b32.xlu0 %v1717, 120
        %v1826 = vpop.permute.xlu0 %1825
        %v1828 = vsel %vm965, %v1823, 0
        %v1831 = vsel %vm965, %v1826, 0
        %1833 = vmatprep.subr.bf16.mxu0 0
        %1834 = vmatpush1.bf16.xpose.msra.mxu0 %v1831
        %1835 = vmatprep.subr.bf16.mxu0 0
        %1836 = vmatpush1.bf16.xpose.msra.mxu0 0
        %1837 = vmatprep.subr.bf16.mxu0 0
        %1838 = vmatpush1.bf16.xpose.msra.mxu0 0
        %1839 = vmatprep.subr.bf16.mxu0 0
        %1840 = vmatpush1.bf16.xpose.msra.mxu0 0
        %1841 = vmatprep.subr.bf16.mxu0 0
        %1842 = vmatpush1.bf16.xpose.msra.mxu0 0
        %1843 = vmatprep.subr.bf16.mxu0 0
        %1844 = vmatpush1.bf16.xpose.msra.mxu0 0
        %1845 = vmatprep.subr.bf16.mxu0 0
        %1846 = vmatpush1.bf16.xpose.msra.mxu0 0
        %1847 = vmatprep.subr.bf16.mxu0 0
        %1848 = vmatpush1.bf16.xpose.msra.mxu0 0
        %1849 = vmatprep.subr.bf16.mxu0 0
        %1850 = vmatpush1.bf16.xpose.msra.mxu0 0
        %1851 = vmatprep.subr.bf16.mxu0 0
        %1852 = vmatpush1.bf16.xpose.msra.mxu0 0
        %1853 = vmatprep.subr.bf16.mxu0 0
        %1854 = vmatpush1.bf16.xpose.msra.mxu0 0
        %1855 = vmatprep.subr.bf16.mxu0 0
        %1856 = vmatpush1.bf16.xpose.msra.mxu0 0
        %1857 = vmatprep.subr.bf16.mxu0 0
        %1858 = vmatpush1.bf16.xpose.msra.mxu0 0
        %1859 = vmatprep.subr.bf16.mxu0 0
        %1860 = vmatpush1.bf16.xpose.msra.mxu0 0
        %1861 = vmatprep.subr.bf16.mxu0 0
        %1862 = vmatpush1.bf16.xpose.msra.mxu0 0
        %1863 = vmatprep.subr.bf16.mxu0 0
        %1864 = vmatpush1.bf16.xpose.msra.mxu0 0
        %1865 = vmatprep.mubr.bf16.mxu0 0
        %1866 = vmatmul.mubr.bf16.gmra.mrb[0].mxu0 %v1828
        %v1867 = vpop.f32.mrb[0].mxu0
        %v1868 = vadd.f32 0.0, %v1867
        %v1869 = vpop.f32.mrb[0].mxu0
        %v1870 = vpop.f32.mrb[0].mxu0
        %v1871 = vpop.f32.mrb[0].mxu0
        %1872 = vdwg.mxu0
        %v1873 = vsel %vm1421, %v1868, -inf
        %1874 = vmax.xlane.f32.xlu0 %v1873
        %v1875 = vpop.xlane.xlu0 %1874
        %v1876 = vsub.f32 %v1868, %v1875
        %v1877 = vmul.f32 %v1876, 1.442695
        %v1878 = vpow.pop %v1877
        %v1879 = vsel %vm1421, %v1878, 0.0
        %1880 = vadd.xlane.f32.xlu0 %v1879
        %v1881 = vpop.xlane.xlu0 %1880
        %v1882 = vpack.c.bf16 %v1878, %v1878
        %1884 = vrot.lane.b32.xlu0 %v1774, 120
        %v1885 = vpop.permute.xlu0 %1884
        %v1888 = vsel %vm1421, %v1882, 0
        %1890 = vmatprep.subr.bf16.mxu0 0
        %1891 = vmatpush1.bf16.msra.mxu0 %v1885
        %1892 = vmatprep.subr.bf16.mxu0 0
        %1893 = vmatpush1.bf16.msra.mxu0 0
        %1894 = vmatprep.subr.bf16.mxu0 0
        %1895 = vmatpush1.bf16.msra.mxu0 0
        %1896 = vmatprep.subr.bf16.mxu0 0
        %1897 = vmatpush1.bf16.msra.mxu0 0
        %1898 = vmatprep.subr.bf16.mxu0 0
        %1899 = vmatpush1.bf16.msra.mxu0 0
        %1900 = vmatprep.subr.bf16.mxu0 0
        %1901 = vmatpush1.bf16.msra.mxu0 0
        %1902 = vmatprep.subr.bf16.mxu0 0
        %1903 = vmatpush1.bf16.msra.mxu0 0
        %1904 = vmatprep.subr.bf16.mxu0 0
        %1905 = vmatpush1.bf16.msra.mxu0 0
        %1906 = vmatprep.subr.bf16.mxu0 0
        %1907 = vmatpush1.bf16.msra.mxu0 0
        %1908 = vmatprep.subr.bf16.mxu0 0
        %1909 = vmatpush1.bf16.msra.mxu0 0
        %1910 = vmatprep.subr.bf16.mxu0 0
        %1911 = vmatpush1.bf16.msra.mxu0 0
        %1912 = vmatprep.subr.bf16.mxu0 0
        %1913 = vmatpush1.bf16.msra.mxu0 0
        %1914 = vmatprep.subr.bf16.mxu0 0
        %1915 = vmatpush1.bf16.msra.mxu0 0
        %1916 = vmatprep.subr.bf16.mxu0 0
        %1917 = vmatpush1.bf16.msra.mxu0 0
        %1918 = vmatprep.subr.bf16.mxu0 0
        %1919 = vmatpush1.bf16.msra.mxu0 0
        %1920 = vmatprep.subr.bf16.mxu0 0
        %1921 = vmatpush1.bf16.msra.mxu0 0
        %1922 = vmatprep.mubr.bf16.mxu0 0
        %1923 = vmatmul.mubr.bf16.gmra.mrb[0].mxu0 %v1888
        %v1924 = vpop.f32.mrb[0].mxu0
        %v1925 = vadd.f32 0.0, %v1924
        %v1926 = vpop.f32.mrb[0].mxu0
        %v1927 = vpop.f32.mrb[0].mxu0
        %v1928 = vpop.f32.mrb[0].mxu0
        %1929 = vdwg.mxu0
        %v1930 = vrcp.pop %v1881
        %v1931 = vmul.f32 %v1925, %v1930
        %v1932 = vpack.c.bf16 %v1931, %v1931
        %1933 = vrot.lane.b32.xlu0 %v1716, 112
        %v1934 = vpop.permute.xlu0 %1933
        %1935 = vrot.lane.b32.xlu0 %v1717, 112
        %v1936 = vpop.permute.xlu0 %1935
        %v1938 = vsel %vm965, %v1934, 0
        %v1941 = vsel %vm965, %v1936, 0
        %1943 = vmatprep.subr.bf16.mxu0 0
        %1944 = vmatpush1.bf16.xpose.msra.mxu0 %v1941
        %1945 = vmatprep.subr.bf16.mxu0 0
        %1946 = vmatpush1.bf16.xpose.msra.mxu0 0
        %1947 = vmatprep.subr.bf16.mxu0 0
        %1948 = vmatpush1.bf16.xpose.msra.mxu0 0
        %1949 = vmatprep.subr.bf16.mxu0 0
        %1950 = vmatpush1.bf16.xpose.msra.mxu0 0
        %1951 = vmatprep.subr.bf16.mxu0 0
        %1952 = vmatpush1.bf16.xpose.msra.mxu0 0
        %1953 = vmatprep.subr.bf16.mxu0 0
        %1954 = vmatpush1.bf16.xpose.msra.mxu0 0
        %1955 = vmatprep.subr.bf16.mxu0 0
        %1956 = vmatpush1.bf16.xpose.msra.mxu0 0
        %1957 = vmatprep.subr.bf16.mxu0 0
        %1958 = vmatpush1.bf16.xpose.msra.mxu0 0
        %1959 = vmatprep.subr.bf16.mxu0 0
        %1960 = vmatpush1.bf16.xpose.msra.mxu0 0
        %1961 = vmatprep.subr.bf16.mxu0 0
        %1962 = vmatpush1.bf16.xpose.msra.mxu0 0
        %1963 = vmatprep.subr.bf16.mxu0 0
        %1964 = vmatpush1.bf16.xpose.msra.mxu0 0
        %1965 = vmatprep.subr.bf16.mxu0 0
        %1966 = vmatpush1.bf16.xpose.msra.mxu0 0
        %1967 = vmatprep.subr.bf16.mxu0 0
        %1968 = vmatpush1.bf16.xpose.msra.mxu0 0
        %1969 = vmatprep.subr.bf16.mxu0 0
        %1970 = vmatpush1.bf16.xpose.msra.mxu0 0
        %1971 = vmatprep.subr.bf16.mxu0 0
        %1972 = vmatpush1.bf16.xpose.msra.mxu0 0
        %1973 = vmatprep.subr.bf16.mxu0 0
        %1974 = vmatpush1.bf16.xpose.msra.mxu0 0
        %1975 = vmatprep.mubr.bf16.mxu0 0
        %1976 = vmatmul.mubr.bf16.gmra.mrb[0].mxu0 %v1938
        %v1977 = vpop.f32.mrb[0].mxu0
        %v1978 = vadd.f32 0.0, %v1977
        %v1979 = vpop.f32.mrb[0].mxu0
        %v1980 = vpop.f32.mrb[0].mxu0
        %v1981 = vpop.f32.mrb[0].mxu0
        %1982 = vdwg.mxu0
        %v1983 = vsel %vm1421, %v1978, -inf
        %1984 = vmax.xlane.f32.xlu0 %v1983
        %v1985 = vpop.xlane.xlu0 %1984
        %v1986 = vsub.f32 %v1978, %v1985
        %v1987 = vmul.f32 %v1986, 1.442695
        %v1988 = vpow.pop %v1987
        %v1989 = vsel %vm1421, %v1988, 0.0
        %1990 = vadd.xlane.f32.xlu0 %v1989
        %v1991 = vpop.xlane.xlu0 %1990
        %v1992 = vpack.c.bf16 %v1988, %v1988
        %1993 = vrot.lane.b32.xlu0 %v1774, 112
        %v1994 = vpop.permute.xlu0 %1993
        %v1997 = vsel %vm1421, %v1992, 0
        %1999 = vmatprep.subr.bf16.mxu0 0
        %2000 = vmatpush1.bf16.msra.mxu0 %v1994
        %2001 = vmatprep.subr.bf16.mxu0 0
        %2002 = vmatpush1.bf16.msra.mxu0 0
        %2003 = vmatprep.subr.bf16.mxu0 0
        %2004 = vmatpush1.bf16.msra.mxu0 0
        %2005 = vmatprep.subr.bf16.mxu0 0
        %2006 = vmatpush1.bf16.msra.mxu0 0
        %2007 = vmatprep.subr.bf16.mxu0 0
        %2008 = vmatpush1.bf16.msra.mxu0 0
        %2009 = vmatprep.subr.bf16.mxu0 0
        %2010 = vmatpush1.bf16.msra.mxu0 0
        %2011 = vmatprep.subr.bf16.mxu0 0
        %2012 = vmatpush1.bf16.msra.mxu0 0
        %2013 = vmatprep.subr.bf16.mxu0 0
        %2014 = vmatpush1.bf16.msra.mxu0 0
        %2015 = vmatprep.subr.bf16.mxu0 0
        %2016 = vmatpush1.bf16.msra.mxu0 0
        %2017 = vmatprep.subr.bf16.mxu0 0
        %2018 = vmatpush1.bf16.msra.mxu0 0
        %2019 = vmatprep.subr.bf16.mxu0 0
        %2020 = vmatpush1.bf16.msra.mxu0 0
        %2021 = vmatprep.subr.bf16.mxu0 0
        %2022 = vmatpush1.bf16.msra.mxu0 0
        %2023 = vmatprep.subr.bf16.mxu0 0
        %2024 = vmatpush1.bf16.msra.mxu0 0
        %2025 = vmatprep.subr.bf16.mxu0 0
        %2026 = vmatpush1.bf16.msra.mxu0 0
        %2027 = vmatprep.subr.bf16.mxu0 0
        %2028 = vmatpush1.bf16.msra.mxu0 0
        %2029 = vmatprep.subr.bf16.mxu0 0
        %2030 = vmatpush1.bf16.msra.mxu0 0
        %2031 = vmatprep.mubr.bf16.mxu0 0
        %2032 = vmatmul.mubr.bf16.gmra.mrb[0].mxu0 %v1997
        %v2033 = vpop.f32.mrb[0].mxu0
        %v2034 = vadd.f32 0.0, %v2033
        %v2035 = vpop.f32.mrb[0].mxu0
        %v2036 = vpop.f32.mrb[0].mxu0
        %v2037 = vpop.f32.mrb[0].mxu0
        %2038 = vdwg.mxu0
        %v2039 = vrcp.pop %v1991
        %v2040 = vmul.f32 %v2034, %v2039
        %v2041 = vpack.c.bf16 %v2040, %v2040
        %2042 = vrot.lane.b32.xlu0 %v1716, 104
        %v2043 = vpop.permute.xlu0 %2042
        %2044 = vrot.lane.b32.xlu0 %v1717, 104
        %v2045 = vpop.permute.xlu0 %2044
        %v2047 = vsel %vm965, %v2043, 0
        %v2050 = vsel %vm965, %v2045, 0
        %2052 = vmatprep.subr.bf16.mxu0 0
        %2053 = vmatpush1.bf16.xpose.msra.mxu0 %v2050
        %2054 = vmatprep.subr.bf16.mxu0 0
        %2055 = vmatpush1.bf16.xpose.msra.mxu0 0
        %2056 = vmatprep.subr.bf16.mxu0 0
        %2057 = vmatpush1.bf16.xpose.msra.mxu0 0
        %2058 = vmatprep.subr.bf16.mxu0 0
        %2059 = vmatpush1.bf16.xpose.msra.mxu0 0
        %2060 = vmatprep.subr.bf16.mxu0 0
        %2061 = vmatpush1.bf16.xpose.msra.mxu0 0
        %2062 = vmatprep.subr.bf16.mxu0 0
        %2063 = vmatpush1.bf16.xpose.msra.mxu0 0
        %2064 = vmatprep.subr.bf16.mxu0 0
        %2065 = vmatpush1.bf16.xpose.msra.mxu0 0
        %2066 = vmatprep.subr.bf16.mxu0 0
        %2067 = vmatpush1.bf16.xpose.msra.mxu0 0
        %2068 = vmatprep.subr.bf16.mxu0 0
        %2069 = vmatpush1.bf16.xpose.msra.mxu0 0
        %2070 = vmatprep.subr.bf16.mxu0 0
        %2071 = vmatpush1.bf16.xpose.msra.mxu0 0
        %2072 = vmatprep.subr.bf16.mxu0 0
        %2073 = vmatpush1.bf16.xpose.msra.mxu0 0
        %2074 = vmatprep.subr.bf16.mxu0 0
        %2075 = vmatpush1.bf16.xpose.msra.mxu0 0
        %2076 = vmatprep.subr.bf16.mxu0 0
        %2077 = vmatpush1.bf16.xpose.msra.mxu0 0
        %2078 = vmatprep.subr.bf16.mxu0 0
        %2079 = vmatpush1.bf16.xpose.msra.mxu0 0
        %2080 = vmatprep.subr.bf16.mxu0 0
        %2081 = vmatpush1.bf16.xpose.msra.mxu0 0
        %2082 = vmatprep.subr.bf16.mxu0 0
        %2083 = vmatpush1.bf16.xpose.msra.mxu0 0
        %2084 = vmatprep.mubr.bf16.mxu0 0
        %2085 = vmatmul.mubr.bf16.gmra.mrb[0].mxu0 %v2047
        %v2086 = vpop.f32.mrb[0].mxu0
        %v2087 = vadd.f32 0.0, %v2086
        %v2088 = vpop.f32.mrb[0].mxu0
        %v2089 = vpop.f32.mrb[0].mxu0
        %v2090 = vpop.f32.mrb[0].mxu0
        %2091 = vdwg.mxu0
        %v2092 = vsel %vm1421, %v2087, -inf
        %2093 = vmax.xlane.f32.xlu0 %v2092
        %v2094 = vpop.xlane.xlu0 %2093
        %v2095 = vsub.f32 %v2087, %v2094
        %v2096 = vmul.f32 %v2095, 1.442695
        %v2097 = vpow.pop %v2096
        %v2098 = vsel %vm1421, %v2097, 0.0
        %2099 = vadd.xlane.f32.xlu0 %v2098
        %v2100 = vpop.xlane.xlu0 %2099
        %v2101 = vpack.c.bf16 %v2097, %v2097
        %2102 = vrot.lane.b32.xlu0 %v1774, 104
        %v2103 = vpop.permute.xlu0 %2102
        %v2106 = vsel %vm1421, %v2101, 0
        %2108 = vmatprep.subr.bf16.mxu0 0
        %2109 = vmatpush1.bf16.msra.mxu0 %v2103
        %2110 = vmatprep.subr.bf16.mxu0 0
        %2111 = vmatpush1.bf16.msra.mxu0 0
        %2112 = vmatprep.subr.bf16.mxu0 0
        %2113 = vmatpush1.bf16.msra.mxu0 0
        %2114 = vmatprep.subr.bf16.mxu0 0
        %2115 = vmatpush1.bf16.msra.mxu0 0
        %2116 = vmatprep.subr.bf16.mxu0 0
        %2117 = vmatpush1.bf16.msra.mxu0 0
        %2118 = vmatprep.subr.bf16.mxu0 0
        %2119 = vmatpush1.bf16.msra.mxu0 0
        %2120 = vmatprep.subr.bf16.mxu0 0
        %2121 = vmatpush1.bf16.msra.mxu0 0
        %2122 = vmatprep.subr.bf16.mxu0 0
        %2123 = vmatpush1.bf16.msra.mxu0 0
        %2124 = vmatprep.subr.bf16.mxu0 0
        %2125 = vmatpush1.bf16.msra.mxu0 0
        %2126 = vmatprep.subr.bf16.mxu0 0
        %2127 = vmatpush1.bf16.msra.mxu0 0
        %2128 = vmatprep.subr.bf16.mxu0 0
        %2129 = vmatpush1.bf16.msra.mxu0 0
        %2130 = vmatprep.subr.bf16.mxu0 0
        %2131 = vmatpush1.bf16.msra.mxu0 0
        %2132 = vmatprep.subr.bf16.mxu0 0
        %2133 = vmatpush1.bf16.msra.mxu0 0
        %2134 = vmatprep.subr.bf16.mxu0 0
        %2135 = vmatpush1.bf16.msra.mxu0 0
        %2136 = vmatprep.subr.bf16.mxu0 0
        %2137 = vmatpush1.bf16.msra.mxu0 0
        %2138 = vmatprep.subr.bf16.mxu0 0
        %2139 = vmatpush1.bf16.msra.mxu0 0
        %2140 = vmatprep.mubr.bf16.mxu0 0
        %2141 = vmatmul.mubr.bf16.gmra.mrb[0].mxu0 %v2106
        %v2142 = vpop.f32.mrb[0].mxu0
        %v2143 = vadd.f32 0.0, %v2142
        %v2144 = vpop.f32.mrb[0].mxu0
        %v2145 = vpop.f32.mrb[0].mxu0
        %v2146 = vpop.f32.mrb[0].mxu0
        %2147 = vdwg.mxu0
        %v2148 = vrcp.pop %v2100
        %v2149 = vmul.f32 %v2143, %v2148
        %v2150 = vpack.c.bf16 %v2149, %v2149
        %2152 = vrot.lane.b32.xlu0 %v1932, 8
        %v2153 = vpop.permute.xlu0 %2152
        %2155 = vrot.lane.b32.xlu0 %v2041, 16
        %v2156 = vpop.permute.xlu0 %2155
        %2158 = vrot.lane.b32.xlu0 %v2150, 24
        %v2159 = vpop.permute.xlu0 %2158
        %v2162 = vsel %vm965, %v1820, %v2153
        %v2164 = vsel %vm1421, %v2162, %v2156
        %v2166 = vsel %vm1424, %v2164, %v2159
        %s2167 = scalar_lea.vmem %s730, 112
        %v2168 = vld [vmem:[%s2167] sm:$0xf]
        %v2169 = vld [vmem:[%s2167 + $0x4] sm:$0xf]
        %v2170 = vld [vmem:[%s2167 + $0x8] sm:$0xf]
        %v2171 = vld [vmem:[%s2167 + $0xc] sm:$0xf]
        %v2172 = vlaneseq
        %v2173 = vshrl.u32 %v2172, 7
        %v2174 = vsub.s32 7, %v2173
        %v2175 = vrot.slane %v767, %v2174
        %v2180 = vunpack.c.l.b16 %v2168
        %v2181 = vunpack.c.l.b16 %v2169
        %v2182 = vunpack.c.l.b16 %v2170
        %v2183 = vunpack.c.l.b16 %v2171
        %v2184 = vpack.c.b16 %v2181, %v2180
        %v2185 = vpack.c.b16 %v2183, %v2182
        %v2188 = vsel %vm792, %v2166, 0
        %2190 = vmatprep.subr.bf16.mxu0 0
        %2191 = vmatpush1.bf16.msra.mxu0 %v2184
        %2192 = vmatprep.subr.bf16.mxu0 0
        %2193 = vmatpush1.bf16.msra.mxu0 %v2185
        %2194 = vmatprep.subr.bf16.mxu0 0
        %2195 = vmatpush1.bf16.msra.mxu0 0
        %2196 = vmatprep.subr.bf16.mxu0 0
        %2197 = vmatpush1.bf16.msra.mxu0 0
        %2198 = vmatprep.subr.bf16.mxu0 0
        %2199 = vmatpush1.bf16.msra.mxu0 0
        %2200 = vmatprep.subr.bf16.mxu0 0
        %2201 = vmatpush1.bf16.msra.mxu0 0
        %2202 = vmatprep.subr.bf16.mxu0 0
        %2203 = vmatpush1.bf16.msra.mxu0 0
        %2204 = vmatprep.subr.bf16.mxu0 0
        %2205 = vmatpush1.bf16.msra.mxu0 0
        %2206 = vmatprep.subr.bf16.mxu0 0
        %2207 = vmatpush1.bf16.msra.mxu0 0
        %2208 = vmatprep.subr.bf16.mxu0 0
        %2209 = vmatpush1.bf16.msra.mxu0 0
        %2210 = vmatprep.subr.bf16.mxu0 0
        %2211 = vmatpush1.bf16.msra.mxu0 0
        %2212 = vmatprep.subr.bf16.mxu0 0
        %2213 = vmatpush1.bf16.msra.mxu0 0
        %2214 = vmatprep.subr.bf16.mxu0 0
        %2215 = vmatpush1.bf16.msra.mxu0 0
        %2216 = vmatprep.subr.bf16.mxu0 0
        %2217 = vmatpush1.bf16.msra.mxu0 0
        %2218 = vmatprep.subr.bf16.mxu0 0
        %2219 = vmatpush1.bf16.msra.mxu0 0
        %2220 = vmatprep.subr.bf16.mxu0 0
        %2221 = vmatpush1.bf16.msra.mxu0 0
        %2222 = vmatprep.mubr.bf16.mxu0 0
        %2223 = vmatmul.mubr.bf16.gmra.mrb[0].mxu0 %v2188
        %v2224 = vpop.f32.mrb[0].mxu0
        %v2225 = vadd.f32 %v2175, %v2224
        %v2226 = vpop.f32.mrb[0].mxu0
        %v2227 = vpop.f32.mrb[0].mxu0
        %v2228 = vpop.f32.mrb[0].mxu0
        %2229 = vdwg.mxu0
        %v2230 = vadd.f32 %v1514, %v2225
        %v2231 = vsel %vm792, %v2230, 0.0
        %2232 = vadd.xlane.f32.xlu0 %v2231
        %v2233 = vpop.xlane.xlu0 %2232
        %v2234 = vmul.f32 %v2233, %v1494
        %v2235 = vsub.f32 %v2230, %v2234
        %v2236 = vmul.f32 %v2235, %v2235
        %v2237 = vsel %vm792, %v2236, 0.0
        %2238 = vadd.xlane.f32.xlu0 %v2237
        %v2239 = vpop.xlane.xlu0 %2238
        %v2240 = vmul.f32 %v2239, %v1494
        %v2241 = vadd.f32 %v2240, 1e-05
        %v2242 = vrsqrt.pop %v2241
        %v2243 = vmul.f32 %v2235, %v2242
        %v2244 = vlaneseq
        %v2245 = vshrl.u32 %v2244, 7
        %v2246 = vsub.s32 1, %v2245
        %v2247 = vrot.slane %v768, %v2246
        %v2248 = vmul.f32 %v2243, %v2247
        %v2249 = vlaneseq
        %v2250 = vshrl.u32 %v2249, 7
        %v2251 = vsub.s32 1, %v2250
        %v2252 = vrot.slane %v769, %v2251
        %v2253 = vadd.f32 %v2248, %v2252
        %v2254 = vpack.c.bf16 %v2253, %v2253
        %v2255 = vld [vmem:[%s735] sm:$0xf]
        %v2256 = vld [vmem:[%s735 + $0x4] sm:$0xf]
        %v2257 = vld [vmem:[%s735 + $0x8] sm:$0xf]
        %v2258 = vld [vmem:[%s735 + $0xc] sm:$0xf]
        %v2259 = vld [vmem:[%s599] sm:$0x1]
        %v2261 = vlaneseq
        %v2262 = vshrl.u32 %v2261, 7
        %v2263 = vsub.s32 0, %v2262
        %v2264 = vrot.slane %v2259, %v2263
        %v2270 = vunpack.c.l.b16 %v2255
        %v2271 = vunpack.c.l.b16 %v2256
        %v2272 = vunpack.c.l.b16 %v2257
        %v2273 = vunpack.c.l.b16 %v2258
        %v2274 = vpack.c.b16 %v2271, %v2270
        %v2275 = vpack.c.b16 %v2273, %v2272
        %v2279 = vsel %vm792, %v2254, 0
        %2281 = vmatprep.subr.bf16.mxu0 0
        %2282 = vmatpush1.bf16.msra.mxu0 %v2274
        %2283 = vmatprep.subr.bf16.mxu0 0
        %2284 = vmatpush1.bf16.msra.mxu0 %v2275
        %2285 = vmatprep.subr.bf16.mxu0 0
        %2286 = vmatpush1.bf16.msra.mxu0 0
        %2287 = vmatprep.subr.bf16.mxu0 0
        %2288 = vmatpush1.bf16.msra.mxu0 0
        %2289 = vmatprep.subr.bf16.mxu0 0
        %2290 = vmatpush1.bf16.msra.mxu0 0
        %2291 = vmatprep.subr.bf16.mxu0 0
        %2292 = vmatpush1.bf16.msra.mxu0 0
        %2293 = vmatprep.subr.bf16.mxu0 0
        %2294 = vmatpush1.bf16.msra.mxu0 0
        %2295 = vmatprep.subr.bf16.mxu0 0
        %2296 = vmatpush1.bf16.msra.mxu0 0
        %2297 = vmatprep.subr.bf16.mxu0 0
        %2298 = vmatpush1.bf16.msra.mxu0 0
        %2299 = vmatprep.subr.bf16.mxu0 0
        %2300 = vmatpush1.bf16.msra.mxu0 0
        %2301 = vmatprep.subr.bf16.mxu0 0
        %2302 = vmatpush1.bf16.msra.mxu0 0
        %2303 = vmatprep.subr.bf16.mxu0 0
        %2304 = vmatpush1.bf16.msra.mxu0 0
        %2305 = vmatprep.subr.bf16.mxu0 0
        %2306 = vmatpush1.bf16.msra.mxu0 0
        %2307 = vmatprep.subr.bf16.mxu0 0
        %2308 = vmatpush1.bf16.msra.mxu0 0
        %2309 = vmatprep.subr.bf16.mxu0 0
        %2310 = vmatpush1.bf16.msra.mxu0 0
        %2311 = vmatprep.subr.bf16.mxu0 0
        %2312 = vmatpush1.bf16.msra.mxu0 0
        %2313 = vmatprep.mubr.bf16.mxu0 0
        %2314 = vmatmul.mubr.bf16.gmra.mrb[0].mxu0 %v2279
        %v2315 = vpop.f32.mrb[0].mxu0
        %v2316 = vadd.f32 %v2264, %v2315
        %v2317 = vpop.f32.mrb[0].mxu0
        %v2318 = vpop.f32.mrb[0].mxu0
        %v2319 = vpop.f32.mrb[0].mxu0
        %2320 = vdwg.mxu0
        %v2321 = vmax.f32 %v2316, 0.0
        %v2322 = vpack.c.bf16 %v2321, %v2321
        %v2323 = vld [vmem:[%s740] sm:$0xf]
        %v2324 = vld [vmem:[%s740 + $0x4] sm:$0xf]
        %v2325 = vld [vmem:[%s740 + $0x8] sm:$0xf]
        %v2326 = vld [vmem:[%s740 + $0xc] sm:$0xf]
        %v2327 = vld [vmem:[%s740 + $0x10] sm:$0xf]
        %v2328 = vld [vmem:[%s740 + $0x14] sm:$0xf]
        %v2329 = vld [vmem:[%s740 + $0x18] sm:$0xf]
        %v2330 = vld [vmem:[%s740 + $0x1c] sm:$0xf]
        %v2331 = vld [vmem:[%s607] sm:$0x1]
        %v2333 = vlaneseq
        %v2334 = vshrl.u32 %v2333, 7
        %v2335 = vsub.s32 0, %v2334
        %v2336 = vrot.slane %v2331, %v2335
        %v2346 = vunpack.c.l.b16 %v2323
        %v2347 = vunpack.c.l.b16 %v2324
        %v2348 = vunpack.c.l.b16 %v2325
        %v2349 = vunpack.c.l.b16 %v2326
        %v2350 = vunpack.c.l.b16 %v2327
        %v2351 = vunpack.c.l.b16 %v2328
        %v2352 = vunpack.c.l.b16 %v2329
        %v2353 = vunpack.c.l.b16 %v2330
        %v2354 = vpack.c.b16 %v2347, %v2346
        %v2355 = vpack.c.b16 %v2349, %v2348
        %v2356 = vpack.c.b16 %v2351, %v2350
        %v2357 = vpack.c.b16 %v2353, %v2352
        %vm2362 = vcmask 523264
        %v2364 = vsel %vm2362, %v2322, 0
        %2366 = vmatprep.subr.bf16.mxu0 0
        %2367 = vmatpush1.bf16.msra.mxu0 %v2354
        %2368 = vmatprep.subr.bf16.mxu0 0
        %2369 = vmatpush1.bf16.msra.mxu0 %v2355
        %2370 = vmatprep.subr.bf16.mxu0 0
        %2371 = vmatpush1.bf16.msra.mxu0 %v2356
        %2372 = vmatprep.subr.bf16.mxu0 0
        %2373 = vmatpush1.bf16.msra.mxu0 %v2357
        %2374 = vmatprep.subr.bf16.mxu0 0
        %2375 = vmatpush1.bf16.msra.mxu0 0
        %2376 = vmatprep.subr.bf16.mxu0 0
        %2377 = vmatpush1.bf16.msra.mxu0 0
        %2378 = vmatprep.subr.bf16.mxu0 0
        %2379 = vmatpush1.bf16.msra.mxu0 0
        %2380 = vmatprep.subr.bf16.mxu0 0
        %2381 = vmatpush1.bf16.msra.mxu0 0
        %2382 = vmatprep.subr.bf16.mxu0 0
        %2383 = vmatpush1.bf16.msra.mxu0 0
        %2384 = vmatprep.subr.bf16.mxu0 0
        %2385 = vmatpush1.bf16.msra.mxu0 0
        %2386 = vmatprep.subr.bf16.mxu0 0
        %2387 = vmatpush1.bf16.msra.mxu0 0
        %2388 = vmatprep.subr.bf16.mxu0 0
        %2389 = vmatpush1.bf16.msra.mxu0 0
        %2390 = vmatprep.subr.bf16.mxu0 0
        %2391 = vmatpush1.bf16.msra.mxu0 0
        %2392 = vmatprep.subr.bf16.mxu0 0
        %2393 = vmatpush1.bf16.msra.mxu0 0
        %2394 = vmatprep.subr.bf16.mxu0 0
        %2395 = vmatpush1.bf16.msra.mxu0 0
        %2396 = vmatprep.subr.bf16.mxu0 0
        %2397 = vmatpush1.bf16.msra.mxu0 0
        %2398 = vmatprep.mubr.bf16.mxu0 0
        %2399 = vmatmul.mubr.bf16.gmra.mrb[0].mxu0 %v2364
        %v2400 = vpop.f32.mrb[0].mxu0
        %v2401 = vadd.f32 %v2336, %v2400
        %v2402 = vpop.f32.mrb[0].mxu0
        %v2403 = vpop.f32.mrb[0].mxu0
        %v2404 = vpop.f32.mrb[0].mxu0
        %2405 = vdwg.mxu0
        %v2406 = vadd.f32 %v2253, %v2401
        %v2407 = vsel %vm792, %v2406, 0.0
        %2408 = vadd.xlane.f32.xlu0 %v2407
        %v2409 = vpop.xlane.xlu0 %2408
        %v2410 = vmul.f32 %v2409, %v1494
        %v2411 = vsub.f32 %v2406, %v2410
        %v2412 = vmul.f32 %v2411, %v2411
        %v2413 = vsel %vm792, %v2412, 0.0
        %2414 = vadd.xlane.f32.xlu0 %v2413
        %v2415 = vpop.xlane.xlu0 %2414
        %v2416 = vmul.f32 %v2415, %v1494
        %v2417 = vadd.f32 %v2416, 1e-05
        %v2418 = vrsqrt.pop %v2417
        %v2419 = vmul.f32 %v2411, %v2418
        %v2420 = vlaneseq
        %v2421 = vshrl.u32 %v2420, 7
        %v2422 = vsub.s32 2, %v2421
        %v2423 = vrot.slane %v768, %v2422
        %v2424 = vmul.f32 %v2419, %v2423
        %v2425 = vlaneseq
        %v2426 = vshrl.u32 %v2425, 7
        %v2427 = vsub.s32 2, %v2426
        %v2428 = vrot.slane %v769, %v2427
        %v2429 = vadd.f32 %v2424, %v2428
        %2430 = vst.msk [vmem:[#allocation2] sm:$0xff] %vm792, %v2429
        %p2431 = scmp.eq.s32.totalorder %s37, 1
        // Predicated region
        $region101: #{transformer_decoder_forward.1} parent=75 // pred_check
          %p2432 = pneg %p2431
        $region102: #{transformer_decoder_forward.1} parent=75 // pred_check_branch
          %2434 = sbr.rel (%p2432) target = $region104
        $region103: #{transformer_decoder_forward.1} parent=75 // pred_region
          %v2435 = vld [vmem:[#allocation8] sm:$0x1]
          %v2436 = vld [vmem:[#allocation10] sm:$0x1]
          %v2437 = vsel %vm792, %v2429, 0.0
          %2438 = vadd.xlane.f32.xlu0 %v2437
          %v2439 = vpop.xlane.xlu0 %2438
          %v2440 = vmul.f32 %v2439, %v1494
          %v2441 = vsub.f32 %v2429, %v2440
          %v2442 = vmul.f32 %v2441, %v2441
          %v2443 = vsel %vm792, %v2442, 0.0
          %2444 = vadd.xlane.f32.xlu0 %v2443
          %v2445 = vpop.xlane.xlu0 %2444
          %v2446 = vmul.f32 %v2445, %v1494
          %v2447 = vadd.f32 %v2446, 1e-05
          %v2448 = vrsqrt.pop %v2447
          %v2449 = vmul.f32 %v2441, %v2448
          %v2451 = vlaneseq
          %v2452 = vshrl.u32 %v2451, 7
          %v2453 = vsub.s32 0, %v2452
          %v2454 = vrot.slane %v2435, %v2453
          %v2456 = vmul.f32 %v2449, %v2454
          %v2458 = vlaneseq
          %v2459 = vshrl.u32 %v2458, 7
          %v2460 = vsub.s32 0, %v2459
          %v2461 = vrot.slane %v2436, %v2460
          %v2463 = vadd.f32 %v2456, %v2461
          %2464 = vst.msk [vmem:[%s752] sm:$0xff] %vm792, %v2463
        $region104: #{transformer_decoder_forward.1} parent=75 // pred_fallthru
          _
        %p2465 = scmp.lt.s32.totalorder %s36, 1
        %s2466 = scalar_select %p2465, %s36, 1
        %s2467 = smul.addr %s2466, 8
        %s2468 = scalar_lea.vmem %s14, %s2467
        // Predicated region
        $region105: #{transformer_decoder_forward.1} parent=75 // pred_check
          %p2469 = pneg %p416
        $region106: #{transformer_decoder_forward.1} parent=75 // pred_check_branch
          %2471 = sbr.rel (%p2469) target = $region108
        $region107: #{transformer_decoder_forward.1} parent=75 // pred_region
          _
        $region108: #{transformer_decoder_forward.1} parent=75 // pred_fallthru
          _
      $region76: #{transformer_decoder_forward.1} parent=5 // pred_fallthru
        _
      %p2472 = scmp.le.s32.totalorder 2, %s27
      // Predicated region
      $region109: #{transformer_decoder_forward.1} parent=5 // pred_check
        %p2473 = pneg %p2472
      $region110: #{transformer_decoder_forward.1} parent=5 // pred_check_branch
        %2475 = sbr.rel (%p2473) target = $region112
      $region111: #{transformer_decoder_forward.1} parent=5 // pred_region
        %s2476 = ssub.s32 %s27, 2
        // Predicated region
        $region113: #{transformer_decoder_forward.1} parent=111 // pred_check
          %p2477 = pneg %p422
        $region114: #{transformer_decoder_forward.1} parent=111 // pred_check_branch
          %2479 = sbr.rel (%p2477) target = $region116
        $region115: #{transformer_decoder_forward.1} parent=111 // pred_region
          %p2480 = scmp.lt.s32.totalorder %s38, 1
          %s2481 = scalar_select %p2480, %s38, 1
          %s2482 = smul.addr %s2481, 8
          %s2483 = scalar_lea.vmem %s14, %s2482
        $region116: #{transformer_decoder_forward.1} parent=111 // pred_fallthru
          _
      $region112: #{transformer_decoder_forward.1} parent=5 // pred_fallthru
        _
    $region6: #{transformer_decoder_forward.1} parent=1 // loop_footer
      %s31 = sadd.s32 1, %s27
    $region7: #{transformer_decoder_forward.1} parent=1 // loop_footer_branch
      %26 = sbr.rel target = $region3
    $region8: #{transformer_decoder_forward.1} parent=1 // loop_exit
      _
    %2484 = vsyncpa [#allocation4], 1
    %s2485 = scalar_lea.sflag [#allocation4], 1
    %2486 = vsyncpa %s2485, 1
    %2487 = vsyncpa [#allocation6], 1
    %s2488 = scalar_lea.sflag [#allocation6], 1
    %2489 = vsyncpa %s2488, 1
    %2490 = vsyncpa [#allocation9], 1

</llo_original>
